<compile_context>
chip_gen: v5e
topology: v5e:2x2
jax: 0.10.0
libtpu: 0.0.40
codegen_flags: <defaults>
</compile_context>

<pallas_src>
import functools

import jax
import jax.numpy as jnp
from jax.experimental import pallas as pl
from jax.experimental.pallas import tpu as pltpu


# ------------------------- generation-aware tiling ---------------------------

def _tpu_vmem_bytes():
    try:
        return int(pltpu.get_tpu_info().vmem_capacity_bytes)
    except Exception:
        return 64 * 1024 * 1024          # conservative: v7x per-TensorCore VMEM


_VMEM_CAP = _tpu_vmem_bytes()
if _VMEM_CAP >= 100 * 1024 * 1024:       # v5e / v6e: 128 MiB physical VMEM
    _DEF_TM, _DEF_TN = 1024, 1024
    _VMEM_LIMIT = 96 * 1024 * 1024
else:                                    # v7x: 64 MiB per TensorCore
    _DEF_TM, _DEF_TN = 512, 512
    _VMEM_LIMIT = 48 * 1024 * 1024


def _sublane_quantum(dtype):
    # sublane packing: 8 rows for f32, 16 for bf16, 32 for int8
    return max(8, 32 // jnp.dtype(dtype).itemsize)


def _pick_tile(dim, target, quantum):
    """Full dim if it already fits the target, else the largest multiple of
    `quantum` <= target (ragged last blocks are handled by masked stores)."""
    if dim <= target:
        return dim
    return max((target // quantum) * quantum, quantum)


# ------------------------------ Pallas kernels -------------------------------

def _ln_matmul_kernel(x_ref, g_ref, b_ref, w_ref, bias_ref, o_ref, ln_ref, *,
                      activation):
    """(LayerNorm(x) @ W + b), optional QuickGELU.  Grid = (M tiles, N tiles).
    The normalized row tile is computed once per M tile (at N index 0) and kept
    in a VMEM scratch so every N tile reuses it (x block is resident across j).
    NOTE: relies on the N axis being the innermost, sequential ('arbitrary')
    grid axis."""
    @pl.when(pl.program_id(1) == 0)
    def _():
        x = x_ref[...].astype(jnp.float32)
        mean = jnp.mean(x, axis=-1, keepdims=True)
        var = jnp.mean(jnp.square(x - mean), axis=-1, keepdims=True)
        y = (x - mean) * jax.lax.rsqrt(var + 1e-5)
        y = y * g_ref[...].astype(jnp.float32) + b_ref[...].astype(jnp.float32)
        ln_ref[...] = y.astype(ln_ref.dtype)

    acc = jnp.dot(ln_ref[...], w_ref[...], preferred_element_type=jnp.float32)
    h = acc + bias_ref[...].astype(jnp.float32)
    if activation == "quick_gelu":
        h = h * jax.nn.sigmoid(1.702 * h)            # CLIP QuickGELU
    o_ref[...] = h.astype(o_ref.dtype)


def _matmul_residual_kernel(x_ref, w_ref, bias_ref, res_ref, o_ref):
    """x @ W + b + residual (residual buffer is aliased onto the output)."""
    acc = jnp.dot(x_ref[...], w_ref[...], preferred_element_type=jnp.float32)
    acc = acc + bias_ref[...].astype(jnp.float32) + res_ref[...].astype(jnp.float32)
    o_ref[...] = acc.astype(o_ref.dtype)


def _mha_outproj_kernel(qkv_ref, w_ref, b_ref, res_ref, o_ref, *, n_head):
    """Fused causal MHA + out-projection + bias + residual.

    One grid step handles Bt batch elements, ALL heads.  qkv layout matches
    nn.MultiheadAttention in_proj ([q | k | v], heads = contiguous Dh chunks of
    the lane axis).  The 1/sqrt(Dh) scale is pre-folded into the q weights, so
    q/k/v go to the MXU in their native dtype.  Per-head outputs are
    concatenated and written with a single full-width lane-dense store."""
    Bt, S, W3 = qkv_ref.shape
    W = W3 // 3
    Dh = W // n_head

    row = jax.lax.broadcasted_iota(jnp.int32, (S, S), 0)
    col = jax.lax.broadcasted_iota(jnp.int32, (S, S), 1)
    causal = col <= row                              # built once per grid step

    for b in range(Bt):                              # static unroll over batch block
        q = qkv_ref[b, :, 0:W]                       # native dtype; scale pre-folded
        k = qkv_ref[b, :, W:2 * W]
        v = qkv_ref[b, :, 2 * W:3 * W]

        heads = []
        for h in range(n_head):                      # static unroll over heads
            lo, hi = h * Dh, (h + 1) * Dh
            s = jax.lax.dot_general(q[:, lo:hi], k[:, lo:hi],
                                    (((1,), (1,)), ((), ())),
                                    preferred_element_type=jnp.float32)
            s = jnp.where(causal, s, -1e30)
            s = s - jnp.max(s, axis=-1, keepdims=True)
            p = jnp.exp(s)
            p = p * pl.reciprocal(jnp.sum(p, axis=-1, keepdims=True), approx=True)
            heads.append(jnp.dot(p.astype(v.dtype), v[:, lo:hi],
                                 preferred_element_type=jnp.float32))

        attn = jnp.concatenate(heads, axis=-1).astype(qkv_ref.dtype)  # (S, W)
        out = jnp.dot(attn, w_ref[...], preferred_element_type=jnp.float32)
        out = out + b_ref[...].astype(jnp.float32) + res_ref[b].astype(jnp.float32)
        o_ref[b] = out.astype(o_ref.dtype)           # single lane-dense (S, W) store


def _ln_proj_kernel(x_ref, g_ref, b_ref, w_ref, o_ref):
    """ln_final followed by the bias-free text projection (B rows only)."""
    x = x_ref[...].astype(jnp.float32)
    mean = jnp.mean(x, axis=-1, keepdims=True)
    var = jnp.mean(jnp.square(x - mean), axis=-1, keepdims=True)
    y = (x - mean) * jax.lax.rsqrt(var + 1e-5)
    y = y * g_ref[...].astype(jnp.float32) + b_ref[...].astype(jnp.float32)
    h = y.astype(x_ref.dtype)
    o_ref[...] = jnp.dot(h, w_ref[...],
                         preferred_element_type=jnp.float32).astype(o_ref.dtype)


# --------------------------------- wrappers ----------------------------------

def ln_linear(x2d, gamma, beta, w, b, activation=None):
    M, K = x2d.shape
    N = w.shape[1]
    tm = _pick_tile(M, _DEF_TM, _sublane_quantum(x2d.dtype))
    tn = _pick_tile(N, _DEF_TN, 128)
    return pl.pallas_call(
        functools.partial(_ln_matmul_kernel, activation=activation),
        grid=(pl.cdiv(M, tm), pl.cdiv(N, tn)),
        in_specs=[
            pl.BlockSpec((tm, K), lambda i, j: (i, 0)),   # activations (resident over j)
            pl.BlockSpec((1, K), lambda i, j: (0, 0)),    # LN gamma
            pl.BlockSpec((1, K), lambda i, j: (0, 0)),    # LN beta
            pl.BlockSpec((K, tn), lambda i, j: (0, j)),   # weight
            pl.BlockSpec((1, tn), lambda i, j: (0, j)),   # bias
        ],
        out_specs=pl.BlockSpec((tm, tn), lambda i, j: (i, j)),
        out_shape=jax.ShapeDtypeStruct((M, N), x2d.dtype),
        scratch_shapes=[pltpu.VMEM((tm, K), x2d.dtype)],
        compiler_params=pltpu.CompilerParams(
            dimension_semantics=("parallel", "arbitrary"),
            vmem_limit_bytes=_VMEM_LIMIT),
    )(x2d, gamma.reshape(1, K), beta.reshape(1, K), w, b.reshape(1, N))


def linear_residual(x2d, w, b, residual):
    M, K = x2d.shape
    N = w.shape[1]
    tm = _pick_tile(M, _DEF_TM, _sublane_quantum(x2d.dtype))
    tn = _pick_tile(N, _DEF_TN, 128)
    return pl.pallas_call(
        _matmul_residual_kernel,
        grid=(pl.cdiv(M, tm), pl.cdiv(N, tn)),
        in_specs=[
            pl.BlockSpec((tm, K), lambda i, j: (i, 0)),
            pl.BlockSpec((K, tn), lambda i, j: (0, j)),
            pl.BlockSpec((1, tn), lambda i, j: (0, j)),
            pl.BlockSpec((tm, tn), lambda i, j: (i, j)),  # residual
        ],
        out_specs=pl.BlockSpec((tm, tn), lambda i, j: (i, j)),
        out_shape=jax.ShapeDtypeStruct((M, N), x2d.dtype),
        input_output_aliases={3: 0},                      # residual buffer -> output
        compiler_params=pltpu.CompilerParams(
            dimension_semantics=("parallel", "parallel"),
            vmem_limit_bytes=_VMEM_LIMIT),
    )(x2d, w, b.reshape(1, N), residual)


def causal_mha_outproj(qkv, out_w, out_b, residual, n_head):
    """Fused attention: qkv (B,S,3W) -> attn -> @out_w + out_b + residual."""
    B, S, W3 = qkv.shape
    W = W3 // 3
    # Several batch elements per grid step (amortizes per-step overhead), but
    # keep >= 2 grid steps so both v7x TensorCores get work when B allows it.
    bt = max(1, min(8, B // 2)) if B > 1 else 1
    return pl.pallas_call(
        functools.partial(_mha_outproj_kernel, n_head=n_head),
        grid=(pl.cdiv(B, bt),),
        in_specs=[
            pl.BlockSpec((bt, S, W3), lambda b: (b, 0, 0)),
            pl.BlockSpec((W, W), lambda b: (0, 0)),
            pl.BlockSpec((1, W), lambda b: (0, 0)),
            pl.BlockSpec((bt, S, W), lambda b: (b, 0, 0)),   # residual
        ],
        out_specs=pl.BlockSpec((bt, S, W), lambda b: (b, 0, 0)),
        out_shape=jax.ShapeDtypeStruct((B, S, W), qkv.dtype),
        input_output_aliases={3: 0},                          # residual -> output
        compiler_params=pltpu.CompilerParams(
            dimension_semantics=("parallel",),
            vmem_limit_bytes=_VMEM_LIMIT),
    )(qkv, out_w, out_b.reshape(1, W), residual)


def ln_project(x2d, gamma, beta, w):
    M, K = x2d.shape
    N = w.shape[1]
    tm = _pick_tile(M, _DEF_TM, _sublane_quantum(x2d.dtype))
    return pl.pallas_call(
        _ln_proj_kernel,
        grid=(pl.cdiv(M, tm),),
        in_specs=[pl.BlockSpec((tm, K), lambda i: (i, 0)),
                  pl.BlockSpec((1, K), lambda i: (0, 0)),
                  pl.BlockSpec((1, K), lambda i: (0, 0)),
                  pl.BlockSpec((K, N), lambda i: (0, 0))],
        out_specs=pl.BlockSpec((tm, N), lambda i: (i, 0)),
        out_shape=jax.ShapeDtypeStruct((M, N), x2d.dtype),
        compiler_params=pltpu.CompilerParams(
            dimension_semantics=("parallel",),
            vmem_limit_bytes=_VMEM_LIMIT),
    )(x2d, gamma.reshape(1, K), beta.reshape(1, K), w)


# ------------------------ transformer / text encoder -------------------------

def residual_attention_block(x, p, n_head):
    B, S, W = x.shape
    x2d = x.reshape(B * S, W)
    # x = x + attn(ln_1(x))   (out-proj + bias + residual fused into the MHA kernel)
    qkv = ln_linear(x2d, p["ln1_g"], p["ln1_b"], p["attn_in_w"], p["attn_in_b"])
    x = causal_mha_outproj(qkv.reshape(B, S, 3 * W),
                           p["attn_out_w"], p["attn_out_b"], x, n_head)
    # x = x + mlp(ln_2(x))
    x2d = x.reshape(B * S, W)
    h = ln_linear(x2d, p["ln2_g"], p["ln2_b"], p["mlp_fc_w"], p["mlp_fc_b"],
                  activation="quick_gelu")
    x2d = linear_residual(h, p["mlp_proj_w"], p["mlp_proj_b"], x2d)
    return x2d.reshape(B, S, W)


def text_encoder_forward(params, x, tokenized_prompts, *, n_head, position=True):
    B, S, W = x.shape
    if position:
        # Trivial elementwise add left in XLA (a dedicated pallas_call here is
        # pure launch / per-step overhead).
        x = x + params["positional_embedding"][None].astype(x.dtype)
    # permute(1,0,2) -> transformer -> permute(1,0,2): folded (batch-first attention).
    for layer_p in params["layers"]:
        x = residual_attention_block(x, layer_p, n_head)
    # Gather the EOT rows first (LayerNorm is per-row), so ln_final + projection
    # only process B rows instead of B*S.
    eot = jnp.argmax(tokenized_prompts, axis=-1)
    # TODO(synk): data-dependent EOT row gather stays in XLA; could be folded into
    # ln_project via PrefetchScalarGridSpec + pl.Element if it shows in profiles.
    x_eot = x[jnp.arange(B), eot]
    return ln_project(x_eot, params["ln_final_g"], params["ln_final_b"],
                      params["text_projection"])


# -------------------------------- parameters ---------------------------------

def init_params(key, *, width, n_layers, seq, proj_dim, n_head, dtype=jnp.float32):
    keys = iter(jax.random.split(key, 8 + 8 * n_layers))

    def nrm(shape, scale=0.02):
        return (scale * jax.random.normal(next(keys), shape, jnp.float32)).astype(dtype)

    dh = width // n_head
    qscale = dh ** -0.5

    params = {
        "positional_embedding": nrm((seq, width)),
        "ln_final_g": jnp.ones((width,), dtype),
        "ln_final_b": jnp.zeros((width,), dtype),
        "text_projection": nrm((width, proj_dim)),
        "layers": [],
    }
    for _ in range(n_layers):
        # Fold the 1/sqrt(Dh) attention scale into the q columns of the fused
        # QKV projection (weight AND bias) so the attention kernel never
        # multiplies q at runtime.  (When porting real CLIP weights:
        # attn_in_w = in_proj_weight.T, then apply the same q-column scaling.)
        attn_in_w = nrm((width, 3 * width))
        attn_in_w = attn_in_w.at[:, :width].multiply(qscale)
        attn_in_b = jnp.zeros((3 * width,), dtype)
        attn_in_b = attn_in_b.at[:width].multiply(qscale)
        params["layers"].append({
            "ln1_g": jnp.ones((width,), dtype),
            "ln1_b": jnp.zeros((width,), dtype),
            "attn_in_w": attn_in_w,                     # = in_proj_weight.T (q-scaled)
            "attn_in_b": attn_in_b,
            "attn_out_w": nrm((width, width)),          # = out_proj.weight.T
            "attn_out_b": jnp.zeros((width,), dtype),
            "ln2_g": jnp.ones((width,), dtype),
            "ln2_b": jnp.zeros((width,), dtype),
            "mlp_fc_w": nrm((width, 4 * width)),
            "mlp_fc_b": jnp.zeros((4 * width,), dtype),
            "mlp_proj_w": nrm((4 * width, width)),
            "mlp_proj_b": jnp.zeros((width,), dtype),
        })
    return params


if __name__ == "__main__":
    B, S, W, H, L, E = 2, 8, 32, 4, 2, 32   # batch, seq, width, heads, layers, proj dim
    key = jax.random.PRNGKey(0)
    k_param, k_x, k_tok = jax.random.split(key, 3)

    params = init_params(k_param, width=W, n_layers=L, seq=S, proj_dim=E, n_head=H)
    x = jax.random.normal(k_x, (B, S, W), jnp.float32)   # prompt embeddings
    tok = jax.random.randint(k_tok, (B, S), 1, 100)      # synthetic token ids
    tok = tok.at[0, 5].set(1000).at[1, 7].set(1000)      # EOT = max token id

    fwd = jax.jit(functools.partial(text_encoder_forward, n_head=H, position=True))
    out = fwd(params, x, tok)
    jax.block_until_ready(out)
    assert out.shape == (B, E) and out.dtype == jnp.float32
    print("KERNEL_OK")
</pallas_src>

<mosaic_0001>
module attributes {stable_mosaic.version = 11 : i64} {
  func.func @_ln_matmul_kernel(%arg0: i32, %arg1: i32, %arg2: memref<16x32xf32, #tpu.memory_space<vmem>>, %arg3: memref<1x32xf32, #tpu.memory_space<vmem>>, %arg4: memref<1x32xf32, #tpu.memory_space<vmem>>, %arg5: memref<32x96xf32, #tpu.memory_space<vmem>>, %arg6: memref<1x96xf32, #tpu.memory_space<vmem>>, %arg7: memref<16x96xf32, #tpu.memory_space<vmem>>, %arg8: memref<16x32xf32, #tpu.memory_space<vmem>>) attributes {dimension_semantics = [#tpu.dimension_semantics<parallel>, #tpu.dimension_semantics<arbitrary>], iteration_bounds = array<i64: 1, 1>, scalar_prefetch = 0 : i64, scratch_operands = 1 : i64, tpu.core_type = #tpu.core_type<tc>, window_params = [{transform_indices = @transform_0, window_bounds = array<i64: 16, 32>}, {pipeline_mode = #tpu.pipeline_mode<synchronous>, transform_indices = @transform_1, window_bounds = array<i64: 1, 32>}, {pipeline_mode = #tpu.pipeline_mode<synchronous>, transform_indices = @transform_2, window_bounds = array<i64: 1, 32>}, {transform_indices = @transform_3, window_bounds = array<i64: 32, 96>}, {transform_indices = @transform_4, window_bounds = array<i64: 1, 96>}, {transform_indices = @transform_5, window_bounds = array<i64: 16, 96>}]} {
    %c0_i32 = arith.constant 0 : i32
    %0 = arith.cmpi eq, %arg1, %c0_i32 : i32
    %1 = arith.extui %0 : i1 to i32
    %c0_i32_0 = arith.constant 0 : i32
    %2 = arith.cmpi ne, %1, %c0_i32_0 : i32
    scf.if %2 {
      %c0_8 = arith.constant 0 : index
      %c0_9 = arith.constant 0 : index
      %10 = vector.load %arg2[%c0_8, %c0_9] : memref<16x32xf32, #tpu.memory_space<vmem>>, vector<16x32xf32>
      %cst_10 = arith.constant dense<0.000000e+00> : vector<16xf32>
      %11 = vector.multi_reduction <add>, %10, %cst_10 [1] : vector<16x32xf32> to vector<16xf32>
      %12 = vector.shape_cast %11 : vector<16xf32> to vector<16x1xf32>
      %cst_11 = arith.constant 3.200000e+01 : f32
      %13 = vector.broadcast %cst_11 : f32 to vector<16x1xf32>
      %14 = arith.divf %12, %13 : vector<16x1xf32>
      %15 = vector.broadcast %14 : vector<16x1xf32> to vector<16x32xf32>
      %16 = arith.subf %10, %15 : vector<16x32xf32>
      %17 = arith.mulf %16, %16 : vector<16x32xf32>
      %cst_12 = arith.constant dense<0.000000e+00> : vector<16xf32>
      %18 = vector.multi_reduction <add>, %17, %cst_12 [1] : vector<16x32xf32> to vector<16xf32>
      %19 = vector.shape_cast %18 : vector<16xf32> to vector<16x1xf32>
      %cst_13 = arith.constant 3.200000e+01 : f32
      %20 = vector.broadcast %cst_13 : f32 to vector<16x1xf32>
      %21 = arith.divf %19, %20 : vector<16x1xf32>
      %22 = vector.broadcast %14 : vector<16x1xf32> to vector<16x32xf32>
      %23 = arith.subf %10, %22 : vector<16x32xf32>
      %cst_14 = arith.constant 9.99999974E-6 : f32
      %24 = vector.broadcast %cst_14 : f32 to vector<16x1xf32>
      %25 = arith.addf %21, %24 : vector<16x1xf32>
      %26 = math.rsqrt %25 : vector<16x1xf32>
      %27 = vector.broadcast %26 : vector<16x1xf32> to vector<16x32xf32>
      %28 = arith.mulf %23, %27 : vector<16x32xf32>
      %c0_15 = arith.constant 0 : index
      %c0_16 = arith.constant 0 : index
      %29 = vector.load %arg3[%c0_15, %c0_16] : memref<1x32xf32, #tpu.memory_space<vmem>>, vector<1x32xf32>
      %30 = vector.broadcast %29 : vector<1x32xf32> to vector<16x32xf32>
      %31 = arith.mulf %28, %30 : vector<16x32xf32>
      %c0_17 = arith.constant 0 : index
      %c0_18 = arith.constant 0 : index
      %32 = vector.load %arg4[%c0_17, %c0_18] : memref<1x32xf32, #tpu.memory_space<vmem>>, vector<1x32xf32>
      %33 = vector.broadcast %32 : vector<1x32xf32> to vector<16x32xf32>
      %34 = arith.addf %31, %33 : vector<16x32xf32>
      %c0_19 = arith.constant 0 : index
      %c0_20 = arith.constant 0 : index
      %35 = vector.load %arg8[%c0_19, %c0_20] : memref<16x32xf32, #tpu.memory_space<vmem>>, vector<16x32xf32>
      tpu.vector_store %arg8[%c0_19, %c0_20], %34 {strides = array<i32>} : memref<16x32xf32, #tpu.memory_space<vmem>>, vector<16x32xf32>,
    } else {
    }
    %c0 = arith.constant 0 : index
    %c0_1 = arith.constant 0 : index
    %3 = vector.load %arg8[%c0, %c0_1] : memref<16x32xf32, #tpu.memory_space<vmem>>, vector<16x32xf32>
    %c0_2 = arith.constant 0 : index
    %c0_3 = arith.constant 0 : index
    %4 = vector.load %arg5[%c0_2, %c0_3] : memref<32x96xf32, #tpu.memory_space<vmem>>, vector<32x96xf32>
    %cst = arith.constant dense<0.000000e+00> : vector<16x96xf32>
    %5 = tpu.matmul %3, %4, %cst {dimension_numbers = #tpu.dot_dimension_numbers<[1], [0], [0], [1], [0, 0, 1, 1], [], []>} : vector<16x32xf32>, vector<32x96xf32>, vector<16x96xf32> -> vector<16x96xf32>
    %c0_4 = arith.constant 0 : index
    %c0_5 = arith.constant 0 : index
    %6 = vector.load %arg6[%c0_4, %c0_5] : memref<1x96xf32, #tpu.memory_space<vmem>>, vector<1x96xf32>
    %7 = vector.broadcast %6 : vector<1x96xf32> to vector<16x96xf32>
    %8 = arith.addf %5, %7 : vector<16x96xf32>
    %c0_6 = arith.constant 0 : index
    %c0_7 = arith.constant 0 : index
    %9 = vector.load %arg7[%c0_6, %c0_7] : memref<16x96xf32, #tpu.memory_space<vmem>>, vector<16x96xf32>
    tpu.vector_store %arg7[%c0_6, %c0_7], %8 {strides = array<i32>} : memref<16x96xf32, #tpu.memory_space<vmem>>, vector<16x96xf32>,
    return
  }
  func.func @transform_0(%arg0: i32, %arg1: i32) -> (i32, i32) {
    %c0_i32 = arith.constant 0 : i32
    %c0_i32_0 = arith.constant 0 : i32
    return %arg0, %c0_i32 : i32, i32
  }
  func.func @transform_1(%arg0: i32, %arg1: i32) -> (i32, i32) {
    %c0_i32 = arith.constant 0 : i32
    %c0_i32_0 = arith.constant 0 : i32
    %c0_i32_1 = arith.constant 0 : i32
    return %c0_i32, %c0_i32_0 : i32, i32
  }
  func.func @transform_2(%arg0: i32, %arg1: i32) -> (i32, i32) {
    %c0_i32 = arith.constant 0 : i32
    %c0_i32_0 = arith.constant 0 : i32
    %c0_i32_1 = arith.constant 0 : i32
    return %c0_i32, %c0_i32_0 : i32, i32
  }
  func.func @transform_3(%arg0: i32, %arg1: i32) -> (i32, i32) {
    %c0_i32 = arith.constant 0 : i32
    %c0_i32_0 = arith.constant 0 : i32
    return %c0_i32, %arg1 : i32, i32
  }
  func.func @transform_4(%arg0: i32, %arg1: i32) -> (i32, i32) {
    %c0_i32 = arith.constant 0 : i32
    %c0_i32_0 = arith.constant 0 : i32
    return %c0_i32, %arg1 : i32, i32
  }
  func.func @transform_5(%arg0: i32, %arg1: i32) -> (i32, i32) {
    %c0_i32 = arith.constant 0 : i32
    return %arg0, %arg1 : i32, i32
  }
}

module attributes {stable_mosaic.version = 11 : i64} {
  func.func @_mha_outproj_kernel(%arg0: i32, %arg1: memref<1x8x96xf32, #tpu.memory_space<vmem>>, %arg2: memref<32x32xf32, #tpu.memory_space<vmem>>, %arg3: memref<1x32xf32, #tpu.memory_space<vmem>>, %arg4: memref<1x8x32xf32, #tpu.memory_space<vmem>>, %arg5: memref<1x8x32xf32, #tpu.memory_space<vmem>>) attributes {dimension_semantics = [#tpu.dimension_semantics<parallel>], iteration_bounds = array<i64: 2>, scalar_prefetch = 0 : i64, scratch_operands = 0 : i64, tpu.core_type = #tpu.core_type<tc>, window_params = [{transform_indices = @transform_0, window_bounds = array<i64: 1, 8, 96>}, {pipeline_mode = #tpu.pipeline_mode<synchronous>, transform_indices = @transform_1, window_bounds = array<i64: 32, 32>}, {pipeline_mode = #tpu.pipeline_mode<synchronous>, transform_indices = @transform_2, window_bounds = array<i64: 1, 32>}, {transform_indices = @transform_3, window_bounds = array<i64: 1, 8, 32>}, {transform_indices = @transform_4, window_bounds = array<i64: 1, 8, 32>}]} {
    %0 = tpu.iota {dimensions = array<i32: 0>} : vector<8x8xi32>
    %1 = tpu.iota {dimensions = array<i32: 1>} : vector<8x8xi32>
    %2 = arith.cmpi sle, %1, %0 : vector<8x8xi32>
    %c0 = arith.constant 0 : index
    %c0_0 = arith.constant 0 : index
    %c0_1 = arith.constant 0 : index
    %3 = vector.load %arg1[%c0, %c0_0, %c0_1] : memref<1x8x96xf32, #tpu.memory_space<vmem>>, vector<1x8x32xf32>
    %4 = vector.shape_cast %3 : vector<1x8x32xf32> to vector<8x32xf32>
    %c0_2 = arith.constant 0 : index
    %c0_3 = arith.constant 0 : index
    %c32 = arith.constant 32 : index
    %5 = vector.load %arg1[%c0_2, %c0_3, %c32] : memref<1x8x96xf32, #tpu.memory_space<vmem>>, vector<1x8x32xf32>
    %6 = vector.shape_cast %5 : vector<1x8x32xf32> to vector<8x32xf32>
    %c0_4 = arith.constant 0 : index
    %c0_5 = arith.constant 0 : index
    %c64 = arith.constant 64 : index
    %7 = vector.load %arg1[%c0_4, %c0_5, %c64] : memref<1x8x96xf32, #tpu.memory_space<vmem>>, vector<1x8x32xf32>
    %8 = vector.shape_cast %7 : vector<1x8x32xf32> to vector<8x32xf32>
    %9 = vector.extract_strided_slice %4 {offsets = [0, 0], sizes = [8, 8], strides = [1, 1]} : vector<8x32xf32> to vector<8x8xf32>
    %10 = vector.extract_strided_slice %6 {offsets = [0, 0], sizes = [8, 8], strides = [1, 1]} : vector<8x32xf32> to vector<8x8xf32>
    %cst = arith.constant dense<0.000000e+00> : vector<8x8xf32>
    %11 = tpu.matmul %9, %10, %cst {dimension_numbers = #tpu.dot_dimension_numbers<[1], [1], [0], [0], [0, 0, 1, 0], [], []>} : vector<8x8xf32>, vector<8x8xf32>, vector<8x8xf32> -> vector<8x8xf32>
    %cst_6 = arith.constant -1.000000e+30 : f32
    %12 = vector.broadcast %cst_6 : f32 to vector<8x8xf32>
    %13 = arith.select %2, %11, %12 : vector<8x8xi1>, vector<8x8xf32>
    %cst_7 = arith.constant dense<0xFF800000> : vector<8xf32>
    %14 = vector.multi_reduction <maximumf>, %13, %cst_7 [1] : vector<8x8xf32> to vector<8xf32>
    %15 = vector.shape_cast %14 : vector<8xf32> to vector<8x1xf32>
    %16 = vector.broadcast %15 : vector<8x1xf32> to vector<8x8xf32>
    %17 = arith.subf %13, %16 : vector<8x8xf32>
    %18 = math.exp %17 : vector<8x8xf32>
    %cst_8 = arith.constant dense<0.000000e+00> : vector<8xf32>
    %19 = vector.multi_reduction <add>, %18, %cst_8 [1] : vector<8x8xf32> to vector<8xf32>
    %20 = vector.shape_cast %19 : vector<8xf32> to vector<8x1xf32>
    %21 = tpu.reciprocal %20 {approx = true} : vector<8x1xf32> -> vector<8x1xf32>
    %22 = vector.broadcast %21 : vector<8x1xf32> to vector<8x8xf32>
    %23 = arith.mulf %18, %22 : vector<8x8xf32>
    %24 = vector.extract_strided_slice %8 {offsets = [0, 0], sizes = [8, 8], strides = [1, 1]} : vector<8x32xf32> to vector<8x8xf32>
    %cst_9 = arith.constant dense<0.000000e+00> : vector<8x8xf32>
    %25 = tpu.matmul %23, %24, %cst_9 {dimension_numbers = #tpu.dot_dimension_numbers<[1], [0], [0], [1], [0, 0, 1, 1], [], []>} : vector<8x8xf32>, vector<8x8xf32>, vector<8x8xf32> -> vector<8x8xf32>
    %26 = vector.extract_strided_slice %4 {offsets = [0, 8], sizes = [8, 8], strides = [1, 1]} : vector<8x32xf32> to vector<8x8xf32>
    %27 = vector.extract_strided_slice %6 {offsets = [0, 8], sizes = [8, 8], strides = [1, 1]} : vector<8x32xf32> to vector<8x8xf32>
    %cst_10 = arith.constant dense<0.000000e+00> : vector<8x8xf32>
    %28 = tpu.matmul %26, %27, %cst_10 {dimension_numbers = #tpu.dot_dimension_numbers<[1], [1], [0], [0], [0, 0, 1, 0], [], []>} : vector<8x8xf32>, vector<8x8xf32>, vector<8x8xf32> -> vector<8x8xf32>
    %cst_11 = arith.constant -1.000000e+30 : f32
    %29 = vector.broadcast %cst_11 : f32 to vector<8x8xf32>
    %30 = arith.select %2, %28, %29 : vector<8x8xi1>, vector<8x8xf32>
    %cst_12 = arith.constant dense<0xFF800000> : vector<8xf32>
    %31 = vector.multi_reduction <maximumf>, %30, %cst_12 [1] : vector<8x8xf32> to vector<8xf32>
    %32 = vector.shape_cast %31 : vector<8xf32> to vector<8x1xf32>
    %33 = vector.broadcast %32 : vector<8x1xf32> to vector<8x8xf32>
    %34 = arith.subf %30, %33 : vector<8x8xf32>
    %35 = math.exp %34 : vector<8x8xf32>
    %cst_13 = arith.constant dense<0.000000e+00> : vector<8xf32>
    %36 = vector.multi_reduction <add>, %35, %cst_13 [1] : vector<8x8xf32> to vector<8xf32>
    %37 = vector.shape_cast %36 : vector<8xf32> to vector<8x1xf32>
    %38 = tpu.reciprocal %37 {approx = true} : vector<8x1xf32> -> vector<8x1xf32>
    %39 = vector.broadcast %38 : vector<8x1xf32> to vector<8x8xf32>
    %40 = arith.mulf %35, %39 : vector<8x8xf32>
    %41 = vector.extract_strided_slice %8 {offsets = [0, 8], sizes = [8, 8], strides = [1, 1]} : vector<8x32xf32> to vector<8x8xf32>
    %cst_14 = arith.constant dense<0.000000e+00> : vector<8x8xf32>
    %42 = tpu.matmul %40, %41, %cst_14 {dimension_numbers = #tpu.dot_dimension_numbers<[1], [0], [0], [1], [0, 0, 1, 1], [], []>} : vector<8x8xf32>, vector<8x8xf32>, vector<8x8xf32> -> vector<8x8xf32>
    %43 = vector.extract_strided_slice %4 {offsets = [0, 16], sizes = [8, 8], strides = [1, 1]} : vector<8x32xf32> to vector<8x8xf32>
    %44 = vector.extract_strided_slice %6 {offsets = [0, 16], sizes = [8, 8], strides = [1, 1]} : vector<8x32xf32> to vector<8x8xf32>
    %cst_15 = arith.constant dense<0.000000e+00> : vector<8x8xf32>
    %45 = tpu.matmul %43, %44, %cst_15 {dimension_numbers = #tpu.dot_dimension_numbers<[1], [1], [0], [0], [0, 0, 1, 0], [], []>} : vector<8x8xf32>, vector<8x8xf32>, vector<8x8xf32> -> vector<8x8xf32>
    %cst_16 = arith.constant -1.000000e+30 : f32
    %46 = vector.broadcast %cst_16 : f32 to vector<8x8xf32>
    %47 = arith.select %2, %45, %46 : vector<8x8xi1>, vector<8x8xf32>
    %cst_17 = arith.constant dense<0xFF800000> : vector<8xf32>
    %48 = vector.multi_reduction <maximumf>, %47, %cst_17 [1] : vector<8x8xf32> to vector<8xf32>
    %49 = vector.shape_cast %48 : vector<8xf32> to vector<8x1xf32>
    %50 = vector.broadcast %49 : vector<8x1xf32> to vector<8x8xf32>
    %51 = arith.subf %47, %50 : vector<8x8xf32>
    %52 = math.exp %51 : vector<8x8xf32>
    %cst_18 = arith.constant dense<0.000000e+00> : vector<8xf32>
    %53 = vector.multi_reduction <add>, %52, %cst_18 [1] : vector<8x8xf32> to vector<8xf32>
    %54 = vector.shape_cast %53 : vector<8xf32> to vector<8x1xf32>
    %55 = tpu.reciprocal %54 {approx = true} : vector<8x1xf32> -> vector<8x1xf32>
    %56 = vector.broadcast %55 : vector<8x1xf32> to vector<8x8xf32>
    %57 = arith.mulf %52, %56 : vector<8x8xf32>
    %58 = vector.extract_strided_slice %8 {offsets = [0, 16], sizes = [8, 8], strides = [1, 1]} : vector<8x32xf32> to vector<8x8xf32>
    %cst_19 = arith.constant dense<0.000000e+00> : vector<8x8xf32>
    %59 = tpu.matmul %57, %58, %cst_19 {dimension_numbers = #tpu.dot_dimension_numbers<[1], [0], [0], [1], [0, 0, 1, 1], [], []>} : vector<8x8xf32>, vector<8x8xf32>, vector<8x8xf32> -> vector<8x8xf32>
    %60 = vector.extract_strided_slice %4 {offsets = [0, 24], sizes = [8, 8], strides = [1, 1]} : vector<8x32xf32> to vector<8x8xf32>
    %61 = vector.extract_strided_slice %6 {offsets = [0, 24], sizes = [8, 8], strides = [1, 1]} : vector<8x32xf32> to vector<8x8xf32>
    %cst_20 = arith.constant dense<0.000000e+00> : vector<8x8xf32>
    %62 = tpu.matmul %60, %61, %cst_20 {dimension_numbers = #tpu.dot_dimension_numbers<[1], [1], [0], [0], [0, 0, 1, 0], [], []>} : vector<8x8xf32>, vector<8x8xf32>, vector<8x8xf32> -> vector<8x8xf32>
    %cst_21 = arith.constant -1.000000e+30 : f32
    %63 = vector.broadcast %cst_21 : f32 to vector<8x8xf32>
    %64 = arith.select %2, %62, %63 : vector<8x8xi1>, vector<8x8xf32>
    %cst_22 = arith.constant dense<0xFF800000> : vector<8xf32>
    %65 = vector.multi_reduction <maximumf>, %64, %cst_22 [1] : vector<8x8xf32> to vector<8xf32>
    %66 = vector.shape_cast %65 : vector<8xf32> to vector<8x1xf32>
    %67 = vector.broadcast %66 : vector<8x1xf32> to vector<8x8xf32>
    %68 = arith.subf %64, %67 : vector<8x8xf32>
    %69 = math.exp %68 : vector<8x8xf32>
    %cst_23 = arith.constant dense<0.000000e+00> : vector<8xf32>
    %70 = vector.multi_reduction <add>, %69, %cst_23 [1] : vector<8x8xf32> to vector<8xf32>
    %71 = vector.shape_cast %70 : vector<8xf32> to vector<8x1xf32>
    %72 = tpu.reciprocal %71 {approx = true} : vector<8x1xf32> -> vector<8x1xf32>
    %73 = vector.broadcast %72 : vector<8x1xf32> to vector<8x8xf32>
    %74 = arith.mulf %69, %73 : vector<8x8xf32>
    %75 = vector.extract_strided_slice %8 {offsets = [0, 24], sizes = [8, 8], strides = [1, 1]} : vector<8x32xf32> to vector<8x8xf32>
    %cst_24 = arith.constant dense<0.000000e+00> : vector<8x8xf32>
    %76 = tpu.matmul %74, %75, %cst_24 {dimension_numbers = #tpu.dot_dimension_numbers<[1], [0], [0], [1], [0, 0, 1, 1], [], []>} : vector<8x8xf32>, vector<8x8xf32>, vector<8x8xf32> -> vector<8x8xf32>
    %77 = tpu.concatenate %25, %42, %59, %76 in 1 : vector<8x8xf32>, vector<8x8xf32>, vector<8x8xf32>, vector<8x8xf32> -> vector<8x32xf32>
    %c0_25 = arith.constant 0 : index
    %c0_26 = arith.constant 0 : index
    %78 = vector.load %arg2[%c0_25, %c0_26] : memref<32x32xf32, #tpu.memory_space<vmem>>, vector<32x32xf32>
    %cst_27 = arith.constant dense<0.000000e+00> : vector<8x32xf32>
    %79 = tpu.matmul %77, %78, %cst_27 {dimension_numbers = #tpu.dot_dimension_numbers<[1], [0], [0], [1], [0, 0, 1, 1], [], []>} : vector<8x32xf32>, vector<32x32xf32>, vector<8x32xf32> -> vector<8x32xf32>
    %c0_28 = arith.constant 0 : index
    %c0_29 = arith.constant 0 : index
    %80 = vector.load %arg3[%c0_28, %c0_29] : memref<1x32xf32, #tpu.memory_space<vmem>>, vector<1x32xf32>
    %81 = vector.broadcast %80 : vector<1x32xf32> to vector<8x32xf32>
    %82 = arith.addf %79, %81 : vector<8x32xf32>
    %c0_30 = arith.constant 0 : index
    %c0_31 = arith.constant 0 : index
    %c0_32 = arith.constant 0 : index
    %83 = vector.load %arg4[%c0_30, %c0_31, %c0_32] : memref<1x8x32xf32, #tpu.memory_space<vmem>>, vector<1x8x32xf32>
    %84 = vector.shape_cast %83 : vector<1x8x32xf32> to vector<8x32xf32>
    %85 = arith.addf %82, %84 : vector<8x32xf32>
    %c0_33 = arith.constant 0 : index
    %c0_34 = arith.constant 0 : index
    %c0_35 = arith.constant 0 : index
    %86 = vector.load %arg5[%c0_33, %c0_34, %c0_35] : memref<1x8x32xf32, #tpu.memory_space<vmem>>, vector<1x8x32xf32>
    %87 = vector.shape_cast %86 : vector<1x8x32xf32> to vector<8x32xf32>
    %88 = vector.shape_cast %85 : vector<8x32xf32> to vector<1x8x32xf32>
    tpu.vector_store %arg5[%c0_33, %c0_34, %c0_35], %88 {strides = array<i32>} : memref<1x8x32xf32, #tpu.memory_space<vmem>>, vector<1x8x32xf32>,
    return
  }
  func.func @transform_0(%arg0: i32) -> (i32, i32, i32) {
    %c0_i32 = arith.constant 0 : i32
    %c0_i32_0 = arith.constant 0 : i32
    %c0_i32_1 = arith.constant 0 : i32
    return %arg0, %c0_i32, %c0_i32_0 : i32, i32, i32
  }
  func.func @transform_1(%arg0: i32) -> (i32, i32) {
    %c0_i32 = arith.constant 0 : i32
    %c0_i32_0 = arith.constant 0 : i32
    %c0_i32_1 = arith.constant 0 : i32
    return %c0_i32, %c0_i32_0 : i32, i32
  }
  func.func @transform_2(%arg0: i32) -> (i32, i32) {
    %c0_i32 = arith.constant 0 : i32
    %c0_i32_0 = arith.constant 0 : i32
    %c0_i32_1 = arith.constant 0 : i32
    return %c0_i32, %c0_i32_0 : i32, i32
  }
  func.func @transform_3(%arg0: i32) -> (i32, i32, i32) {
    %c0_i32 = arith.constant 0 : i32
    %c0_i32_0 = arith.constant 0 : i32
    %c0_i32_1 = arith.constant 0 : i32
    return %arg0, %c0_i32, %c0_i32_0 : i32, i32, i32
  }
  func.func @transform_4(%arg0: i32) -> (i32, i32, i32) {
    %c0_i32 = arith.constant 0 : i32
    %c0_i32_0 = arith.constant 0 : i32
    %c0_i32_1 = arith.constant 0 : i32
    return %arg0, %c0_i32, %c0_i32_0 : i32, i32, i32
  }
}

module attributes {stable_mosaic.version = 11 : i64} {
  func.func @_ln_matmul_kernel(%arg0: i32, %arg1: i32, %arg2: memref<16x32xf32, #tpu.memory_space<vmem>>, %arg3: memref<1x32xf32, #tpu.memory_space<vmem>>, %arg4: memref<1x32xf32, #tpu.memory_space<vmem>>, %arg5: memref<32x128xf32, #tpu.memory_space<vmem>>, %arg6: memref<1x128xf32, #tpu.memory_space<vmem>>, %arg7: memref<16x128xf32, #tpu.memory_space<vmem>>, %arg8: memref<16x32xf32, #tpu.memory_space<vmem>>) attributes {dimension_semantics = [#tpu.dimension_semantics<parallel>, #tpu.dimension_semantics<arbitrary>], iteration_bounds = array<i64: 1, 1>, scalar_prefetch = 0 : i64, scratch_operands = 1 : i64, tpu.core_type = #tpu.core_type<tc>, window_params = [{transform_indices = @transform_0, window_bounds = array<i64: 16, 32>}, {pipeline_mode = #tpu.pipeline_mode<synchronous>, transform_indices = @transform_1, window_bounds = array<i64: 1, 32>}, {pipeline_mode = #tpu.pipeline_mode<synchronous>, transform_indices = @transform_2, window_bounds = array<i64: 1, 32>}, {transform_indices = @transform_3, window_bounds = array<i64: 32, 128>}, {transform_indices = @transform_4, window_bounds = array<i64: 1, 128>}, {transform_indices = @transform_5, window_bounds = array<i64: 16, 128>}]} {
    %c0_i32 = arith.constant 0 : i32
    %0 = arith.cmpi eq, %arg1, %c0_i32 : i32
    %1 = arith.extui %0 : i1 to i32
    %c0_i32_0 = arith.constant 0 : i32
    %2 = arith.cmpi ne, %1, %c0_i32_0 : i32
    scf.if %2 {
      %c0_10 = arith.constant 0 : index
      %c0_11 = arith.constant 0 : index
      %18 = vector.load %arg2[%c0_10, %c0_11] : memref<16x32xf32, #tpu.memory_space<vmem>>, vector<16x32xf32>
      %cst_12 = arith.constant dense<0.000000e+00> : vector<16xf32>
      %19 = vector.multi_reduction <add>, %18, %cst_12 [1] : vector<16x32xf32> to vector<16xf32>
      %20 = vector.shape_cast %19 : vector<16xf32> to vector<16x1xf32>
      %cst_13 = arith.constant 3.200000e+01 : f32
      %21 = vector.broadcast %cst_13 : f32 to vector<16x1xf32>
      %22 = arith.divf %20, %21 : vector<16x1xf32>
      %23 = vector.broadcast %22 : vector<16x1xf32> to vector<16x32xf32>
      %24 = arith.subf %18, %23 : vector<16x32xf32>
      %25 = arith.mulf %24, %24 : vector<16x32xf32>
      %cst_14 = arith.constant dense<0.000000e+00> : vector<16xf32>
      %26 = vector.multi_reduction <add>, %25, %cst_14 [1] : vector<16x32xf32> to vector<16xf32>
      %27 = vector.shape_cast %26 : vector<16xf32> to vector<16x1xf32>
      %cst_15 = arith.constant 3.200000e+01 : f32
      %28 = vector.broadcast %cst_15 : f32 to vector<16x1xf32>
      %29 = arith.divf %27, %28 : vector<16x1xf32>
      %30 = vector.broadcast %22 : vector<16x1xf32> to vector<16x32xf32>
      %31 = arith.subf %18, %30 : vector<16x32xf32>
      %cst_16 = arith.constant 9.99999974E-6 : f32
      %32 = vector.broadcast %cst_16 : f32 to vector<16x1xf32>
      %33 = arith.addf %29, %32 : vector<16x1xf32>
      %34 = math.rsqrt %33 : vector<16x1xf32>
      %35 = vector.broadcast %34 : vector<16x1xf32> to vector<16x32xf32>
      %36 = arith.mulf %31, %35 : vector<16x32xf32>
      %c0_17 = arith.constant 0 : index
      %c0_18 = arith.constant 0 : index
      %37 = vector.load %arg3[%c0_17, %c0_18] : memref<1x32xf32, #tpu.memory_space<vmem>>, vector<1x32xf32>
      %38 = vector.broadcast %37 : vector<1x32xf32> to vector<16x32xf32>
      %39 = arith.mulf %36, %38 : vector<16x32xf32>
      %c0_19 = arith.constant 0 : index
      %c0_20 = arith.constant 0 : index
      %40 = vector.load %arg4[%c0_19, %c0_20] : memref<1x32xf32, #tpu.memory_space<vmem>>, vector<1x32xf32>
      %41 = vector.broadcast %40 : vector<1x32xf32> to vector<16x32xf32>
      %42 = arith.addf %39, %41 : vector<16x32xf32>
      %c0_21 = arith.constant 0 : index
      %c0_22 = arith.constant 0 : index
      %43 = vector.load %arg8[%c0_21, %c0_22] : memref<16x32xf32, #tpu.memory_space<vmem>>, vector<16x32xf32>
      tpu.vector_store %arg8[%c0_21, %c0_22], %42 {strides = array<i32>} : memref<16x32xf32, #tpu.memory_space<vmem>>, vector<16x32xf32>,
    } else {
    }
    %c0 = arith.constant 0 : index
    %c0_1 = arith.constant 0 : index
    %3 = vector.load %arg8[%c0, %c0_1] : memref<16x32xf32, #tpu.memory_space<vmem>>, vector<16x32xf32>
    %c0_2 = arith.constant 0 : index
    %c0_3 = arith.constant 0 : index
    %4 = vector.load %arg5[%c0_2, %c0_3] : memref<32x128xf32, #tpu.memory_space<vmem>>, vector<32x128xf32>
    %cst = arith.constant dense<0.000000e+00> : vector<16x128xf32>
    %5 = tpu.matmul %3, %4, %cst {dimension_numbers = #tpu.dot_dimension_numbers<[1], [0], [0], [1], [0, 0, 1, 1], [], []>} : vector<16x32xf32>, vector<32x128xf32>, vector<16x128xf32> -> vector<16x128xf32>
    %c0_4 = arith.constant 0 : index
    %c0_5 = arith.constant 0 : index
    %6 = vector.load %arg6[%c0_4, %c0_5] : memref<1x128xf32, #tpu.memory_space<vmem>>, vector<1x128xf32>
    %7 = vector.broadcast %6 : vector<1x128xf32> to vector<16x128xf32>
    %8 = arith.addf %5, %7 : vector<16x128xf32>
    %cst_6 = arith.constant 1.702000e+00 : f32
    %9 = vector.broadcast %cst_6 : f32 to vector<16x128xf32>
    %10 = arith.mulf %9, %8 : vector<16x128xf32>
    %11 = arith.negf %10 : vector<16x128xf32>
    %12 = math.exp %11 : vector<16x128xf32>
    %cst_7 = arith.constant 1.000000e+00 : f32
    %13 = vector.broadcast %cst_7 : f32 to vector<16x128xf32>
    %14 = arith.addf %13, %12 : vector<16x128xf32>
    %15 = arith.divf %13, %14 : vector<16x128xf32>
    %16 = arith.mulf %8, %15 : vector<16x128xf32>
    %c0_8 = arith.constant 0 : index
    %c0_9 = arith.constant 0 : index
    %17 = vector.load %arg7[%c0_8, %c0_9] : memref<16x128xf32, #tpu.memory_space<vmem>>, vector<16x128xf32>
    tpu.vector_store %arg7[%c0_8, %c0_9], %16 {strides = array<i32>} : memref<16x128xf32, #tpu.memory_space<vmem>>, vector<16x128xf32>,
    return
  }
  func.func @transform_0(%arg0: i32, %arg1: i32) -> (i32, i32) {
    %c0_i32 = arith.constant 0 : i32
    %c0_i32_0 = arith.constant 0 : i32
    return %arg0, %c0_i32 : i32, i32
  }
  func.func @transform_1(%arg0: i32, %arg1: i32) -> (i32, i32) {
    %c0_i32 = arith.constant 0 : i32
    %c0_i32_0 = arith.constant 0 : i32
    %c0_i32_1 = arith.constant 0 : i32
    return %c0_i32, %c0_i32_0 : i32, i32
  }
  func.func @transform_2(%arg0: i32, %arg1: i32) -> (i32, i32) {
    %c0_i32 = arith.constant 0 : i32
    %c0_i32_0 = arith.constant 0 : i32
    %c0_i32_1 = arith.constant 0 : i32
    return %c0_i32, %c0_i32_0 : i32, i32
  }
  func.func @transform_3(%arg0: i32, %arg1: i32) -> (i32, i32) {
    %c0_i32 = arith.constant 0 : i32
    %c0_i32_0 = arith.constant 0 : i32
    return %c0_i32, %arg1 : i32, i32
  }
  func.func @transform_4(%arg0: i32, %arg1: i32) -> (i32, i32) {
    %c0_i32 = arith.constant 0 : i32
    %c0_i32_0 = arith.constant 0 : i32
    return %c0_i32, %arg1 : i32, i32
  }
  func.func @transform_5(%arg0: i32, %arg1: i32) -> (i32, i32) {
    %c0_i32 = arith.constant 0 : i32
    return %arg0, %arg1 : i32, i32
  }
}

module attributes {stable_mosaic.version = 11 : i64} {
  func.func @_matmul_residual_kernel(%arg0: i32, %arg1: i32, %arg2: memref<16x128xf32, #tpu.memory_space<vmem>>, %arg3: memref<128x32xf32, #tpu.memory_space<vmem>>, %arg4: memref<1x32xf32, #tpu.memory_space<vmem>>, %arg5: memref<16x32xf32, #tpu.memory_space<vmem>>, %arg6: memref<16x32xf32, #tpu.memory_space<vmem>>) attributes {dimension_semantics = [#tpu.dimension_semantics<parallel>, #tpu.dimension_semantics<parallel>], iteration_bounds = array<i64: 1, 1>, scalar_prefetch = 0 : i64, scratch_operands = 0 : i64, tpu.core_type = #tpu.core_type<tc>, window_params = [{transform_indices = @transform_0, window_bounds = array<i64: 16, 128>}, {transform_indices = @transform_1, window_bounds = array<i64: 128, 32>}, {transform_indices = @transform_2, window_bounds = array<i64: 1, 32>}, {transform_indices = @transform_3, window_bounds = array<i64: 16, 32>}, {transform_indices = @transform_4, window_bounds = array<i64: 16, 32>}]} {
    %c0 = arith.constant 0 : index
    %c0_0 = arith.constant 0 : index
    %0 = vector.load %arg2[%c0, %c0_0] : memref<16x128xf32, #tpu.memory_space<vmem>>, vector<16x128xf32>
    %c0_1 = arith.constant 0 : index
    %c0_2 = arith.constant 0 : index
    %1 = vector.load %arg3[%c0_1, %c0_2] : memref<128x32xf32, #tpu.memory_space<vmem>>, vector<128x32xf32>
    %cst = arith.constant dense<0.000000e+00> : vector<16x32xf32>
    %2 = tpu.matmul %0, %1, %cst {dimension_numbers = #tpu.dot_dimension_numbers<[1], [0], [0], [1], [0, 0, 1, 1], [], []>} : vector<16x128xf32>, vector<128x32xf32>, vector<16x32xf32> -> vector<16x32xf32>
    %c0_3 = arith.constant 0 : index
    %c0_4 = arith.constant 0 : index
    %3 = vector.load %arg4[%c0_3, %c0_4] : memref<1x32xf32, #tpu.memory_space<vmem>>, vector<1x32xf32>
    %4 = vector.broadcast %3 : vector<1x32xf32> to vector<16x32xf32>
    %5 = arith.addf %2, %4 : vector<16x32xf32>
    %c0_5 = arith.constant 0 : index
    %c0_6 = arith.constant 0 : index
    %6 = vector.load %arg5[%c0_5, %c0_6] : memref<16x32xf32, #tpu.memory_space<vmem>>, vector<16x32xf32>
    %7 = arith.addf %5, %6 : vector<16x32xf32>
    %c0_7 = arith.constant 0 : index
    %c0_8 = arith.constant 0 : index
    %8 = vector.load %arg6[%c0_7, %c0_8] : memref<16x32xf32, #tpu.memory_space<vmem>>, vector<16x32xf32>
    tpu.vector_store %arg6[%c0_7, %c0_8], %7 {strides = array<i32>} : memref<16x32xf32, #tpu.memory_space<vmem>>, vector<16x32xf32>,
    return
  }
  func.func @transform_0(%arg0: i32, %arg1: i32) -> (i32, i32) {
    %c0_i32 = arith.constant 0 : i32
    %c0_i32_0 = arith.constant 0 : i32
    return %arg0, %c0_i32 : i32, i32
  }
  func.func @transform_1(%arg0: i32, %arg1: i32) -> (i32, i32) {
    %c0_i32 = arith.constant 0 : i32
    %c0_i32_0 = arith.constant 0 : i32
    return %c0_i32, %arg1 : i32, i32
  }
  func.func @transform_2(%arg0: i32, %arg1: i32) -> (i32, i32) {
    %c0_i32 = arith.constant 0 : i32
    %c0_i32_0 = arith.constant 0 : i32
    return %c0_i32, %arg1 : i32, i32
  }
  func.func @transform_3(%arg0: i32, %arg1: i32) -> (i32, i32) {
    %c0_i32 = arith.constant 0 : i32
    return %arg0, %arg1 : i32, i32
  }
  func.func @transform_4(%arg0: i32, %arg1: i32) -> (i32, i32) {
    %c0_i32 = arith.constant 0 : i32
    return %arg0, %arg1 : i32, i32
  }
}

module attributes {stable_mosaic.version = 11 : i64} {
  func.func @_mha_outproj_kernel(%arg0: i32, %arg1: memref<1x8x96xf32, #tpu.memory_space<vmem>>, %arg2: memref<32x32xf32, #tpu.memory_space<vmem>>, %arg3: memref<1x32xf32, #tpu.memory_space<vmem>>, %arg4: memref<1x8x32xf32, #tpu.memory_space<vmem>>, %arg5: memref<1x8x32xf32, #tpu.memory_space<vmem>>) attributes {dimension_semantics = [#tpu.dimension_semantics<parallel>], iteration_bounds = array<i64: 2>, scalar_prefetch = 0 : i64, scratch_operands = 0 : i64, tpu.core_type = #tpu.core_type<tc>, window_params = [{transform_indices = @transform_0, window_bounds = array<i64: 1, 8, 96>}, {pipeline_mode = #tpu.pipeline_mode<synchronous>, transform_indices = @transform_1, window_bounds = array<i64: 32, 32>}, {pipeline_mode = #tpu.pipeline_mode<synchronous>, transform_indices = @transform_2, window_bounds = array<i64: 1, 32>}, {transform_indices = @transform_3, window_bounds = array<i64: 1, 8, 32>}, {transform_indices = @transform_4, window_bounds = array<i64: 1, 8, 32>}]} {
    %0 = tpu.iota {dimensions = array<i32: 0>} : vector<8x8xi32>
    %1 = tpu.iota {dimensions = array<i32: 1>} : vector<8x8xi32>
    %2 = arith.cmpi sle, %1, %0 : vector<8x8xi32>
    %c0 = arith.constant 0 : index
    %c0_0 = arith.constant 0 : index
    %c0_1 = arith.constant 0 : index
    %3 = vector.load %arg1[%c0, %c0_0, %c0_1] : memref<1x8x96xf32, #tpu.memory_space<vmem>>, vector<1x8x32xf32>
    %4 = vector.shape_cast %3 : vector<1x8x32xf32> to vector<8x32xf32>
    %c0_2 = arith.constant 0 : index
    %c0_3 = arith.constant 0 : index
    %c32 = arith.constant 32 : index
    %5 = vector.load %arg1[%c0_2, %c0_3, %c32] : memref<1x8x96xf32, #tpu.memory_space<vmem>>, vector<1x8x32xf32>
    %6 = vector.shape_cast %5 : vector<1x8x32xf32> to vector<8x32xf32>
    %c0_4 = arith.constant 0 : index
    %c0_5 = arith.constant 0 : index
    %c64 = arith.constant 64 : index
    %7 = vector.load %arg1[%c0_4, %c0_5, %c64] : memref<1x8x96xf32, #tpu.memory_space<vmem>>, vector<1x8x32xf32>
    %8 = vector.shape_cast %7 : vector<1x8x32xf32> to vector<8x32xf32>
    %9 = vector.extract_strided_slice %4 {offsets = [0, 0], sizes = [8, 8], strides = [1, 1]} : vector<8x32xf32> to vector<8x8xf32>
    %10 = vector.extract_strided_slice %6 {offsets = [0, 0], sizes = [8, 8], strides = [1, 1]} : vector<8x32xf32> to vector<8x8xf32>
    %cst = arith.constant dense<0.000000e+00> : vector<8x8xf32>
    %11 = tpu.matmul %9, %10, %cst {dimension_numbers = #tpu.dot_dimension_numbers<[1], [1], [0], [0], [0, 0, 1, 0], [], []>} : vector<8x8xf32>, vector<8x8xf32>, vector<8x8xf32> -> vector<8x8xf32>
    %cst_6 = arith.constant -1.000000e+30 : f32
    %12 = vector.broadcast %cst_6 : f32 to vector<8x8xf32>
    %13 = arith.select %2, %11, %12 : vector<8x8xi1>, vector<8x8xf32>
    %cst_7 = arith.constant dense<0xFF800000> : vector<8xf32>
    %14 = vector.multi_reduction <maximumf>, %13, %cst_7 [1] : vector<8x8xf32> to vector<8xf32>
    %15 = vector.shape_cast %14 : vector<8xf32> to vector<8x1xf32>
    %16 = vector.broadcast %15 : vector<8x1xf32> to vector<8x8xf32>
    %17 = arith.subf %13, %16 : vector<8x8xf32>
    %18 = math.exp %17 : vector<8x8xf32>
    %cst_8 = arith.constant dense<0.000000e+00> : vector<8xf32>
    %19 = vector.multi_reduction <add>, %18, %cst_8 [1] : vector<8x8xf32> to vector<8xf32>
    %20 = vector.shape_cast %19 : vector<8xf32> to vector<8x1xf32>
    %21 = tpu.reciprocal %20 {approx = true} : vector<8x1xf32> -> vector<8x1xf32>
    %22 = vector.broadcast %21 : vector<8x1xf32> to vector<8x8xf32>
    %23 = arith.mulf %18, %22 : vector<8x8xf32>
    %24 = vector.extract_strided_slice %8 {offsets = [0, 0], sizes = [8, 8], strides = [1, 1]} : vector<8x32xf32> to vector<8x8xf32>
    %cst_9 = arith.constant dense<0.000000e+00> : vector<8x8xf32>
    %25 = tpu.matmul %23, %24, %cst_9 {dimension_numbers = #tpu.dot_dimension_numbers<[1], [0], [0], [1], [0, 0, 1, 1], [], []>} : vector<8x8xf32>, vector<8x8xf32>, vector<8x8xf32> -> vector<8x8xf32>
    %26 = vector.extract_strided_slice %4 {offsets = [0, 8], sizes = [8, 8], strides = [1, 1]} : vector<8x32xf32> to vector<8x8xf32>
    %27 = vector.extract_strided_slice %6 {offsets = [0, 8], sizes = [8, 8], strides = [1, 1]} : vector<8x32xf32> to vector<8x8xf32>
    %cst_10 = arith.constant dense<0.000000e+00> : vector<8x8xf32>
    %28 = tpu.matmul %26, %27, %cst_10 {dimension_numbers = #tpu.dot_dimension_numbers<[1], [1], [0], [0], [0, 0, 1, 0], [], []>} : vector<8x8xf32>, vector<8x8xf32>, vector<8x8xf32> -> vector<8x8xf32>
    %cst_11 = arith.constant -1.000000e+30 : f32
    %29 = vector.broadcast %cst_11 : f32 to vector<8x8xf32>
    %30 = arith.select %2, %28, %29 : vector<8x8xi1>, vector<8x8xf32>
    %cst_12 = arith.constant dense<0xFF800000> : vector<8xf32>
    %31 = vector.multi_reduction <maximumf>, %30, %cst_12 [1] : vector<8x8xf32> to vector<8xf32>
    %32 = vector.shape_cast %31 : vector<8xf32> to vector<8x1xf32>
    %33 = vector.broadcast %32 : vector<8x1xf32> to vector<8x8xf32>
    %34 = arith.subf %30, %33 : vector<8x8xf32>
    %35 = math.exp %34 : vector<8x8xf32>
    %cst_13 = arith.constant dense<0.000000e+00> : vector<8xf32>
    %36 = vector.multi_reduction <add>, %35, %cst_13 [1] : vector<8x8xf32> to vector<8xf32>
    %37 = vector.shape_cast %36 : vector<8xf32> to vector<8x1xf32>
    %38 = tpu.reciprocal %37 {approx = true} : vector<8x1xf32> -> vector<8x1xf32>
    %39 = vector.broadcast %38 : vector<8x1xf32> to vector<8x8xf32>
    %40 = arith.mulf %35, %39 : vector<8x8xf32>
    %41 = vector.extract_strided_slice %8 {offsets = [0, 8], sizes = [8, 8], strides = [1, 1]} : vector<8x32xf32> to vector<8x8xf32>
    %cst_14 = arith.constant dense<0.000000e+00> : vector<8x8xf32>
    %42 = tpu.matmul %40, %41, %cst_14 {dimension_numbers = #tpu.dot_dimension_numbers<[1], [0], [0], [1], [0, 0, 1, 1], [], []>} : vector<8x8xf32>, vector<8x8xf32>, vector<8x8xf32> -> vector<8x8xf32>
    %43 = vector.extract_strided_slice %4 {offsets = [0, 16], sizes = [8, 8], strides = [1, 1]} : vector<8x32xf32> to vector<8x8xf32>
    %44 = vector.extract_strided_slice %6 {offsets = [0, 16], sizes = [8, 8], strides = [1, 1]} : vector<8x32xf32> to vector<8x8xf32>
    %cst_15 = arith.constant dense<0.000000e+00> : vector<8x8xf32>
    %45 = tpu.matmul %43, %44, %cst_15 {dimension_numbers = #tpu.dot_dimension_numbers<[1], [1], [0], [0], [0, 0, 1, 0], [], []>} : vector<8x8xf32>, vector<8x8xf32>, vector<8x8xf32> -> vector<8x8xf32>
    %cst_16 = arith.constant -1.000000e+30 : f32
    %46 = vector.broadcast %cst_16 : f32 to vector<8x8xf32>
    %47 = arith.select %2, %45, %46 : vector<8x8xi1>, vector<8x8xf32>
    %cst_17 = arith.constant dense<0xFF800000> : vector<8xf32>
    %48 = vector.multi_reduction <maximumf>, %47, %cst_17 [1] : vector<8x8xf32> to vector<8xf32>
    %49 = vector.shape_cast %48 : vector<8xf32> to vector<8x1xf32>
    %50 = vector.broadcast %49 : vector<8x1xf32> to vector<8x8xf32>
    %51 = arith.subf %47, %50 : vector<8x8xf32>
    %52 = math.exp %51 : vector<8x8xf32>
    %cst_18 = arith.constant dense<0.000000e+00> : vector<8xf32>
    %53 = vector.multi_reduction <add>, %52, %cst_18 [1] : vector<8x8xf32> to vector<8xf32>
    %54 = vector.shape_cast %53 : vector<8xf32> to vector<8x1xf32>
    %55 = tpu.reciprocal %54 {approx = true} : vector<8x1xf32> -> vector<8x1xf32>
    %56 = vector.broadcast %55 : vector<8x1xf32> to vector<8x8xf32>
    %57 = arith.mulf %52, %56 : vector<8x8xf32>
    %58 = vector.extract_strided_slice %8 {offsets = [0, 16], sizes = [8, 8], strides = [1, 1]} : vector<8x32xf32> to vector<8x8xf32>
    %cst_19 = arith.constant dense<0.000000e+00> : vector<8x8xf32>
    %59 = tpu.matmul %57, %58, %cst_19 {dimension_numbers = #tpu.dot_dimension_numbers<[1], [0], [0], [1], [0, 0, 1, 1], [], []>} : vector<8x8xf32>, vector<8x8xf32>, vector<8x8xf32> -> vector<8x8xf32>
    %60 = vector.extract_strided_slice %4 {offsets = [0, 24], sizes = [8, 8], strides = [1, 1]} : vector<8x32xf32> to vector<8x8xf32>
    %61 = vector.extract_strided_slice %6 {offsets = [0, 24], sizes = [8, 8], strides = [1, 1]} : vector<8x32xf32> to vector<8x8xf32>
    %cst_20 = arith.constant dense<0.000000e+00> : vector<8x8xf32>
    %62 = tpu.matmul %60, %61, %cst_20 {dimension_numbers = #tpu.dot_dimension_numbers<[1], [1], [0], [0], [0, 0, 1, 0], [], []>} : vector<8x8xf32>, vector<8x8xf32>, vector<8x8xf32> -> vector<8x8xf32>
    %cst_21 = arith.constant -1.000000e+30 : f32
    %63 = vector.broadcast %cst_21 : f32 to vector<8x8xf32>
    %64 = arith.select %2, %62, %63 : vector<8x8xi1>, vector<8x8xf32>
    %cst_22 = arith.constant dense<0xFF800000> : vector<8xf32>
    %65 = vector.multi_reduction <maximumf>, %64, %cst_22 [1] : vector<8x8xf32> to vector<8xf32>
    %66 = vector.shape_cast %65 : vector<8xf32> to vector<8x1xf32>
    %67 = vector.broadcast %66 : vector<8x1xf32> to vector<8x8xf32>
    %68 = arith.subf %64, %67 : vector<8x8xf32>
    %69 = math.exp %68 : vector<8x8xf32>
    %cst_23 = arith.constant dense<0.000000e+00> : vector<8xf32>
    %70 = vector.multi_reduction <add>, %69, %cst_23 [1] : vector<8x8xf32> to vector<8xf32>
    %71 = vector.shape_cast %70 : vector<8xf32> to vector<8x1xf32>
    %72 = tpu.reciprocal %71 {approx = true} : vector<8x1xf32> -> vector<8x1xf32>
    %73 = vector.broadcast %72 : vector<8x1xf32> to vector<8x8xf32>
    %74 = arith.mulf %69, %73 : vector<8x8xf32>
    %75 = vector.extract_strided_slice %8 {offsets = [0, 24], sizes = [8, 8], strides = [1, 1]} : vector<8x32xf32> to vector<8x8xf32>
    %cst_24 = arith.constant dense<0.000000e+00> : vector<8x8xf32>
    %76 = tpu.matmul %74, %75, %cst_24 {dimension_numbers = #tpu.dot_dimension_numbers<[1], [0], [0], [1], [0, 0, 1, 1], [], []>} : vector<8x8xf32>, vector<8x8xf32>, vector<8x8xf32> -> vector<8x8xf32>
    %77 = tpu.concatenate %25, %42, %59, %76 in 1 : vector<8x8xf32>, vector<8x8xf32>, vector<8x8xf32>, vector<8x8xf32> -> vector<8x32xf32>
    %c0_25 = arith.constant 0 : index
    %c0_26 = arith.constant 0 : index
    %78 = vector.load %arg2[%c0_25, %c0_26] : memref<32x32xf32, #tpu.memory_space<vmem>>, vector<32x32xf32>
    %cst_27 = arith.constant dense<0.000000e+00> : vector<8x32xf32>
    %79 = tpu.matmul %77, %78, %cst_27 {dimension_numbers = #tpu.dot_dimension_numbers<[1], [0], [0], [1], [0, 0, 1, 1], [], []>} : vector<8x32xf32>, vector<32x32xf32>, vector<8x32xf32> -> vector<8x32xf32>
    %c0_28 = arith.constant 0 : index
    %c0_29 = arith.constant 0 : index
    %80 = vector.load %arg3[%c0_28, %c0_29] : memref<1x32xf32, #tpu.memory_space<vmem>>, vector<1x32xf32>
    %81 = vector.broadcast %80 : vector<1x32xf32> to vector<8x32xf32>
    %82 = arith.addf %79, %81 : vector<8x32xf32>
    %c0_30 = arith.constant 0 : index
    %c0_31 = arith.constant 0 : index
    %c0_32 = arith.constant 0 : index
    %83 = vector.load %arg4[%c0_30, %c0_31, %c0_32] : memref<1x8x32xf32, #tpu.memory_space<vmem>>, vector<1x8x32xf32>
    %84 = vector.shape_cast %83 : vector<1x8x32xf32> to vector<8x32xf32>
    %85 = arith.addf %82, %84 : vector<8x32xf32>
    %c0_33 = arith.constant 0 : index
    %c0_34 = arith.constant 0 : index
    %c0_35 = arith.constant 0 : index
    %86 = vector.load %arg5[%c0_33, %c0_34, %c0_35] : memref<1x8x32xf32, #tpu.memory_space<vmem>>, vector<1x8x32xf32>
    %87 = vector.shape_cast %86 : vector<1x8x32xf32> to vector<8x32xf32>
    %88 = vector.shape_cast %85 : vector<8x32xf32> to vector<1x8x32xf32>
    tpu.vector_store %arg5[%c0_33, %c0_34, %c0_35], %88 {strides = array<i32>} : memref<1x8x32xf32, #tpu.memory_space<vmem>>, vector<1x8x32xf32>,
    return
  }
  func.func @transform_0(%arg0: i32) -> (i32, i32, i32) {
    %c0_i32 = arith.constant 0 : i32
    %c0_i32_0 = arith.constant 0 : i32
    %c0_i32_1 = arith.constant 0 : i32
    return %arg0, %c0_i32, %c0_i32_0 : i32, i32, i32
  }
  func.func @transform_1(%arg0: i32) -> (i32, i32) {
    %c0_i32 = arith.constant 0 : i32
    %c0_i32_0 = arith.constant 0 : i32
    %c0_i32_1 = arith.constant 0 : i32
    return %c0_i32, %c0_i32_0 : i32, i32
  }
  func.func @transform_2(%arg0: i32) -> (i32, i32) {
    %c0_i32 = arith.constant 0 : i32
    %c0_i32_0 = arith.constant 0 : i32
    %c0_i32_1 = arith.constant 0 : i32
    return %c0_i32, %c0_i32_0 : i32, i32
  }
  func.func @transform_3(%arg0: i32) -> (i32, i32, i32) {
    %c0_i32 = arith.constant 0 : i32
    %c0_i32_0 = arith.constant 0 : i32
    %c0_i32_1 = arith.constant 0 : i32
    return %arg0, %c0_i32, %c0_i32_0 : i32, i32, i32
  }
  func.func @transform_4(%arg0: i32) -> (i32, i32, i32) {
    %c0_i32 = arith.constant 0 : i32
    %c0_i32_0 = arith.constant 0 : i32
    %c0_i32_1 = arith.constant 0 : i32
    return %arg0, %c0_i32, %c0_i32_0 : i32, i32, i32
  }
}

module attributes {stable_mosaic.version = 11 : i64} {
  func.func @_ln_matmul_kernel(%arg0: i32, %arg1: i32, %arg2: memref<16x32xf32, #tpu.memory_space<vmem>>, %arg3: memref<1x32xf32, #tpu.memory_space<vmem>>, %arg4: memref<1x32xf32, #tpu.memory_space<vmem>>, %arg5: memref<32x128xf32, #tpu.memory_space<vmem>>, %arg6: memref<1x128xf32, #tpu.memory_space<vmem>>, %arg7: memref<16x128xf32, #tpu.memory_space<vmem>>, %arg8: memref<16x32xf32, #tpu.memory_space<vmem>>) attributes {dimension_semantics = [#tpu.dimension_semantics<parallel>, #tpu.dimension_semantics<arbitrary>], iteration_bounds = array<i64: 1, 1>, scalar_prefetch = 0 : i64, scratch_operands = 1 : i64, tpu.core_type = #tpu.core_type<tc>, window_params = [{transform_indices = @transform_0, window_bounds = array<i64: 16, 32>}, {pipeline_mode = #tpu.pipeline_mode<synchronous>, transform_indices = @transform_1, window_bounds = array<i64: 1, 32>}, {pipeline_mode = #tpu.pipeline_mode<synchronous>, transform_indices = @transform_2, window_bounds = array<i64: 1, 32>}, {transform_indices = @transform_3, window_bounds = array<i64: 32, 128>}, {transform_indices = @transform_4, window_bounds = array<i64: 1, 128>}, {transform_indices = @transform_5, window_bounds = array<i64: 16, 128>}]} {
    %c0_i32 = arith.constant 0 : i32
    %0 = arith.cmpi eq, %arg1, %c0_i32 : i32
    %1 = arith.extui %0 : i1 to i32
    %c0_i32_0 = arith.constant 0 : i32
    %2 = arith.cmpi ne, %1, %c0_i32_0 : i32
    scf.if %2 {
      %c0_10 = arith.constant 0 : index
      %c0_11 = arith.constant 0 : index
      %18 = vector.load %arg2[%c0_10, %c0_11] : memref<16x32xf32, #tpu.memory_space<vmem>>, vector<16x32xf32>
      %cst_12 = arith.constant dense<0.000000e+00> : vector<16xf32>
      %19 = vector.multi_reduction <add>, %18, %cst_12 [1] : vector<16x32xf32> to vector<16xf32>
      %20 = vector.shape_cast %19 : vector<16xf32> to vector<16x1xf32>
      %cst_13 = arith.constant 3.200000e+01 : f32
      %21 = vector.broadcast %cst_13 : f32 to vector<16x1xf32>
      %22 = arith.divf %20, %21 : vector<16x1xf32>
      %23 = vector.broadcast %22 : vector<16x1xf32> to vector<16x32xf32>
      %24 = arith.subf %18, %23 : vector<16x32xf32>
      %25 = arith.mulf %24, %24 : vector<16x32xf32>
      %cst_14 = arith.constant dense<0.000000e+00> : vector<16xf32>
      %26 = vector.multi_reduction <add>, %25, %cst_14 [1] : vector<16x32xf32> to vector<16xf32>
      %27 = vector.shape_cast %26 : vector<16xf32> to vector<16x1xf32>
      %cst_15 = arith.constant 3.200000e+01 : f32
      %28 = vector.broadcast %cst_15 : f32 to vector<16x1xf32>
      %29 = arith.divf %27, %28 : vector<16x1xf32>
      %30 = vector.broadcast %22 : vector<16x1xf32> to vector<16x32xf32>
      %31 = arith.subf %18, %30 : vector<16x32xf32>
      %cst_16 = arith.constant 9.99999974E-6 : f32
      %32 = vector.broadcast %cst_16 : f32 to vector<16x1xf32>
      %33 = arith.addf %29, %32 : vector<16x1xf32>
      %34 = math.rsqrt %33 : vector<16x1xf32>
      %35 = vector.broadcast %34 : vector<16x1xf32> to vector<16x32xf32>
      %36 = arith.mulf %31, %35 : vector<16x32xf32>
      %c0_17 = arith.constant 0 : index
      %c0_18 = arith.constant 0 : index
      %37 = vector.load %arg3[%c0_17, %c0_18] : memref<1x32xf32, #tpu.memory_space<vmem>>, vector<1x32xf32>
      %38 = vector.broadcast %37 : vector<1x32xf32> to vector<16x32xf32>
      %39 = arith.mulf %36, %38 : vector<16x32xf32>
      %c0_19 = arith.constant 0 : index
      %c0_20 = arith.constant 0 : index
      %40 = vector.load %arg4[%c0_19, %c0_20] : memref<1x32xf32, #tpu.memory_space<vmem>>, vector<1x32xf32>
      %41 = vector.broadcast %40 : vector<1x32xf32> to vector<16x32xf32>
      %42 = arith.addf %39, %41 : vector<16x32xf32>
      %c0_21 = arith.constant 0 : index
      %c0_22 = arith.constant 0 : index
      %43 = vector.load %arg8[%c0_21, %c0_22] : memref<16x32xf32, #tpu.memory_space<vmem>>, vector<16x32xf32>
      tpu.vector_store %arg8[%c0_21, %c0_22], %42 {strides = array<i32>} : memref<16x32xf32, #tpu.memory_space<vmem>>, vector<16x32xf32>,
    } else {
    }
    %c0 = arith.constant 0 : index
    %c0_1 = arith.constant 0 : index
    %3 = vector.load %arg8[%c0, %c0_1] : memref<16x32xf32, #tpu.memory_space<vmem>>, vector<16x32xf32>
    %c0_2 = arith.constant 0 : index
    %c0_3 = arith.constant 0 : index
    %4 = vector.load %arg5[%c0_2, %c0_3] : memref<32x128xf32, #tpu.memory_space<vmem>>, vector<32x128xf32>
    %cst = arith.constant dense<0.000000e+00> : vector<16x128xf32>
    %5 = tpu.matmul %3, %4, %cst {dimension_numbers = #tpu.dot_dimension_numbers<[1], [0], [0], [1], [0, 0, 1, 1], [], []>} : vector<16x32xf32>, vector<32x128xf32>, vector<16x128xf32> -> vector<16x128xf32>
    %c0_4 = arith.constant 0 : index
    %c0_5 = arith.constant 0 : index
    %6 = vector.load %arg6[%c0_4, %c0_5] : memref<1x128xf32, #tpu.memory_space<vmem>>, vector<1x128xf32>
    %7 = vector.broadcast %6 : vector<1x128xf32> to vector<16x128xf32>
    %8 = arith.addf %5, %7 : vector<16x128xf32>
    %cst_6 = arith.constant 1.702000e+00 : f32
    %9 = vector.broadcast %cst_6 : f32 to vector<16x128xf32>
    %10 = arith.mulf %9, %8 : vector<16x128xf32>
    %11 = arith.negf %10 : vector<16x128xf32>
    %12 = math.exp %11 : vector<16x128xf32>
    %cst_7 = arith.constant 1.000000e+00 : f32
    %13 = vector.broadcast %cst_7 : f32 to vector<16x128xf32>
    %14 = arith.addf %13, %12 : vector<16x128xf32>
    %15 = arith.divf %13, %14 : vector<16x128xf32>
    %16 = arith.mulf %8, %15 : vector<16x128xf32>
    %c0_8 = arith.constant 0 : index
    %c0_9 = arith.constant 0 : index
    %17 = vector.load %arg7[%c0_8, %c0_9] : memref<16x128xf32, #tpu.memory_space<vmem>>, vector<16x128xf32>
    tpu.vector_store %arg7[%c0_8, %c0_9], %16 {strides = array<i32>} : memref<16x128xf32, #tpu.memory_space<vmem>>, vector<16x128xf32>,
    return
  }
  func.func @transform_0(%arg0: i32, %arg1: i32) -> (i32, i32) {
    %c0_i32 = arith.constant 0 : i32
    %c0_i32_0 = arith.constant 0 : i32
    return %arg0, %c0_i32 : i32, i32
  }
  func.func @transform_1(%arg0: i32, %arg1: i32) -> (i32, i32) {
    %c0_i32 = arith.constant 0 : i32
    %c0_i32_0 = arith.constant 0 : i32
    %c0_i32_1 = arith.constant 0 : i32
    return %c0_i32, %c0_i32_0 : i32, i32
  }
  func.func @transform_2(%arg0: i32, %arg1: i32) -> (i32, i32) {
    %c0_i32 = arith.constant 0 : i32
    %c0_i32_0 = arith.constant 0 : i32
    %c0_i32_1 = arith.constant 0 : i32
    return %c0_i32, %c0_i32_0 : i32, i32
  }
  func.func @transform_3(%arg0: i32, %arg1: i32) -> (i32, i32) {
    %c0_i32 = arith.constant 0 : i32
    %c0_i32_0 = arith.constant 0 : i32
    return %c0_i32, %arg1 : i32, i32
  }
  func.func @transform_4(%arg0: i32, %arg1: i32) -> (i32, i32) {
    %c0_i32 = arith.constant 0 : i32
    %c0_i32_0 = arith.constant 0 : i32
    return %c0_i32, %arg1 : i32, i32
  }
  func.func @transform_5(%arg0: i32, %arg1: i32) -> (i32, i32) {
    %c0_i32 = arith.constant 0 : i32
    return %arg0, %arg1 : i32, i32
  }
}

module attributes {stable_mosaic.version = 11 : i64} {
  func.func @_ln_proj_kernel(%arg0: i32, %arg1: memref<2x32xf32, #tpu.memory_space<vmem>>, %arg2: memref<1x32xf32, #tpu.memory_space<vmem>>, %arg3: memref<1x32xf32, #tpu.memory_space<vmem>>, %arg4: memref<32x32xf32, #tpu.memory_space<vmem>>, %arg5: memref<2x32xf32, #tpu.memory_space<vmem>>) attributes {dimension_semantics = [#tpu.dimension_semantics<parallel>], iteration_bounds = array<i64: 1>, scalar_prefetch = 0 : i64, scratch_operands = 0 : i64, tpu.core_type = #tpu.core_type<tc>, window_params = [{transform_indices = @transform_0, window_bounds = array<i64: 2, 32>}, {pipeline_mode = #tpu.pipeline_mode<synchronous>, transform_indices = @transform_1, window_bounds = array<i64: 1, 32>}, {pipeline_mode = #tpu.pipeline_mode<synchronous>, transform_indices = @transform_2, window_bounds = array<i64: 1, 32>}, {pipeline_mode = #tpu.pipeline_mode<synchronous>, transform_indices = @transform_3, window_bounds = array<i64: 32, 32>}, {transform_indices = @transform_4, window_bounds = array<i64: 2, 32>}]} {
    %c0 = arith.constant 0 : index
    %c0_0 = arith.constant 0 : index
    %0 = vector.load %arg1[%c0, %c0_0] : memref<2x32xf32, #tpu.memory_space<vmem>>, vector<2x32xf32>
    %cst = arith.constant dense<0.000000e+00> : vector<2xf32>
    %1 = vector.multi_reduction <add>, %0, %cst [1] : vector<2x32xf32> to vector<2xf32>
    %2 = vector.shape_cast %1 : vector<2xf32> to vector<2x1xf32>
    %cst_1 = arith.constant 3.200000e+01 : f32
    %3 = vector.broadcast %cst_1 : f32 to vector<2x1xf32>
    %4 = arith.divf %2, %3 : vector<2x1xf32>
    %5 = vector.broadcast %4 : vector<2x1xf32> to vector<2x32xf32>
    %6 = arith.subf %0, %5 : vector<2x32xf32>
    %7 = arith.mulf %6, %6 : vector<2x32xf32>
    %cst_2 = arith.constant dense<0.000000e+00> : vector<2xf32>
    %8 = vector.multi_reduction <add>, %7, %cst_2 [1] : vector<2x32xf32> to vector<2xf32>
    %9 = vector.shape_cast %8 : vector<2xf32> to vector<2x1xf32>
    %cst_3 = arith.constant 3.200000e+01 : f32
    %10 = vector.broadcast %cst_3 : f32 to vector<2x1xf32>
    %11 = arith.divf %9, %10 : vector<2x1xf32>
    %12 = vector.broadcast %4 : vector<2x1xf32> to vector<2x32xf32>
    %13 = arith.subf %0, %12 : vector<2x32xf32>
    %cst_4 = arith.constant 9.99999974E-6 : f32
    %14 = vector.broadcast %cst_4 : f32 to vector<2x1xf32>
    %15 = arith.addf %11, %14 : vector<2x1xf32>
    %16 = math.rsqrt %15 : vector<2x1xf32>
    %17 = vector.broadcast %16 : vector<2x1xf32> to vector<2x32xf32>
    %18 = arith.mulf %13, %17 : vector<2x32xf32>
    %c0_5 = arith.constant 0 : index
    %c0_6 = arith.constant 0 : index
    %19 = vector.load %arg2[%c0_5, %c0_6] : memref<1x32xf32, #tpu.memory_space<vmem>>, vector<1x32xf32>
    %20 = vector.broadcast %19 : vector<1x32xf32> to vector<2x32xf32>
    %21 = arith.mulf %18, %20 : vector<2x32xf32>
    %c0_7 = arith.constant 0 : index
    %c0_8 = arith.constant 0 : index
    %22 = vector.load %arg3[%c0_7, %c0_8] : memref<1x32xf32, #tpu.memory_space<vmem>>, vector<1x32xf32>
    %23 = vector.broadcast %22 : vector<1x32xf32> to vector<2x32xf32>
    %24 = arith.addf %21, %23 : vector<2x32xf32>
    %c0_9 = arith.constant 0 : index
    %c0_10 = arith.constant 0 : index
    %25 = vector.load %arg4[%c0_9, %c0_10] : memref<32x32xf32, #tpu.memory_space<vmem>>, vector<32x32xf32>
    %cst_11 = arith.constant dense<0.000000e+00> : vector<2x32xf32>
    %26 = tpu.matmul %24, %25, %cst_11 {dimension_numbers = #tpu.dot_dimension_numbers<[1], [0], [0], [1], [0, 0, 1, 1], [], []>} : vector<2x32xf32>, vector<32x32xf32>, vector<2x32xf32> -> vector<2x32xf32>
    %c0_12 = arith.constant 0 : index
    %c0_13 = arith.constant 0 : index
    %27 = vector.load %arg5[%c0_12, %c0_13] : memref<2x32xf32, #tpu.memory_space<vmem>>, vector<2x32xf32>
    tpu.vector_store %arg5[%c0_12, %c0_13], %26 {strides = array<i32>} : memref<2x32xf32, #tpu.memory_space<vmem>>, vector<2x32xf32>,
    return
  }
  func.func @transform_0(%arg0: i32) -> (i32, i32) {
    %c0_i32 = arith.constant 0 : i32
    %c0_i32_0 = arith.constant 0 : i32
    return %arg0, %c0_i32 : i32, i32
  }
  func.func @transform_1(%arg0: i32) -> (i32, i32) {
    %c0_i32 = arith.constant 0 : i32
    %c0_i32_0 = arith.constant 0 : i32
    %c0_i32_1 = arith.constant 0 : i32
    return %c0_i32, %c0_i32_0 : i32, i32
  }
  func.func @transform_2(%arg0: i32) -> (i32, i32) {
    %c0_i32 = arith.constant 0 : i32
    %c0_i32_0 = arith.constant 0 : i32
    %c0_i32_1 = arith.constant 0 : i32
    return %c0_i32, %c0_i32_0 : i32, i32
  }
  func.func @transform_3(%arg0: i32) -> (i32, i32) {
    %c0_i32 = arith.constant 0 : i32
    %c0_i32_0 = arith.constant 0 : i32
    %c0_i32_1 = arith.constant 0 : i32
    return %c0_i32, %c0_i32_0 : i32, i32
  }
  func.func @transform_4(%arg0: i32) -> (i32, i32) {
    %c0_i32 = arith.constant 0 : i32
    %c0_i32_0 = arith.constant 0 : i32
    return %arg0, %c0_i32 : i32, i32
  }
}

</mosaic_0001>

<llo_original>
// kernel: text_encoder_forward.9
$region0: #{text_encoder_forward.9}
  #allocation0 [shape = 'u32[]', space=smem, size = 0x4, offset = 0x4, fixed_abs, tag = 'smem constant byte address 0x4 - core index']
  #allocation1 [shape = 'u32[72,128]{1,0:T(1,128)}', space=vmem, size = 0x9000, scoped, tag = 'internal scratch']
  #allocation2 [shape = 'f32[16,32]{1,0:T(8,128)}', space=vmem, size = 0x2000, scoped, tag = 'scratch operand']
  %s0 = inlined_call_operand.vmem [shape: f32[16,32], index: 0, kind: input, shape index: {}]
  %s1 = inlined_call_operand.vmem [shape: f32[1,32], index: 1, kind: input, shape index: {}]
  %s2 = inlined_call_operand.vmem [shape: f32[1,32], index: 2, kind: input, shape index: {}]
  %s3 = inlined_call_operand.vmem [shape: f32[32,96], index: 3, kind: input, shape index: {}]
  %s4 = inlined_call_operand.vmem [shape: f32[1,96], index: 4, kind: input, shape index: {}]
  %s5 = inlined_call_operand.vmem [shape: f32[16,96], index: 5, kind: output, shape index: {}]
  %s6 = sld [smem:[#allocation0]]
  $region34: #{text_encoder_forward.9} parent=0
    _
  %s8 = ssub.s32 1, %s6
  %s9 = scalar_select 0, %s8, %s6
  // Predicated region
  $region2: #{text_encoder_forward.9} parent=0 // pred_check
    _
  $region3: #{text_encoder_forward.9} parent=0 // pred_check_branch
    %11 = sbr.rel (0) target = $region5
  $region4: #{text_encoder_forward.9} parent=0 // pred_region
    _
  $region5: #{text_encoder_forward.9} parent=0 // pred_fallthru
    _
  // Predicated region
  $region6: #{text_encoder_forward.9} parent=0 // pred_check
    _
  $region7: #{text_encoder_forward.9} parent=0 // pred_check_branch
    %13 = sbr.rel (0) target = $region9
  $region8: #{text_encoder_forward.9} parent=0 // pred_region
    _
  $region9: #{text_encoder_forward.9} parent=0 // pred_fallthru
    _
  // Predicated region
  $region10: #{text_encoder_forward.9} parent=0 // pred_check
    _
  $region11: #{text_encoder_forward.9} parent=0 // pred_check_branch
    %15 = sbr.rel (0) target = $region13
  $region12: #{text_encoder_forward.9} parent=0 // pred_region
    _
  $region13: #{text_encoder_forward.9} parent=0 // pred_fallthru
    _
  // Predicated region
  $region14: #{text_encoder_forward.9} parent=0 // pred_check
    _
  $region15: #{text_encoder_forward.9} parent=0 // pred_check_branch
    %17 = sbr.rel (0) target = $region17
  $region16: #{text_encoder_forward.9} parent=0 // pred_region
    _
  $region17: #{text_encoder_forward.9} parent=0 // pred_fallthru
    _
  // Predicated region
  $region18: #{text_encoder_forward.9} parent=0 // pred_check
    _
  $region19: #{text_encoder_forward.9} parent=0 // pred_check_branch
    %19 = sbr.rel (0) target = $region21
  $region20: #{text_encoder_forward.9} parent=0 // pred_region
    _
  $region21: #{text_encoder_forward.9} parent=0 // pred_fallthru
    _
  %p20 = scmp.eq.s32.totalorder 0, 0
  // Predicated region
  $region22: #{text_encoder_forward.9} parent=0 // pred_check
    %p21 = pneg %p20
  $region23: #{text_encoder_forward.9} parent=0 // pred_check_branch
    %23 = sbr.rel (%p21) target = $region25
  $region24: #{text_encoder_forward.9} parent=0 // pred_region
    %v24 = vld [vmem:[%s0] sm:$0xff]
    %v25 = vld [vmem:[%s0 + $0x8] sm:$0xff]
    %vm26 = vcmask 261120
    %v27 = vsel %vm26, %v24, 0.0
    %28 = vadd.xlane.f32.xlu0 %v27
    %v29 = vpop.xlane.xlu0 %28
    %v30 = vsel %vm26, %v25, 0.0
    %31 = vadd.xlane.f32.xlu0 %v30
    %v32 = vpop.xlane.xlu0 %31
    %v33 = vrcp.pop 32.0
    %v34 = vmul.f32 32.0, %v33
    %v35 = vsub.f32 1.0, %v34
    %v36 = vmul.f32 %v33, %v35
    %v37 = vadd.f32 %v33, %v36
    %vm38 = vweird.f32 %v33
    %v39 = vsel %vm38, %v33, %v37
    %v40 = vmul.f32 %v29, %v39
    %v41 = vmul.f32 %v32, %v39
    %v42 = vsub.f32 %v24, %v40
    %v43 = vsub.f32 %v25, %v41
    %v44 = vmul.f32 %v42, %v42
    %v45 = vmul.f32 %v43, %v43
    %v46 = vsel %vm26, %v44, 0.0
    %47 = vadd.xlane.f32.xlu0 %v46
    %v48 = vpop.xlane.xlu0 %47
    %v49 = vsel %vm26, %v45, 0.0
    %50 = vadd.xlane.f32.xlu0 %v49
    %v51 = vpop.xlane.xlu0 %50
    %v52 = vmul.f32 %v48, %v39
    %v53 = vmul.f32 %v51, %v39
    %v54 = vadd.f32 %v52, 1e-05
    %v55 = vadd.f32 %v53, 1e-05
    %v56 = vrsqrt.pop %v54
    %v57 = vmul.f32 %v56, %v54
    %v58 = vmul.f32 %v57, %v56
    %v59 = vmul.f32 0.5, %v58
    %v60 = vsub.f32 1.5, %v59
    %v61 = vmul.f32 %v56, %v60
    %vm62 = vweird.f32 %v54
    %vm63 = vweird.f32 %v56
    %vm64 = vmor %vm62, %vm63
    %v65 = vsel %vm64, %v56, %v61
    %v66 = vrsqrt.pop %v55
    %v67 = vmul.f32 %v66, %v55
    %v68 = vmul.f32 %v67, %v66
    %v69 = vmul.f32 0.5, %v68
    %v70 = vsub.f32 1.5, %v69
    %v71 = vmul.f32 %v66, %v70
    %vm72 = vweird.f32 %v55
    %vm73 = vweird.f32 %v66
    %vm74 = vmor %vm72, %vm73
    %v75 = vsel %vm74, %v66, %v71
    %v76 = vmul.f32 %v42, %v65
    %v77 = vmul.f32 %v43, %v75
    %v78 = vld [vmem:[%s1] sm:$0x1]
    %v80 = vperm.slane %v78, 0
    %v82 = vmul.f32 %v76, %v80
    %v83 = vmul.f32 %v77, %v80
    %v84 = vld [vmem:[%s2] sm:$0x1]
    %v86 = vperm.slane %v84, 0
    %v88 = vadd.f32 %v82, %v86
    %v89 = vadd.f32 %v83, %v86
    %90 = vst.msk [vmem:[#allocation2] sm:$0xff] %vm26, %v88
    %91 = vst.msk [vmem:[#allocation2 + $0x8] sm:$0xff] %vm26, %v89
  $region25: #{text_encoder_forward.9} parent=0 // pred_fallthru
    _
  %v92 = vld [vmem:[#allocation2] sm:$0xff]
  %v93 = vld [vmem:[#allocation2 + $0x8] sm:$0xff]
  %v94 = vld [vmem:[%s3] sm:$0xff]
  %v95 = vld [vmem:[%s3 + $0x8] sm:$0xff]
  %v96 = vld [vmem:[%s3 + $0x10] sm:$0xff]
  %v97 = vld [vmem:[%s3 + $0x18] sm:$0xff]
  %v98 = vld [vmem:[%s4] sm:$0x1]
  %v100 = vperm.slane %v98, 0
  %vm102 = vcmask 261120
  %v104 = vsel %vm102, %v92, 0
  %v107 = vsel %vm102, %v93, 0
  %109 = vmatpush.msra.mxu0 0.0
  %110 = vmatpush.msra.mxu0 0.0
  %111 = vmatpush.msra.mxu0 0.0
  %112 = vmatpush.msra.mxu0 0.0
  %113 = vmatpush.msra.mxu0 0.0
  %114 = vmatpush.msra.mxu0 0.0
  %115 = vmatpush.msra.mxu0 0.0
  %116 = vmatpush.msra.mxu0 0.0
  %117 = vmatpush.msra.mxu0 0.0
  %118 = vmatpush.msra.mxu0 0.0
  %119 = vmatpush.msra.mxu0 0.0
  %120 = vmatpush.msra.mxu0 0.0
  %121 = vmatpush.msra.mxu0 %v97
  %122 = vmatpush.msra.mxu0 %v96
  %123 = vmatpush.msra.mxu0 %v95
  %124 = vmatpush.msra.mxu0 %v94
  %125 = vmatmul.f32.gmra.mxu0 %v104
  %v126 = vpop.f32.mrf.mxu0
  %v127 = vadd.f32 %v100, %v126
  %128 = vmatmul.f32.gmra.mxu0 %v107
  %v129 = vpop.f32.mrf.mxu0
  %v130 = vadd.f32 %v100, %v129
  %131 = vdwg.mxu0
  %vm132 = vcmask 785408
  %133 = vst.msk [vmem:[%s5] sm:$0xff] %vm132, %v127
  %134 = vst.msk [vmem:[%s5 + $0x8] sm:$0xff] %vm132, %v130
  // Predicated region
  $region26: #{text_encoder_forward.9} parent=0 // pred_check
    _
  $region27: #{text_encoder_forward.9} parent=0 // pred_check_branch
    %136 = sbr.rel (0) target = $region29
  $region28: #{text_encoder_forward.9} parent=0 // pred_region
    _
  $region29: #{text_encoder_forward.9} parent=0 // pred_fallthru
    _
  // Predicated region
  $region30: #{text_encoder_forward.9} parent=0 // pred_check
    _
  $region31: #{text_encoder_forward.9} parent=0 // pred_check_branch
    %138 = sbr.rel (0) target = $region33
  $region32: #{text_encoder_forward.9} parent=0 // pred_region
    _
  $region33: #{text_encoder_forward.9} parent=0 // pred_fallthru
    _

// kernel: text_encoder_forward.10
$region0: #{text_encoder_forward.10}
  #allocation0 [shape = 'u32[]', space=smem, size = 0x4, offset = 0x4, fixed_abs, tag = 'smem constant byte address 0x4 - core index']
  #allocation1 [shape = 'u32[72,128]{1,0:T(1,128)}', space=vmem, size = 0x9000, scoped, tag = 'internal scratch']
  %s0 = inlined_call_operand.vmem [shape: f32[2,8,96], index: 0, kind: input, shape index: {}]
  %s1 = inlined_call_operand.hbm [shape: f32[32,32], index: 1, kind: input, shape index: {}]
  %s2 = inlined_call_operand.vmem [shape: f32[1,32], index: 2, kind: input, shape index: {}]
  %s3 = inlined_call_operand.vmem [shape: f32[2,8,32], index: 3, kind: input, shape index: {}, may-alias: {3,4}]
  %s4 = inlined_call_operand.vmem [shape: f32[2,8,32], index: 4, kind: output, shape index: {}, may-alias: {3,4}]
  %s5 = sld [smem:[#allocation0]]
  $region53: #{text_encoder_forward.10} parent=0
    _
  %s7 = ssub.s32 1, %s5
  %s8 = scalar_select 0, %s7, %s5
  $region1: #{text_encoder_forward.10} parent=0
    #allocation2 [shape = 'u8[16384]{0}', space=vmem, size = 0x4000, scoped, tag = 'input window, operand 1, single buffered']
    #allocation3 [shape = 's32[2]{0}', space=sflag, size = 0x8, scoped, tag = 'scoped memory for text_encoder_forward.10']
    %9 = vsyncpa [#allocation3], 0
    loop: start=0, step=1, limit=4
    $region2: #{text_encoder_forward.10} parent=1 // loop_pre_header
      _
    $region3: #{text_encoder_forward.10} parent=1 // loop_header
      %s11 = sphi 0, %s15
      %p12 = scmp.ge.s32.totalorder %s11, 4
      %s21 = sphi 0, %s23
      %s24 = sphi 0, %s21
      %s25 = sphi 0, %s24
      %s41 = sphi 0, %s25
      %s45 = sphi 0, %s45
      %s47 = sphi 0, %s45
      %s48 = sphi 0, %s47
      %s62 = sphi 0, %s48
      %s66 = sphi 0, %s66
      %s68 = sphi 0, %s66
      %s69 = sphi 0, %s68
      %s83 = sphi 0, %s69
      %s89 = sphi 0, %s91
      %s92 = sphi 0, %s89
      %s93 = sphi 0, %s92
      %s109 = sphi 0, %s93
      %s115 = sphi 0, %s117
      %s118 = sphi 0, %s115
      %s119 = sphi 0, %s118
      %s135 = sphi 0, %s119
    $region4: #{text_encoder_forward.10} parent=1 // loop_header_branch
      %14 = sbr.rel (%p12) target = $region8
    $region5: #{text_encoder_forward.10} parent=1 // loop_body
      %s16 = ssub.s32 %s11, 1
      %s17 = ssub.s32 %s11, 2
      %s18 = sadd.s32 %s11, 1
      %s19 = ssub.s32 %s11, %s18
      %p20 = scmp.eq.s32.totalorder %s19, 0
      %s22 = sadd.s32 %s21, 1
      %s23 = scalar_select %p20, %s21, %s22
      %p26 = pneg %p20
      %p27 = scmp.eq.s32.totalorder %s11, 1
      %p28 = por %p26, %p27
      %p29 = scmp.ne.s32.totalorder %s21, %s24
      %p30 = scmp.eq.s32.totalorder %s11, 0
      %p31 = por %p29, %p30
      %p32 = scmp.ne.s32.totalorder %s21, %s24
      %p33 = scmp.eq.s32.totalorder %s16, 1
      %p34 = por %p32, %p33
      %p35 = scmp.ne.s32.totalorder %s24, %s25
      %p36 = scmp.eq.s32.totalorder %s16, 0
      %p37 = por %p35, %p36
      %p38 = scmp.ne.s32.totalorder %s24, %s25
      %p39 = scmp.eq.s32.totalorder %s17, 1
      %p40 = por %p38, %p39
      %p42 = scmp.ne.s32.totalorder %s25, %s41
      %p43 = scmp.eq.s32.totalorder %s17, 0
      %p44 = por %p42, %p43
      %s46 = sadd.s32 %s45, 1
      %p49 = scmp.eq.s32.totalorder %s11, 1
      %p50 = scmp.ne.s32.totalorder %s45, %s47
      %p51 = scmp.eq.s32.totalorder %s11, 0
      %p52 = por %p50, %p51
      %p53 = scmp.ne.s32.totalorder %s45, %s47
      %p54 = scmp.eq.s32.totalorder %s16, 1
      %p55 = por %p53, %p54
      %p56 = scmp.ne.s32.totalorder %s47, %s48
      %p57 = scmp.eq.s32.totalorder %s16, 0
      %p58 = por %p56, %p57
      %p59 = scmp.ne.s32.totalorder %s47, %s48
      %p60 = scmp.eq.s32.totalorder %s17, 1
      %p61 = por %p59, %p60
      %p63 = scmp.ne.s32.totalorder %s48, %s62
      %p64 = scmp.eq.s32.totalorder %s17, 0
      %p65 = por %p63, %p64
      %s67 = sadd.s32 %s66, 1
      %p70 = scmp.eq.s32.totalorder %s11, 1
      %p71 = scmp.ne.s32.totalorder %s66, %s68
      %p72 = scmp.eq.s32.totalorder %s11, 0
      %p73 = por %p71, %p72
      %p74 = scmp.ne.s32.totalorder %s66, %s68
      %p75 = scmp.eq.s32.totalorder %s16, 1
      %p76 = por %p74, %p75
      %p77 = scmp.ne.s32.totalorder %s68, %s69
      %p78 = scmp.eq.s32.totalorder %s16, 0
      %p79 = por %p77, %p78
      %p80 = scmp.ne.s32.totalorder %s68, %s69
      %p81 = scmp.eq.s32.totalorder %s17, 1
      %p82 = por %p80, %p81
      %p84 = scmp.ne.s32.totalorder %s69, %s83
      %p85 = scmp.eq.s32.totalorder %s17, 0
      %p86 = por %p84, %p85
      %s87 = ssub.s32 %s11, %s18
      %p88 = scmp.eq.s32.totalorder %s87, 0
      %s90 = sadd.s32 %s89, 1
      %s91 = scalar_select %p88, %s89, %s90
      %p94 = pneg %p88
      %p95 = scmp.eq.s32.totalorder %s11, 1
      %p96 = por %p94, %p95
      %p97 = scmp.ne.s32.totalorder %s89, %s92
      %p98 = scmp.eq.s32.totalorder %s11, 0
      %p99 = por %p97, %p98
      %p100 = scmp.ne.s32.totalorder %s89, %s92
      %p101 = scmp.eq.s32.totalorder %s16, 1
      %p102 = por %p100, %p101
      %p103 = scmp.ne.s32.totalorder %s92, %s93
      %p104 = scmp.eq.s32.totalorder %s16, 0
      %p105 = por %p103, %p104
      %p106 = scmp.ne.s32.totalorder %s92, %s93
      %p107 = scmp.eq.s32.totalorder %s17, 1
      %p108 = por %p106, %p107
      %p110 = scmp.ne.s32.totalorder %s93, %s109
      %p111 = scmp.eq.s32.totalorder %s17, 0
      %p112 = por %p110, %p111
      %s113 = ssub.s32 %s11, %s18
      %p114 = scmp.eq.s32.totalorder %s113, 0
      %s116 = sadd.s32 %s115, 1
      %s117 = scalar_select %p114, %s115, %s116
      %p120 = pneg %p114
      %p121 = scmp.eq.s32.totalorder %s11, 1
      %p122 = por %p120, %p121
      %p123 = scmp.ne.s32.totalorder %s115, %s118
      %p124 = scmp.eq.s32.totalorder %s11, 0
      %p125 = por %p123, %p124
      %p126 = scmp.ne.s32.totalorder %s115, %s118
      %p127 = scmp.eq.s32.totalorder %s16, 1
      %p128 = por %p126, %p127
      %p129 = scmp.ne.s32.totalorder %s118, %s119
      %p130 = scmp.eq.s32.totalorder %s16, 0
      %p131 = por %p129, %p130
      %p132 = scmp.ne.s32.totalorder %s118, %s119
      %p133 = scmp.eq.s32.totalorder %s17, 1
      %p134 = por %p132, %p133
      %p136 = scmp.ne.s32.totalorder %s119, %s135
      %p137 = scmp.eq.s32.totalorder %s17, 0
      %p138 = por %p136, %p137
      %p139 = scmp.le.s32.totalorder 1, %s11
      %p140 = scmp.lt.s32.totalorder %s11, 3
      %p141 = pnand %p139, %p140
      %p142 = pneg %p141
      // Predicated region
      $region9: #{text_encoder_forward.10} parent=5 // pred_check
        _
      $region10: #{text_encoder_forward.10} parent=5 // pred_check_branch
        %144 = sbr.rel (%p141) target = $region12
      $region11: #{text_encoder_forward.10} parent=5 // pred_region
        %s145 = ssub.s32 %s11, 1
        // Predicated region
        $region13: #{text_encoder_forward.10} parent=11 // pred_check
          %p146 = pneg %p58
        $region14: #{text_encoder_forward.10} parent=11 // pred_check_branch
          %148 = sbr.rel (%p146) target = $region16
        $region15: #{text_encoder_forward.10} parent=11 // pred_region
          %150 = vsyncadd [#allocation3], 0
          %s151 = sshll.u32 %s1, 4
          %s152 = int_to_ptr.hbm [resolvable:$true] %s151
          %s153 = sshll.u32 [#allocation2], 4
          %s154 = int_to_ptr.vmem [resolvable:$true] %s153
          %159 = dma.hbm_to_vmem [thread:$0]  %s152, 512, %s154, [#allocation3], 128, 128, 8
        $region16: #{text_encoder_forward.10} parent=11 // pred_fallthru
          _
        // Predicated region
        $region17: #{text_encoder_forward.10} parent=11 // pred_check
          %p160 = pneg %p79
        $region18: #{text_encoder_forward.10} parent=11 // pred_check_branch
          %162 = sbr.rel (%p160) target = $region20
        $region19: #{text_encoder_forward.10} parent=11 // pred_region
          _
        $region20: #{text_encoder_forward.10} parent=11 // pred_fallthru
          _
      $region12: #{text_encoder_forward.10} parent=5 // pred_fallthru
        _
      %p163 = scmp.lt.s32.totalorder %s11, 2
      // Predicated region
      $region21: #{text_encoder_forward.10} parent=5 // pred_check
        %p164 = pneg %p163
      $region22: #{text_encoder_forward.10} parent=5 // pred_check_branch
        %166 = sbr.rel (%p164) target = $region24
      $region23: #{text_encoder_forward.10} parent=5 // pred_region
        // Predicated region
        $region25: #{text_encoder_forward.10} parent=23 // pred_check
          %p167 = pneg %p31
        $region26: #{text_encoder_forward.10} parent=23 // pred_check_branch
          %169 = sbr.rel (%p167) target = $region28
        $region27: #{text_encoder_forward.10} parent=23 // pred_region
          %p170 = scmp.lt.s32.totalorder %s11, 1
          %s171 = scalar_select %p170, %s11, 1
          %s172 = smul.addr %s171, 8
          %s173 = scalar_lea.vmem %s0, %s172
        $region28: #{text_encoder_forward.10} parent=23 // pred_fallthru
          _
        // Predicated region
        $region29: #{text_encoder_forward.10} parent=23 // pred_check
          %p174 = pneg %p99
        $region30: #{text_encoder_forward.10} parent=23 // pred_check_branch
          %176 = sbr.rel (%p174) target = $region32
        $region31: #{text_encoder_forward.10} parent=23 // pred_region
          %p177 = scmp.lt.s32.totalorder %s11, 1
          %s178 = scalar_select %p177, %s11, 1
          %s179 = smul.addr %s178, 8
          %s180 = scalar_lea.vmem %s3, %s179
        $region32: #{text_encoder_forward.10} parent=23 // pred_fallthru
          _
      $region24: #{text_encoder_forward.10} parent=5 // pred_fallthru
        _
      %p181 = scmp.le.s32.totalorder 1, %s11
      %p182 = scmp.lt.s32.totalorder %s11, 3
      %p183 = pnand %p181, %p182
      %p184 = pneg %p183
      // Predicated region
      $region33: #{text_encoder_forward.10} parent=5 // pred_check
        _
      $region34: #{text_encoder_forward.10} parent=5 // pred_check_branch
        %186 = sbr.rel (%p183) target = $region36
      $region35: #{text_encoder_forward.10} parent=5 // pred_region
        %s187 = ssub.s32 %s11, 1
        // Predicated region
        $region37: #{text_encoder_forward.10} parent=35 // pred_check
          %p188 = pneg %p58
        $region38: #{text_encoder_forward.10} parent=35 // pred_check_branch
          %190 = sbr.rel (%p188) target = $region40
        $region39: #{text_encoder_forward.10} parent=35 // pred_region
          %192 = dma.done [#allocation3], 512
        $region40: #{text_encoder_forward.10} parent=35 // pred_fallthru
          _
        %p193 = scmp.lt.s32.totalorder %s16, 1
        %s194 = scalar_select %p193, %s16, 1
        %s195 = smul.addr %s194, 8
        %s196 = scalar_lea.vmem %s0, %s195
        %p197 = pneg %p37
        %p198 = pneg %p34
        %p199 = pneg %p58
        %p200 = pneg %p55
        %p201 = pneg %p79
        %p202 = pneg %p76
        %p203 = scmp.lt.s32.totalorder %s16, 1
        %s204 = scalar_select %p203, %s16, 1
        %s205 = smul.addr %s204, 8
        %s206 = scalar_lea.vmem %s3, %s205
        %p207 = pneg %p105
        %p208 = pneg %p102
        %p209 = pneg %p131
        %p210 = pneg %p128
        %p211 = scmp.lt.s32.totalorder %s16, 1
        %s212 = scalar_select %p211, %s16, 1
        %s213 = smul.addr %s212, 8
        %s214 = scalar_lea.vmem %s4, %s213
        %p215 = scmp.lt.s32.totalorder %s16, 1
        %s216 = scalar_select %p215, %s16, 1
        %s217 = smul.addr %s216, 8
        %s218 = scalar_lea.vmem %s0, %s217
        %p219 = scmp.lt.s32.totalorder %s16, 1
        %s220 = scalar_select %p219, %s16, 1
        %s221 = smul.addr %s220, 8
        %s222 = scalar_lea.vmem %s3, %s221
        %p223 = scmp.lt.s32.totalorder %s16, 1
        %s224 = scalar_select %p223, %s16, 1
        %s225 = smul.addr %s224, 8
        %s226 = scalar_lea.vmem %s4, %s225
        %v227 = vlaneseq
        %v228 = vshrl.u32 %v227, 7
        %v229 = vlaneseq
        %v230 = vand.u32 %v229, 127
        %vm231 = vcmp.le.s32.totalorder %v230, %v228
        %v232 = vld [vmem:[%s218] sm:$0xff]
        %234 = vrot.lane.b32.xlu0 %v232, 96
        %v235 = vpop.permute.xlu0 %234
        %vm236 = vcmask 64512
        %v237 = vsel %vm236, %v232, 0
        %v239 = vsel %vm236, %v235, 0
        %241 = vmatpush.xpose.msra.mxu0 0.0
        %242 = vmatpush.xpose.msra.mxu0 0.0
        %243 = vmatpush.xpose.msra.mxu0 0.0
        %244 = vmatpush.xpose.msra.mxu0 0.0
        %245 = vmatpush.xpose.msra.mxu0 0.0
        %246 = vmatpush.xpose.msra.mxu0 0.0
        %247 = vmatpush.xpose.msra.mxu0 0.0
        %248 = vmatpush.xpose.msra.mxu0 0.0
        %249 = vmatpush.xpose.msra.mxu0 0.0
        %250 = vmatpush.xpose.msra.mxu0 0.0
        %251 = vmatpush.xpose.msra.mxu0 0.0
        %252 = vmatpush.xpose.msra.mxu0 0.0
        %253 = vmatpush.xpose.msra.mxu0 0.0
        %254 = vmatpush.xpose.msra.mxu0 0.0
        %255 = vmatpush.xpose.msra.mxu0 0.0
        %256 = vmatpush.xpose.msra.mxu0 %v239
        %257 = vmatmul.f32.gmra.mxu0 %v237
        %v258 = vpop.f32.mrf.mxu0
        %v259 = vadd.f32 0.0, %v258
        %260 = vdwg.mxu0
        %v261 = vsel %vm231, %v259, -1e+30
        %v262 = vsel %vm236, %v261, -inf
        %263 = vmax.xlane.f32.xlu0 %v262
        %v264 = vpop.xlane.xlu0 %263
        %v265 = vsub.f32 %v261, %v264
        %v266 = vmul.f32 %v265, 1.442695
        %v267 = vpow.pop %v266
        %v268 = vsel %vm236, %v267, 0.0
        %269 = vadd.xlane.f32.xlu0 %v268
        %v270 = vpop.xlane.xlu0 %269
        %v271 = vrcp.pop %v270
        %v272 = vmul.f32 %v267, %v271
        %273 = vrot.lane.b32.xlu0 %v232, 64
        %v274 = vpop.permute.xlu0 %273
        %v277 = vsel %vm236, %v272, 0
        %279 = vmatpush.msra.mxu0 0.0
        %280 = vmatpush.msra.mxu0 0.0
        %281 = vmatpush.msra.mxu0 0.0
        %282 = vmatpush.msra.mxu0 0.0
        %283 = vmatpush.msra.mxu0 0.0
        %284 = vmatpush.msra.mxu0 0.0
        %285 = vmatpush.msra.mxu0 0.0
        %286 = vmatpush.msra.mxu0 0.0
        %287 = vmatpush.msra.mxu0 0.0
        %288 = vmatpush.msra.mxu0 0.0
        %289 = vmatpush.msra.mxu0 0.0
        %290 = vmatpush.msra.mxu0 0.0
        %291 = vmatpush.msra.mxu0 0.0
        %292 = vmatpush.msra.mxu0 0.0
        %293 = vmatpush.msra.mxu0 0.0
        %294 = vmatpush.msra.mxu0 %v274
        %295 = vmatmul.f32.gmra.mxu0 %v277
        %v296 = vpop.f32.mrf.mxu0
        %v297 = vadd.f32 0.0, %v296
        %298 = vdwg.mxu0
        %299 = vrot.lane.b32.xlu0 %v232, 120
        %v300 = vpop.permute.xlu0 %299
        %301 = vrot.lane.b32.xlu0 %v232, 88
        %v302 = vpop.permute.xlu0 %301
        %v303 = vsel %vm236, %v300, 0
        %v305 = vsel %vm236, %v302, 0
        %307 = vmatpush.xpose.msra.mxu0 0.0
        %308 = vmatpush.xpose.msra.mxu0 0.0
        %309 = vmatpush.xpose.msra.mxu0 0.0
        %310 = vmatpush.xpose.msra.mxu0 0.0
        %311 = vmatpush.xpose.msra.mxu0 0.0
        %312 = vmatpush.xpose.msra.mxu0 0.0
        %313 = vmatpush.xpose.msra.mxu0 0.0
        %314 = vmatpush.xpose.msra.mxu0 0.0
        %315 = vmatpush.xpose.msra.mxu0 0.0
        %316 = vmatpush.xpose.msra.mxu0 0.0
        %317 = vmatpush.xpose.msra.mxu0 0.0
        %318 = vmatpush.xpose.msra.mxu0 0.0
        %319 = vmatpush.xpose.msra.mxu0 0.0
        %320 = vmatpush.xpose.msra.mxu0 0.0
        %321 = vmatpush.xpose.msra.mxu0 0.0
        %322 = vmatpush.xpose.msra.mxu0 %v305
        %323 = vmatmul.f32.gmra.mxu0 %v303
        %v324 = vpop.f32.mrf.mxu0
        %v325 = vadd.f32 0.0, %v324
        %326 = vdwg.mxu0
        %v327 = vsel %vm231, %v325, -1e+30
        %v328 = vsel %vm236, %v327, -inf
        %329 = vmax.xlane.f32.xlu0 %v328
        %v330 = vpop.xlane.xlu0 %329
        %v331 = vsub.f32 %v327, %v330
        %v332 = vmul.f32 %v331, 1.442695
        %v333 = vpow.pop %v332
        %v334 = vsel %vm236, %v333, 0.0
        %335 = vadd.xlane.f32.xlu0 %v334
        %v336 = vpop.xlane.xlu0 %335
        %v337 = vrcp.pop %v336
        %v338 = vmul.f32 %v333, %v337
        %339 = vrot.lane.b32.xlu0 %v232, 56
        %v340 = vpop.permute.xlu0 %339
        %v343 = vsel %vm236, %v338, 0
        %345 = vmatpush.msra.mxu0 0.0
        %346 = vmatpush.msra.mxu0 0.0
        %347 = vmatpush.msra.mxu0 0.0
        %348 = vmatpush.msra.mxu0 0.0
        %349 = vmatpush.msra.mxu0 0.0
        %350 = vmatpush.msra.mxu0 0.0
        %351 = vmatpush.msra.mxu0 0.0
        %352 = vmatpush.msra.mxu0 0.0
        %353 = vmatpush.msra.mxu0 0.0
        %354 = vmatpush.msra.mxu0 0.0
        %355 = vmatpush.msra.mxu0 0.0
        %356 = vmatpush.msra.mxu0 0.0
        %357 = vmatpush.msra.mxu0 0.0
        %358 = vmatpush.msra.mxu0 0.0
        %359 = vmatpush.msra.mxu0 0.0
        %360 = vmatpush.msra.mxu0 %v340
        %361 = vmatmul.f32.gmra.mxu0 %v343
        %v362 = vpop.f32.mrf.mxu0
        %v363 = vadd.f32 0.0, %v362
        %364 = vdwg.mxu0
        %365 = vrot.lane.b32.xlu0 %v232, 112
        %v366 = vpop.permute.xlu0 %365
        %367 = vrot.lane.b32.xlu0 %v232, 80
        %v368 = vpop.permute.xlu0 %367
        %v369 = vsel %vm236, %v366, 0
        %v371 = vsel %vm236, %v368, 0
        %373 = vmatpush.xpose.msra.mxu0 0.0
        %374 = vmatpush.xpose.msra.mxu0 0.0
        %375 = vmatpush.xpose.msra.mxu0 0.0
        %376 = vmatpush.xpose.msra.mxu0 0.0
        %377 = vmatpush.xpose.msra.mxu0 0.0
        %378 = vmatpush.xpose.msra.mxu0 0.0
        %379 = vmatpush.xpose.msra.mxu0 0.0
        %380 = vmatpush.xpose.msra.mxu0 0.0
        %381 = vmatpush.xpose.msra.mxu0 0.0
        %382 = vmatpush.xpose.msra.mxu0 0.0
        %383 = vmatpush.xpose.msra.mxu0 0.0
        %384 = vmatpush.xpose.msra.mxu0 0.0
        %385 = vmatpush.xpose.msra.mxu0 0.0
        %386 = vmatpush.xpose.msra.mxu0 0.0
        %387 = vmatpush.xpose.msra.mxu0 0.0
        %388 = vmatpush.xpose.msra.mxu0 %v371
        %389 = vmatmul.f32.gmra.mxu0 %v369
        %v390 = vpop.f32.mrf.mxu0
        %v391 = vadd.f32 0.0, %v390
        %392 = vdwg.mxu0
        %v393 = vsel %vm231, %v391, -1e+30
        %v394 = vsel %vm236, %v393, -inf
        %395 = vmax.xlane.f32.xlu0 %v394
        %v396 = vpop.xlane.xlu0 %395
        %v397 = vsub.f32 %v393, %v396
        %v398 = vmul.f32 %v397, 1.442695
        %v399 = vpow.pop %v398
        %v400 = vsel %vm236, %v399, 0.0
        %401 = vadd.xlane.f32.xlu0 %v400
        %v402 = vpop.xlane.xlu0 %401
        %v403 = vrcp.pop %v402
        %v404 = vmul.f32 %v399, %v403
        %405 = vrot.lane.b32.xlu0 %v232, 48
        %v406 = vpop.permute.xlu0 %405
        %v409 = vsel %vm236, %v404, 0
        %411 = vmatpush.msra.mxu0 0.0
        %412 = vmatpush.msra.mxu0 0.0
        %413 = vmatpush.msra.mxu0 0.0
        %414 = vmatpush.msra.mxu0 0.0
        %415 = vmatpush.msra.mxu0 0.0
        %416 = vmatpush.msra.mxu0 0.0
        %417 = vmatpush.msra.mxu0 0.0
        %418 = vmatpush.msra.mxu0 0.0
        %419 = vmatpush.msra.mxu0 0.0
        %420 = vmatpush.msra.mxu0 0.0
        %421 = vmatpush.msra.mxu0 0.0
        %422 = vmatpush.msra.mxu0 0.0
        %423 = vmatpush.msra.mxu0 0.0
        %424 = vmatpush.msra.mxu0 0.0
        %425 = vmatpush.msra.mxu0 0.0
        %426 = vmatpush.msra.mxu0 %v406
        %427 = vmatmul.f32.gmra.mxu0 %v409
        %v428 = vpop.f32.mrf.mxu0
        %v429 = vadd.f32 0.0, %v428
        %430 = vdwg.mxu0
        %431 = vrot.lane.b32.xlu0 %v232, 104
        %v432 = vpop.permute.xlu0 %431
        %433 = vrot.lane.b32.xlu0 %v232, 72
        %v434 = vpop.permute.xlu0 %433
        %v435 = vsel %vm236, %v432, 0
        %v437 = vsel %vm236, %v434, 0
        %439 = vmatpush.xpose.msra.mxu0 0.0
        %440 = vmatpush.xpose.msra.mxu0 0.0
        %441 = vmatpush.xpose.msra.mxu0 0.0
        %442 = vmatpush.xpose.msra.mxu0 0.0
        %443 = vmatpush.xpose.msra.mxu0 0.0
        %444 = vmatpush.xpose.msra.mxu0 0.0
        %445 = vmatpush.xpose.msra.mxu0 0.0
        %446 = vmatpush.xpose.msra.mxu0 0.0
        %447 = vmatpush.xpose.msra.mxu0 0.0
        %448 = vmatpush.xpose.msra.mxu0 0.0
        %449 = vmatpush.xpose.msra.mxu0 0.0
        %450 = vmatpush.xpose.msra.mxu0 0.0
        %451 = vmatpush.xpose.msra.mxu0 0.0
        %452 = vmatpush.xpose.msra.mxu0 0.0
        %453 = vmatpush.xpose.msra.mxu0 0.0
        %454 = vmatpush.xpose.msra.mxu0 %v437
        %455 = vmatmul.f32.gmra.mxu0 %v435
        %v456 = vpop.f32.mrf.mxu0
        %v457 = vadd.f32 0.0, %v456
        %458 = vdwg.mxu0
        %v459 = vsel %vm231, %v457, -1e+30
        %v460 = vsel %vm236, %v459, -inf
        %461 = vmax.xlane.f32.xlu0 %v460
        %v462 = vpop.xlane.xlu0 %461
        %v463 = vsub.f32 %v459, %v462
        %v464 = vmul.f32 %v463, 1.442695
        %v465 = vpow.pop %v464
        %v466 = vsel %vm236, %v465, 0.0
        %467 = vadd.xlane.f32.xlu0 %v466
        %v468 = vpop.xlane.xlu0 %467
        %v469 = vrcp.pop %v468
        %v470 = vmul.f32 %v465, %v469
        %471 = vrot.lane.b32.xlu0 %v232, 40
        %v472 = vpop.permute.xlu0 %471
        %v475 = vsel %vm236, %v470, 0
        %477 = vmatpush.msra.mxu0 0.0
        %478 = vmatpush.msra.mxu0 0.0
        %479 = vmatpush.msra.mxu0 0.0
        %480 = vmatpush.msra.mxu0 0.0
        %481 = vmatpush.msra.mxu0 0.0
        %482 = vmatpush.msra.mxu0 0.0
        %483 = vmatpush.msra.mxu0 0.0
        %484 = vmatpush.msra.mxu0 0.0
        %485 = vmatpush.msra.mxu0 0.0
        %486 = vmatpush.msra.mxu0 0.0
        %487 = vmatpush.msra.mxu0 0.0
        %488 = vmatpush.msra.mxu0 0.0
        %489 = vmatpush.msra.mxu0 0.0
        %490 = vmatpush.msra.mxu0 0.0
        %491 = vmatpush.msra.mxu0 0.0
        %492 = vmatpush.msra.mxu0 %v472
        %493 = vmatmul.f32.gmra.mxu0 %v475
        %v494 = vpop.f32.mrf.mxu0
        %v495 = vadd.f32 0.0, %v494
        %496 = vdwg.mxu0
        %498 = vrot.lane.b32.xlu0 %v363, 8
        %v499 = vpop.permute.xlu0 %498
        %502 = vrot.lane.b32.xlu0 %v429, 16
        %v503 = vpop.permute.xlu0 %502
        %506 = vrot.lane.b32.xlu0 %v495, 24
        %v507 = vpop.permute.xlu0 %506
        %v509 = vsel %vm236, %v297, %v499
        %vm510 = vcmask 130048
        %v511 = vsel %vm510, %v509, %v503
        %vm512 = vcmask 195584
        %v513 = vsel %vm512, %v511, %v507
        %v514 = vld [vmem:[#allocation2] sm:$0xff]
        %v515 = vld [vmem:[#allocation2 + $0x8] sm:$0xff]
        %v516 = vld [vmem:[#allocation2 + $0x10] sm:$0xff]
        %v517 = vld [vmem:[#allocation2 + $0x18] sm:$0xff]
        %v518 = vld [vmem:[%s2] sm:$0x1]
        %v520 = vperm.slane %v518, 0
        %vm522 = vcmask 261120
        %v524 = vsel %vm522, %v513, 0
        %526 = vmatpush.msra.mxu0 0.0
        %527 = vmatpush.msra.mxu0 0.0
        %528 = vmatpush.msra.mxu0 0.0
        %529 = vmatpush.msra.mxu0 0.0
        %530 = vmatpush.msra.mxu0 0.0
        %531 = vmatpush.msra.mxu0 0.0
        %532 = vmatpush.msra.mxu0 0.0
        %533 = vmatpush.msra.mxu0 0.0
        %534 = vmatpush.msra.mxu0 0.0
        %535 = vmatpush.msra.mxu0 0.0
        %536 = vmatpush.msra.mxu0 0.0
        %537 = vmatpush.msra.mxu0 0.0
        %538 = vmatpush.msra.mxu0 %v517
        %539 = vmatpush.msra.mxu0 %v516
        %540 = vmatpush.msra.mxu0 %v515
        %541 = vmatpush.msra.mxu0 %v514
        %542 = vmatmul.f32.gmra.mxu0 %v524
        %v543 = vpop.f32.mrf.mxu0
        %v544 = vadd.f32 %v520, %v543
        %545 = vdwg.mxu0
        %v546 = vld [vmem:[%s222] sm:$0xff]
        %v547 = vadd.f32 %v544, %v546
        %548 = vst.msk [vmem:[%s226] sm:$0xff] %vm522, %v547
        %p549 = scmp.lt.s32.totalorder %s16, 1
        %s550 = scalar_select %p549, %s16, 1
        %s551 = smul.addr %s550, 8
        %s552 = scalar_lea.vmem %s4, %s551
        // Predicated region
        $region41: #{text_encoder_forward.10} parent=35 // pred_check
          %p553 = pneg %p128
        $region42: #{text_encoder_forward.10} parent=35 // pred_check_branch
          %555 = sbr.rel (%p553) target = $region44
        $region43: #{text_encoder_forward.10} parent=35 // pred_region
          _
        $region44: #{text_encoder_forward.10} parent=35 // pred_fallthru
          _
      $region36: #{text_encoder_forward.10} parent=5 // pred_fallthru
        _
      %p556 = scmp.le.s32.totalorder 2, %s11
      // Predicated region
      $region45: #{text_encoder_forward.10} parent=5 // pred_check
        %p557 = pneg %p556
      $region46: #{text_encoder_forward.10} parent=5 // pred_check_branch
        %559 = sbr.rel (%p557) target = $region48
      $region47: #{text_encoder_forward.10} parent=5 // pred_region
        %s560 = ssub.s32 %s11, 2
        // Predicated region
        $region49: #{text_encoder_forward.10} parent=47 // pred_check
          %p561 = pneg %p134
        $region50: #{text_encoder_forward.10} parent=47 // pred_check_branch
          %563 = sbr.rel (%p561) target = $region52
        $region51: #{text_encoder_forward.10} parent=47 // pred_region
          %p564 = scmp.lt.s32.totalorder %s17, 1
          %s565 = scalar_select %p564, %s17, 1
          %s566 = smul.addr %s565, 8
          %s567 = scalar_lea.vmem %s4, %s566
        $region52: #{text_encoder_forward.10} parent=47 // pred_fallthru
          _
      $region48: #{text_encoder_forward.10} parent=5 // pred_fallthru
        _
    $region6: #{text_encoder_forward.10} parent=1 // loop_footer
      %s15 = sadd.s32 1, %s11
    $region7: #{text_encoder_forward.10} parent=1 // loop_footer_branch
      %10 = sbr.rel target = $region3
    $region8: #{text_encoder_forward.10} parent=1 // loop_exit
      _
    %568 = vsyncpa [#allocation3], 1
    %s569 = scalar_lea.sflag [#allocation3], 1
    %570 = vsyncpa %s569, 1

// kernel: text_encoder_forward.12
$region0: #{text_encoder_forward.12}
  #allocation0 [shape = 'u32[]', space=smem, size = 0x4, offset = 0x4, fixed_abs, tag = 'smem constant byte address 0x4 - core index']
  #allocation1 [shape = 'u32[72,128]{1,0:T(1,128)}', space=vmem, size = 0x9000, scoped, tag = 'internal scratch']
  %s0 = inlined_call_operand.vmem [shape: f32[16,128], index: 0, kind: input, shape index: {}]
  %s1 = inlined_call_operand.vmem [shape: f32[128,32], index: 1, kind: input, shape index: {}]
  %s2 = inlined_call_operand.vmem [shape: f32[1,32], index: 2, kind: input, shape index: {}]
  %s3 = inlined_call_operand.vmem [shape: f32[16,32], index: 3, kind: input, shape index: {}, may-alias: {3,4}]
  %s4 = inlined_call_operand.vmem [shape: f32[16,32], index: 4, kind: output, shape index: {}, may-alias: {3,4}]
  %s5 = sld [smem:[#allocation0]]
  $region26: #{text_encoder_forward.12} parent=0
    _
  %s7 = ssub.s32 1, %s5
  %s8 = scalar_select 0, %s7, %s5
  // Predicated region
  $region2: #{text_encoder_forward.12} parent=0 // pred_check
    _
  $region3: #{text_encoder_forward.12} parent=0 // pred_check_branch
    %10 = sbr.rel (0) target = $region5
  $region4: #{text_encoder_forward.12} parent=0 // pred_region
    _
  $region5: #{text_encoder_forward.12} parent=0 // pred_fallthru
    _
  // Predicated region
  $region6: #{text_encoder_forward.12} parent=0 // pred_check
    _
  $region7: #{text_encoder_forward.12} parent=0 // pred_check_branch
    %12 = sbr.rel (0) target = $region9
  $region8: #{text_encoder_forward.12} parent=0 // pred_region
    _
  $region9: #{text_encoder_forward.12} parent=0 // pred_fallthru
    _
  // Predicated region
  $region10: #{text_encoder_forward.12} parent=0 // pred_check
    _
  $region11: #{text_encoder_forward.12} parent=0 // pred_check_branch
    %14 = sbr.rel (0) target = $region13
  $region12: #{text_encoder_forward.12} parent=0 // pred_region
    _
  $region13: #{text_encoder_forward.12} parent=0 // pred_fallthru
    _
  // Predicated region
  $region14: #{text_encoder_forward.12} parent=0 // pred_check
    _
  $region15: #{text_encoder_forward.12} parent=0 // pred_check_branch
    %16 = sbr.rel (0) target = $region17
  $region16: #{text_encoder_forward.12} parent=0 // pred_region
    _
  $region17: #{text_encoder_forward.12} parent=0 // pred_fallthru
    _
  %v17 = vld [vmem:[%s0] sm:$0xff]
  %v18 = vld [vmem:[%s0 + $0x8] sm:$0xff]
  %v19 = vld [vmem:[%s1] sm:$0xff]
  %v20 = vld [vmem:[%s1 + $0x8] sm:$0xff]
  %v21 = vld [vmem:[%s1 + $0x10] sm:$0xff]
  %v22 = vld [vmem:[%s1 + $0x18] sm:$0xff]
  %v23 = vld [vmem:[%s1 + $0x20] sm:$0xff]
  %v24 = vld [vmem:[%s1 + $0x28] sm:$0xff]
  %v25 = vld [vmem:[%s1 + $0x30] sm:$0xff]
  %v26 = vld [vmem:[%s1 + $0x38] sm:$0xff]
  %v27 = vld [vmem:[%s1 + $0x40] sm:$0xff]
  %v28 = vld [vmem:[%s1 + $0x48] sm:$0xff]
  %v29 = vld [vmem:[%s1 + $0x50] sm:$0xff]
  %v30 = vld [vmem:[%s1 + $0x58] sm:$0xff]
  %v31 = vld [vmem:[%s1 + $0x60] sm:$0xff]
  %v32 = vld [vmem:[%s1 + $0x68] sm:$0xff]
  %v33 = vld [vmem:[%s1 + $0x70] sm:$0xff]
  %v34 = vld [vmem:[%s1 + $0x78] sm:$0xff]
  %v35 = vld [vmem:[%s2] sm:$0x1]
  %v37 = vperm.slane %v35, 0
  %39 = vmatpush.msra.mxu0 %v34
  %40 = vmatpush.msra.mxu0 %v33
  %41 = vmatpush.msra.mxu0 %v32
  %42 = vmatpush.msra.mxu0 %v31
  %43 = vmatpush.msra.mxu0 %v30
  %44 = vmatpush.msra.mxu0 %v29
  %45 = vmatpush.msra.mxu0 %v28
  %46 = vmatpush.msra.mxu0 %v27
  %47 = vmatpush.msra.mxu0 %v26
  %48 = vmatpush.msra.mxu0 %v25
  %49 = vmatpush.msra.mxu0 %v24
  %50 = vmatpush.msra.mxu0 %v23
  %51 = vmatpush.msra.mxu0 %v22
  %52 = vmatpush.msra.mxu0 %v21
  %53 = vmatpush.msra.mxu0 %v20
  %54 = vmatpush.msra.mxu0 %v19
  %55 = vmatmul.f32.gmra.mxu0 %v17
  %v56 = vpop.f32.mrf.mxu0
  %v57 = vadd.f32 %v37, %v56
  %58 = vmatmul.f32.gmra.mxu0 %v18
  %v59 = vpop.f32.mrf.mxu0
  %v60 = vadd.f32 %v37, %v59
  %61 = vdwg.mxu0
  %v62 = vld [vmem:[%s3] sm:$0xff]
  %v63 = vld [vmem:[%s3 + $0x8] sm:$0xff]
  %v64 = vadd.f32 %v57, %v62
  %v65 = vadd.f32 %v60, %v63
  %vm66 = vcmask 261120
  %67 = vst.msk [vmem:[%s4] sm:$0xff] %vm66, %v64
  %68 = vst.msk [vmem:[%s4 + $0x8] sm:$0xff] %vm66, %v65
  // Predicated region
  $region18: #{text_encoder_forward.12} parent=0 // pred_check
    _
  $region19: #{text_encoder_forward.12} parent=0 // pred_check_branch
    %70 = sbr.rel (0) target = $region21
  $region20: #{text_encoder_forward.12} parent=0 // pred_region
    _
  $region21: #{text_encoder_forward.12} parent=0 // pred_fallthru
    _
  // Predicated region
  $region22: #{text_encoder_forward.12} parent=0 // pred_check
    _
  $region23: #{text_encoder_forward.12} parent=0 // pred_check_branch
    %72 = sbr.rel (0) target = $region25
  $region24: #{text_encoder_forward.12} parent=0 // pred_region
    _
  $region25: #{text_encoder_forward.12} parent=0 // pred_fallthru
    _

// kernel: text_encoder_forward.11
$region0: #{text_encoder_forward.11}
  #allocation0 [shape = 'u32[]', space=smem, size = 0x4, offset = 0x4, fixed_abs, tag = 'smem constant byte address 0x4 - core index']
  #allocation1 [shape = 'u32[72,128]{1,0:T(1,128)}', space=vmem, size = 0x9000, scoped, tag = 'internal scratch']
  #allocation2 [shape = 'f32[16,32]{1,0:T(8,128)}', space=vmem, size = 0x2000, scoped, tag = 'scratch operand']
  %s0 = inlined_call_operand.vmem [shape: f32[16,32], index: 0, kind: input, shape index: {}]
  %s1 = inlined_call_operand.vmem [shape: f32[1,32], index: 1, kind: input, shape index: {}]
  %s2 = inlined_call_operand.vmem [shape: f32[1,32], index: 2, kind: input, shape index: {}]
  %s3 = inlined_call_operand.hbm [shape: f32[32,128], index: 3, kind: input, shape index: {}]
  %s4 = inlined_call_operand.vmem [shape: f32[1,128], index: 4, kind: input, shape index: {}]
  %s5 = inlined_call_operand.vmem [shape: f32[16,128], index: 5, kind: output, shape index: {}]
  %s6 = sld [smem:[#allocation0]]
  $region38: #{text_encoder_forward.11} parent=0
    _
  %s8 = ssub.s32 1, %s6
  %s9 = scalar_select 0, %s8, %s6
  $region1: #{text_encoder_forward.11} parent=0
    #allocation3 [shape = 'u8[16384]{0}', space=vmem, size = 0x4000, scoped, tag = 'input window, operand 3, single buffered']
    #allocation4 [shape = 's32[1]{0}', space=sflag, size = 0x4, scoped, tag = 'scoped memory for text_encoder_forward.11']
    %10 = vsyncpa [#allocation4], 0
    // Predicated region
    $region2: #{text_encoder_forward.11} parent=1 // pred_check
      _
    $region3: #{text_encoder_forward.11} parent=1 // pred_check_branch
      %12 = sbr.rel (0) target = $region5
    $region4: #{text_encoder_forward.11} parent=1 // pred_region
      _
    $region5: #{text_encoder_forward.11} parent=1 // pred_fallthru
      _
    // Predicated region
    $region6: #{text_encoder_forward.11} parent=1 // pred_check
      _
    $region7: #{text_encoder_forward.11} parent=1 // pred_check_branch
      %14 = sbr.rel (0) target = $region9
    $region8: #{text_encoder_forward.11} parent=1 // pred_region
      _
    $region9: #{text_encoder_forward.11} parent=1 // pred_fallthru
      _
    // Predicated region
    $region10: #{text_encoder_forward.11} parent=1 // pred_check
      _
    $region11: #{text_encoder_forward.11} parent=1 // pred_check_branch
      %16 = sbr.rel (0) target = $region13
    $region12: #{text_encoder_forward.11} parent=1 // pred_region
      _
    $region13: #{text_encoder_forward.11} parent=1 // pred_fallthru
      _
    // Predicated region
    $region14: #{text_encoder_forward.11} parent=1 // pred_check
      _
    $region15: #{text_encoder_forward.11} parent=1 // pred_check_branch
      %18 = sbr.rel (0) target = $region17
    $region16: #{text_encoder_forward.11} parent=1 // pred_region
      %20 = vsyncadd [#allocation4], 0
      %s21 = sshll.u32 %s3, 4
      %s22 = int_to_ptr.hbm [resolvable:$true] %s21
      %s23 = sshll.u32 [#allocation3], 4
      %s24 = int_to_ptr.vmem [resolvable:$true] %s23
      %29 = dma.hbm_to_vmem [thread:$0]  %s22, 512, %s24, [#allocation4], 128, 128, 8
    $region17: #{text_encoder_forward.11} parent=1 // pred_fallthru
      _
    // Predicated region
    $region18: #{text_encoder_forward.11} parent=1 // pred_check
      _
    $region19: #{text_encoder_forward.11} parent=1 // pred_check_branch
      %31 = sbr.rel (0) target = $region21
    $region20: #{text_encoder_forward.11} parent=1 // pred_region
      _
    $region21: #{text_encoder_forward.11} parent=1 // pred_fallthru
      _
    // Predicated region
    $region22: #{text_encoder_forward.11} parent=1 // pred_check
      _
    $region23: #{text_encoder_forward.11} parent=1 // pred_check_branch
      %33 = sbr.rel (0) target = $region25
    $region24: #{text_encoder_forward.11} parent=1 // pred_region
      %35 = dma.done [#allocation4], 512
    $region25: #{text_encoder_forward.11} parent=1 // pred_fallthru
      _
    %p36 = scmp.eq.s32.totalorder 0, 0
    // Predicated region
    $region26: #{text_encoder_forward.11} parent=1 // pred_check
      %p37 = pneg %p36
    $region27: #{text_encoder_forward.11} parent=1 // pred_check_branch
      %39 = sbr.rel (%p37) target = $region29
    $region28: #{text_encoder_forward.11} parent=1 // pred_region
      %v40 = vld [vmem:[%s0] sm:$0xff]
      %v41 = vld [vmem:[%s0 + $0x8] sm:$0xff]
      %vm42 = vcmask 261120
      %v43 = vsel %vm42, %v40, 0.0
      %44 = vadd.xlane.f32.xlu0 %v43
      %v45 = vpop.xlane.xlu0 %44
      %v46 = vsel %vm42, %v41, 0.0
      %47 = vadd.xlane.f32.xlu0 %v46
      %v48 = vpop.xlane.xlu0 %47
      %v49 = vrcp.pop 32.0
      %v50 = vmul.f32 32.0, %v49
      %v51 = vsub.f32 1.0, %v50
      %v52 = vmul.f32 %v49, %v51
      %v53 = vadd.f32 %v49, %v52
      %vm54 = vweird.f32 %v49
      %v55 = vsel %vm54, %v49, %v53
      %v56 = vmul.f32 %v45, %v55
      %v57 = vmul.f32 %v48, %v55
      %v58 = vsub.f32 %v40, %v56
      %v59 = vsub.f32 %v41, %v57
      %v60 = vmul.f32 %v58, %v58
      %v61 = vmul.f32 %v59, %v59
      %v62 = vsel %vm42, %v60, 0.0
      %63 = vadd.xlane.f32.xlu0 %v62
      %v64 = vpop.xlane.xlu0 %63
      %v65 = vsel %vm42, %v61, 0.0
      %66 = vadd.xlane.f32.xlu0 %v65
      %v67 = vpop.xlane.xlu0 %66
      %v68 = vmul.f32 %v64, %v55
      %v69 = vmul.f32 %v67, %v55
      %v70 = vadd.f32 %v68, 1e-05
      %v71 = vadd.f32 %v69, 1e-05
      %v72 = vrsqrt.pop %v70
      %v73 = vmul.f32 %v72, %v70
      %v74 = vmul.f32 %v73, %v72
      %v75 = vmul.f32 0.5, %v74
      %v76 = vsub.f32 1.5, %v75
      %v77 = vmul.f32 %v72, %v76
      %vm78 = vweird.f32 %v70
      %vm79 = vweird.f32 %v72
      %vm80 = vmor %vm78, %vm79
      %v81 = vsel %vm80, %v72, %v77
      %v82 = vrsqrt.pop %v71
      %v83 = vmul.f32 %v82, %v71
      %v84 = vmul.f32 %v83, %v82
      %v85 = vmul.f32 0.5, %v84
      %v86 = vsub.f32 1.5, %v85
      %v87 = vmul.f32 %v82, %v86
      %vm88 = vweird.f32 %v71
      %vm89 = vweird.f32 %v82
      %vm90 = vmor %vm88, %vm89
      %v91 = vsel %vm90, %v82, %v87
      %v92 = vmul.f32 %v58, %v81
      %v93 = vmul.f32 %v59, %v91
      %v94 = vld [vmem:[%s1] sm:$0x1]
      %v96 = vperm.slane %v94, 0
      %v98 = vmul.f32 %v92, %v96
      %v99 = vmul.f32 %v93, %v96
      %v100 = vld [vmem:[%s2] sm:$0x1]
      %v102 = vperm.slane %v100, 0
      %v104 = vadd.f32 %v98, %v102
      %v105 = vadd.f32 %v99, %v102
      %106 = vst.msk [vmem:[#allocation2] sm:$0xff] %vm42, %v104
      %107 = vst.msk [vmem:[#allocation2 + $0x8] sm:$0xff] %vm42, %v105
    $region29: #{text_encoder_forward.11} parent=1 // pred_fallthru
      _
    %v108 = vld [vmem:[#allocation2] sm:$0xff]
    %v109 = vld [vmem:[#allocation2 + $0x8] sm:$0xff]
    %v110 = vld [vmem:[#allocation3] sm:$0xff]
    %v111 = vld [vmem:[#allocation3 + $0x8] sm:$0xff]
    %v112 = vld [vmem:[#allocation3 + $0x10] sm:$0xff]
    %v113 = vld [vmem:[#allocation3 + $0x18] sm:$0xff]
    %v114 = vld [vmem:[%s4] sm:$0x1]
    %v116 = vperm.slane %v114, 0
    %vm118 = vcmask 261120
    %v120 = vsel %vm118, %v108, 0
    %v123 = vsel %vm118, %v109, 0
    %125 = vmatpush.msra.mxu0 0.0
    %126 = vmatpush.msra.mxu0 0.0
    %127 = vmatpush.msra.mxu0 0.0
    %128 = vmatpush.msra.mxu0 0.0
    %129 = vmatpush.msra.mxu0 0.0
    %130 = vmatpush.msra.mxu0 0.0
    %131 = vmatpush.msra.mxu0 0.0
    %132 = vmatpush.msra.mxu0 0.0
    %133 = vmatpush.msra.mxu0 0.0
    %134 = vmatpush.msra.mxu0 0.0
    %135 = vmatpush.msra.mxu0 0.0
    %136 = vmatpush.msra.mxu0 0.0
    %137 = vmatpush.msra.mxu0 %v113
    %138 = vmatpush.msra.mxu0 %v112
    %139 = vmatpush.msra.mxu0 %v111
    %140 = vmatpush.msra.mxu0 %v110
    %141 = vmatmul.f32.gmra.mxu0 %v120
    %v142 = vpop.f32.mrf.mxu0
    %v143 = vadd.f32 %v116, %v142
    %144 = vmatmul.f32.gmra.mxu0 %v123
    %v145 = vpop.f32.mrf.mxu0
    %v146 = vadd.f32 %v116, %v145
    %147 = vdwg.mxu0
    %v148 = vmul.f32 %v143, 1.702
    %v149 = vmul.f32 %v146, 1.702
    %v150 = vxor.u32 %v148, 2147483648
    %v151 = vxor.u32 %v149, 2147483648
    %v152 = vmul.f32 %v150, 1.442695
    %v153 = vpow.pop %v152
    %v154 = vmul.f32 %v151, 1.442695
    %v155 = vpow.pop %v154
    %v156 = vadd.f32 %v153, 1.0
    %v157 = vadd.f32 %v155, 1.0
    %v158 = vrcp.pop %v156
    %v159 = vmul.f32 %v156, %v158
    %v160 = vsub.f32 1.0, %v159
    %v161 = vmul.f32 %v158, %v160
    %v162 = vadd.f32 %v158, %v161
    %vm163 = vweird.f32 %v156
    %vm164 = vweird.f32 %v158
    %vm165 = vmor %vm163, %vm164
    %v166 = vsel %vm165, %v158, %v162
    %v167 = vand.u32 2147483647, %v156
    %vm168 = vcmp.eq.f32.partialorder %v167, 8.507059e+37
    %v169 = vand.u32 %v156, 2147483648
    %v170 = vor.u32 1.1754944e-38, %v169
    %v171 = vsel %vm168, %v170, %v166
    %v172 = vmul.f32 1.0, %v171
    %v173 = vrcp.pop %v157
    %v174 = vmul.f32 %v157, %v173
    %v175 = vsub.f32 1.0, %v174
    %v176 = vmul.f32 %v173, %v175
    %v177 = vadd.f32 %v173, %v176
    %vm178 = vweird.f32 %v157
    %vm179 = vweird.f32 %v173
    %vm180 = vmor %vm178, %vm179
    %v181 = vsel %vm180, %v173, %v177
    %v182 = vand.u32 2147483647, %v157
    %vm183 = vcmp.eq.f32.partialorder %v182, 8.507059e+37
    %v184 = vand.u32 %v157, 2147483648
    %v185 = vor.u32 1.1754944e-38, %v184
    %v186 = vsel %vm183, %v185, %v181
    %v187 = vmul.f32 1.0, %v186
    %v188 = vmul.f32 %v143, %v172
    %v189 = vmul.f32 %v146, %v187
    %190 = vst [vmem:[%s5] sm:$0xff] %v188
    %191 = vst [vmem:[%s5 + $0x8] sm:$0xff] %v189
    // Predicated region
    $region30: #{text_encoder_forward.11} parent=1 // pred_check
      _
    $region31: #{text_encoder_forward.11} parent=1 // pred_check_branch
      %193 = sbr.rel (0) target = $region33
    $region32: #{text_encoder_forward.11} parent=1 // pred_region
      _
    $region33: #{text_encoder_forward.11} parent=1 // pred_fallthru
      _
    // Predicated region
    $region34: #{text_encoder_forward.11} parent=1 // pred_check
      _
    $region35: #{text_encoder_forward.11} parent=1 // pred_check_branch
      %195 = sbr.rel (0) target = $region37
    $region36: #{text_encoder_forward.11} parent=1 // pred_region
      _
    $region37: #{text_encoder_forward.11} parent=1 // pred_fallthru
      _
    %196 = vsyncpa [#allocation4], 1

// kernel: text_encoder_forward.15
$region0: #{text_encoder_forward.15}
  #allocation0 [shape = 'u32[]', space=smem, size = 0x4, offset = 0x4, fixed_abs, tag = 'smem constant byte address 0x4 - core index']
  #allocation1 [shape = 'u32[72,128]{1,0:T(1,128)}', space=vmem, size = 0x9000, scoped, tag = 'internal scratch']
  #allocation2 [shape = 'f32[16,32]{1,0:T(8,128)}', space=vmem, size = 0x2000, scoped, tag = 'scratch operand']
  %s0 = inlined_call_operand.vmem [shape: f32[16,32], index: 0, kind: input, shape index: {}]
  %s1 = inlined_call_operand.vmem [shape: f32[1,32], index: 1, kind: input, shape index: {}]
  %s2 = inlined_call_operand.vmem [shape: f32[1,32], index: 2, kind: input, shape index: {}]
  %s3 = inlined_call_operand.vmem [shape: f32[32,128], index: 3, kind: input, shape index: {}]
  %s4 = inlined_call_operand.vmem [shape: f32[1,128], index: 4, kind: input, shape index: {}]
  %s5 = inlined_call_operand.vmem [shape: f32[16,128], index: 5, kind: output, shape index: {}]
  %s6 = sld [smem:[#allocation0]]
  $region34: #{text_encoder_forward.15} parent=0
    _
  %s8 = ssub.s32 1, %s6
  %s9 = scalar_select 0, %s8, %s6
  // Predicated region
  $region2: #{text_encoder_forward.15} parent=0 // pred_check
    _
  $region3: #{text_encoder_forward.15} parent=0 // pred_check_branch
    %11 = sbr.rel (0) target = $region5
  $region4: #{text_encoder_forward.15} parent=0 // pred_region
    _
  $region5: #{text_encoder_forward.15} parent=0 // pred_fallthru
    _
  // Predicated region
  $region6: #{text_encoder_forward.15} parent=0 // pred_check
    _
  $region7: #{text_encoder_forward.15} parent=0 // pred_check_branch
    %13 = sbr.rel (0) target = $region9
  $region8: #{text_encoder_forward.15} parent=0 // pred_region
    _
  $region9: #{text_encoder_forward.15} parent=0 // pred_fallthru
    _
  // Predicated region
  $region10: #{text_encoder_forward.15} parent=0 // pred_check
    _
  $region11: #{text_encoder_forward.15} parent=0 // pred_check_branch
    %15 = sbr.rel (0) target = $region13
  $region12: #{text_encoder_forward.15} parent=0 // pred_region
    _
  $region13: #{text_encoder_forward.15} parent=0 // pred_fallthru
    _
  // Predicated region
  $region14: #{text_encoder_forward.15} parent=0 // pred_check
    _
  $region15: #{text_encoder_forward.15} parent=0 // pred_check_branch
    %17 = sbr.rel (0) target = $region17
  $region16: #{text_encoder_forward.15} parent=0 // pred_region
    _
  $region17: #{text_encoder_forward.15} parent=0 // pred_fallthru
    _
  // Predicated region
  $region18: #{text_encoder_forward.15} parent=0 // pred_check
    _
  $region19: #{text_encoder_forward.15} parent=0 // pred_check_branch
    %19 = sbr.rel (0) target = $region21
  $region20: #{text_encoder_forward.15} parent=0 // pred_region
    _
  $region21: #{text_encoder_forward.15} parent=0 // pred_fallthru
    _
  %p20 = scmp.eq.s32.totalorder 0, 0
  // Predicated region
  $region22: #{text_encoder_forward.15} parent=0 // pred_check
    %p21 = pneg %p20
  $region23: #{text_encoder_forward.15} parent=0 // pred_check_branch
    %23 = sbr.rel (%p21) target = $region25
  $region24: #{text_encoder_forward.15} parent=0 // pred_region
    %v24 = vld [vmem:[%s0] sm:$0xff]
    %v25 = vld [vmem:[%s0 + $0x8] sm:$0xff]
    %vm26 = vcmask 261120
    %v27 = vsel %vm26, %v24, 0.0
    %28 = vadd.xlane.f32.xlu0 %v27
    %v29 = vpop.xlane.xlu0 %28
    %v30 = vsel %vm26, %v25, 0.0
    %31 = vadd.xlane.f32.xlu0 %v30
    %v32 = vpop.xlane.xlu0 %31
    %v33 = vrcp.pop 32.0
    %v34 = vmul.f32 32.0, %v33
    %v35 = vsub.f32 1.0, %v34
    %v36 = vmul.f32 %v33, %v35
    %v37 = vadd.f32 %v33, %v36
    %vm38 = vweird.f32 %v33
    %v39 = vsel %vm38, %v33, %v37
    %v40 = vmul.f32 %v29, %v39
    %v41 = vmul.f32 %v32, %v39
    %v42 = vsub.f32 %v24, %v40
    %v43 = vsub.f32 %v25, %v41
    %v44 = vmul.f32 %v42, %v42
    %v45 = vmul.f32 %v43, %v43
    %v46 = vsel %vm26, %v44, 0.0
    %47 = vadd.xlane.f32.xlu0 %v46
    %v48 = vpop.xlane.xlu0 %47
    %v49 = vsel %vm26, %v45, 0.0
    %50 = vadd.xlane.f32.xlu0 %v49
    %v51 = vpop.xlane.xlu0 %50
    %v52 = vmul.f32 %v48, %v39
    %v53 = vmul.f32 %v51, %v39
    %v54 = vadd.f32 %v52, 1e-05
    %v55 = vadd.f32 %v53, 1e-05
    %v56 = vrsqrt.pop %v54
    %v57 = vmul.f32 %v56, %v54
    %v58 = vmul.f32 %v57, %v56
    %v59 = vmul.f32 0.5, %v58
    %v60 = vsub.f32 1.5, %v59
    %v61 = vmul.f32 %v56, %v60
    %vm62 = vweird.f32 %v54
    %vm63 = vweird.f32 %v56
    %vm64 = vmor %vm62, %vm63
    %v65 = vsel %vm64, %v56, %v61
    %v66 = vrsqrt.pop %v55
    %v67 = vmul.f32 %v66, %v55
    %v68 = vmul.f32 %v67, %v66
    %v69 = vmul.f32 0.5, %v68
    %v70 = vsub.f32 1.5, %v69
    %v71 = vmul.f32 %v66, %v70
    %vm72 = vweird.f32 %v55
    %vm73 = vweird.f32 %v66
    %vm74 = vmor %vm72, %vm73
    %v75 = vsel %vm74, %v66, %v71
    %v76 = vmul.f32 %v42, %v65
    %v77 = vmul.f32 %v43, %v75
    %v78 = vld [vmem:[%s1] sm:$0x1]
    %v80 = vperm.slane %v78, 0
    %v82 = vmul.f32 %v76, %v80
    %v83 = vmul.f32 %v77, %v80
    %v84 = vld [vmem:[%s2] sm:$0x1]
    %v86 = vperm.slane %v84, 0
    %v88 = vadd.f32 %v82, %v86
    %v89 = vadd.f32 %v83, %v86
    %90 = vst.msk [vmem:[#allocation2] sm:$0xff] %vm26, %v88
    %91 = vst.msk [vmem:[#allocation2 + $0x8] sm:$0xff] %vm26, %v89
  $region25: #{text_encoder_forward.15} parent=0 // pred_fallthru
    _
  %v92 = vld [vmem:[#allocation2] sm:$0xff]
  %v93 = vld [vmem:[#allocation2 + $0x8] sm:$0xff]
  %v94 = vld [vmem:[%s3] sm:$0xff]
  %v95 = vld [vmem:[%s3 + $0x8] sm:$0xff]
  %v96 = vld [vmem:[%s3 + $0x10] sm:$0xff]
  %v97 = vld [vmem:[%s3 + $0x18] sm:$0xff]
  %v98 = vld [vmem:[%s4] sm:$0x1]
  %v100 = vperm.slane %v98, 0
  %vm102 = vcmask 261120
  %v104 = vsel %vm102, %v92, 0
  %v107 = vsel %vm102, %v93, 0
  %109 = vmatpush.msra.mxu0 0.0
  %110 = vmatpush.msra.mxu0 0.0
  %111 = vmatpush.msra.mxu0 0.0
  %112 = vmatpush.msra.mxu0 0.0
  %113 = vmatpush.msra.mxu0 0.0
  %114 = vmatpush.msra.mxu0 0.0
  %115 = vmatpush.msra.mxu0 0.0
  %116 = vmatpush.msra.mxu0 0.0
  %117 = vmatpush.msra.mxu0 0.0
  %118 = vmatpush.msra.mxu0 0.0
  %119 = vmatpush.msra.mxu0 0.0
  %120 = vmatpush.msra.mxu0 0.0
  %121 = vmatpush.msra.mxu0 %v97
  %122 = vmatpush.msra.mxu0 %v96
  %123 = vmatpush.msra.mxu0 %v95
  %124 = vmatpush.msra.mxu0 %v94
  %125 = vmatmul.f32.gmra.mxu0 %v104
  %v126 = vpop.f32.mrf.mxu0
  %v127 = vadd.f32 %v100, %v126
  %128 = vmatmul.f32.gmra.mxu0 %v107
  %v129 = vpop.f32.mrf.mxu0
  %v130 = vadd.f32 %v100, %v129
  %131 = vdwg.mxu0
  %v132 = vmul.f32 %v127, 1.702
  %v133 = vmul.f32 %v130, 1.702
  %v134 = vxor.u32 %v132, 2147483648
  %v135 = vxor.u32 %v133, 2147483648
  %v136 = vmul.f32 %v134, 1.442695
  %v137 = vpow.pop %v136
  %v138 = vmul.f32 %v135, 1.442695
  %v139 = vpow.pop %v138
  %v140 = vadd.f32 %v137, 1.0
  %v141 = vadd.f32 %v139, 1.0
  %v142 = vrcp.pop %v140
  %v143 = vmul.f32 %v140, %v142
  %v144 = vsub.f32 1.0, %v143
  %v145 = vmul.f32 %v142, %v144
  %v146 = vadd.f32 %v142, %v145
  %vm147 = vweird.f32 %v140
  %vm148 = vweird.f32 %v142
  %vm149 = vmor %vm147, %vm148
  %v150 = vsel %vm149, %v142, %v146
  %v151 = vand.u32 2147483647, %v140
  %vm152 = vcmp.eq.f32.partialorder %v151, 8.507059e+37
  %v153 = vand.u32 %v140, 2147483648
  %v154 = vor.u32 1.1754944e-38, %v153
  %v155 = vsel %vm152, %v154, %v150
  %v156 = vmul.f32 1.0, %v155
  %v157 = vrcp.pop %v141
  %v158 = vmul.f32 %v141, %v157
  %v159 = vsub.f32 1.0, %v158
  %v160 = vmul.f32 %v157, %v159
  %v161 = vadd.f32 %v157, %v160
  %vm162 = vweird.f32 %v141
  %vm163 = vweird.f32 %v157
  %vm164 = vmor %vm162, %vm163
  %v165 = vsel %vm164, %v157, %v161
  %v166 = vand.u32 2147483647, %v141
  %vm167 = vcmp.eq.f32.partialorder %v166, 8.507059e+37
  %v168 = vand.u32 %v141, 2147483648
  %v169 = vor.u32 1.1754944e-38, %v168
  %v170 = vsel %vm167, %v169, %v165
  %v171 = vmul.f32 1.0, %v170
  %v172 = vmul.f32 %v127, %v156
  %v173 = vmul.f32 %v130, %v171
  %174 = vst [vmem:[%s5] sm:$0xff] %v172
  %175 = vst [vmem:[%s5 + $0x8] sm:$0xff] %v173
  // Predicated region
  $region26: #{text_encoder_forward.15} parent=0 // pred_check
    _
  $region27: #{text_encoder_forward.15} parent=0 // pred_check_branch
    %177 = sbr.rel (0) target = $region29
  $region28: #{text_encoder_forward.15} parent=0 // pred_region
    _
  $region29: #{text_encoder_forward.15} parent=0 // pred_fallthru
    _
  // Predicated region
  $region30: #{text_encoder_forward.15} parent=0 // pred_check
    _
  $region31: #{text_encoder_forward.15} parent=0 // pred_check_branch
    %179 = sbr.rel (0) target = $region33
  $region32: #{text_encoder_forward.15} parent=0 // pred_region
    _
  $region33: #{text_encoder_forward.15} parent=0 // pred_fallthru
    _

// kernel: text_encoder_forward.14
$region0: #{text_encoder_forward.14}
  #allocation0 [shape = 'u32[]', space=smem, size = 0x4, offset = 0x4, fixed_abs, tag = 'smem constant byte address 0x4 - core index']
  #allocation1 [shape = 'u32[72,128]{1,0:T(1,128)}', space=vmem, size = 0x9000, scoped, tag = 'internal scratch']
  %s0 = inlined_call_operand.vmem [shape: f32[2,8,96], index: 0, kind: input, shape index: {}]
  %s1 = inlined_call_operand.vmem [shape: f32[32,32], index: 1, kind: input, shape index: {}]
  %s2 = inlined_call_operand.vmem [shape: f32[1,32], index: 2, kind: input, shape index: {}]
  %s3 = inlined_call_operand.vmem [shape: f32[2,8,32], index: 3, kind: input, shape index: {}, may-alias: {3,4}]
  %s4 = inlined_call_operand.vmem [shape: f32[2,8,32], index: 4, kind: output, shape index: {}, may-alias: {3,4}]
  %s5 = sld [smem:[#allocation0]]
  $region49: #{text_encoder_forward.14} parent=0
    _
  %s7 = ssub.s32 1, %s5
  %s8 = scalar_select 0, %s7, %s5
  loop: start=0, step=1, limit=4
  $region2: #{text_encoder_forward.14} parent=0 // loop_pre_header
    _
  $region3: #{text_encoder_forward.14} parent=0 // loop_header
    %s10 = sphi 0, %s14
    %p11 = scmp.ge.s32.totalorder %s10, 4
    %s20 = sphi 0, %s22
    %s23 = sphi 0, %s20
    %s24 = sphi 0, %s23
    %s40 = sphi 0, %s24
    %s44 = sphi 0, %s44
    %s46 = sphi 0, %s44
    %s47 = sphi 0, %s46
    %s61 = sphi 0, %s47
    %s65 = sphi 0, %s65
    %s67 = sphi 0, %s65
    %s68 = sphi 0, %s67
    %s82 = sphi 0, %s68
    %s88 = sphi 0, %s90
    %s91 = sphi 0, %s88
    %s92 = sphi 0, %s91
    %s108 = sphi 0, %s92
    %s114 = sphi 0, %s116
    %s117 = sphi 0, %s114
    %s118 = sphi 0, %s117
    %s134 = sphi 0, %s118
  $region4: #{text_encoder_forward.14} parent=0 // loop_header_branch
    %13 = sbr.rel (%p11) target = $region8
  $region5: #{text_encoder_forward.14} parent=0 // loop_body
    %s15 = ssub.s32 %s10, 1
    %s16 = ssub.s32 %s10, 2
    %s17 = sadd.s32 %s10, 1
    %s18 = ssub.s32 %s10, %s17
    %p19 = scmp.eq.s32.totalorder %s18, 0
    %s21 = sadd.s32 %s20, 1
    %s22 = scalar_select %p19, %s20, %s21
    %p25 = pneg %p19
    %p26 = scmp.eq.s32.totalorder %s10, 1
    %p27 = por %p25, %p26
    %p28 = scmp.ne.s32.totalorder %s20, %s23
    %p29 = scmp.eq.s32.totalorder %s10, 0
    %p30 = por %p28, %p29
    %p31 = scmp.ne.s32.totalorder %s20, %s23
    %p32 = scmp.eq.s32.totalorder %s15, 1
    %p33 = por %p31, %p32
    %p34 = scmp.ne.s32.totalorder %s23, %s24
    %p35 = scmp.eq.s32.totalorder %s15, 0
    %p36 = por %p34, %p35
    %p37 = scmp.ne.s32.totalorder %s23, %s24
    %p38 = scmp.eq.s32.totalorder %s16, 1
    %p39 = por %p37, %p38
    %p41 = scmp.ne.s32.totalorder %s24, %s40
    %p42 = scmp.eq.s32.totalorder %s16, 0
    %p43 = por %p41, %p42
    %s45 = sadd.s32 %s44, 1
    %p48 = scmp.eq.s32.totalorder %s10, 1
    %p49 = scmp.ne.s32.totalorder %s44, %s46
    %p50 = scmp.eq.s32.totalorder %s10, 0
    %p51 = por %p49, %p50
    %p52 = scmp.ne.s32.totalorder %s44, %s46
    %p53 = scmp.eq.s32.totalorder %s15, 1
    %p54 = por %p52, %p53
    %p55 = scmp.ne.s32.totalorder %s46, %s47
    %p56 = scmp.eq.s32.totalorder %s15, 0
    %p57 = por %p55, %p56
    %p58 = scmp.ne.s32.totalorder %s46, %s47
    %p59 = scmp.eq.s32.totalorder %s16, 1
    %p60 = por %p58, %p59
    %p62 = scmp.ne.s32.totalorder %s47, %s61
    %p63 = scmp.eq.s32.totalorder %s16, 0
    %p64 = por %p62, %p63
    %s66 = sadd.s32 %s65, 1
    %p69 = scmp.eq.s32.totalorder %s10, 1
    %p70 = scmp.ne.s32.totalorder %s65, %s67
    %p71 = scmp.eq.s32.totalorder %s10, 0
    %p72 = por %p70, %p71
    %p73 = scmp.ne.s32.totalorder %s65, %s67
    %p74 = scmp.eq.s32.totalorder %s15, 1
    %p75 = por %p73, %p74
    %p76 = scmp.ne.s32.totalorder %s67, %s68
    %p77 = scmp.eq.s32.totalorder %s15, 0
    %p78 = por %p76, %p77
    %p79 = scmp.ne.s32.totalorder %s67, %s68
    %p80 = scmp.eq.s32.totalorder %s16, 1
    %p81 = por %p79, %p80
    %p83 = scmp.ne.s32.totalorder %s68, %s82
    %p84 = scmp.eq.s32.totalorder %s16, 0
    %p85 = por %p83, %p84
    %s86 = ssub.s32 %s10, %s17
    %p87 = scmp.eq.s32.totalorder %s86, 0
    %s89 = sadd.s32 %s88, 1
    %s90 = scalar_select %p87, %s88, %s89
    %p93 = pneg %p87
    %p94 = scmp.eq.s32.totalorder %s10, 1
    %p95 = por %p93, %p94
    %p96 = scmp.ne.s32.totalorder %s88, %s91
    %p97 = scmp.eq.s32.totalorder %s10, 0
    %p98 = por %p96, %p97
    %p99 = scmp.ne.s32.totalorder %s88, %s91
    %p100 = scmp.eq.s32.totalorder %s15, 1
    %p101 = por %p99, %p100
    %p102 = scmp.ne.s32.totalorder %s91, %s92
    %p103 = scmp.eq.s32.totalorder %s15, 0
    %p104 = por %p102, %p103
    %p105 = scmp.ne.s32.totalorder %s91, %s92
    %p106 = scmp.eq.s32.totalorder %s16, 1
    %p107 = por %p105, %p106
    %p109 = scmp.ne.s32.totalorder %s92, %s108
    %p110 = scmp.eq.s32.totalorder %s16, 0
    %p111 = por %p109, %p110
    %s112 = ssub.s32 %s10, %s17
    %p113 = scmp.eq.s32.totalorder %s112, 0
    %s115 = sadd.s32 %s114, 1
    %s116 = scalar_select %p113, %s114, %s115
    %p119 = pneg %p113
    %p120 = scmp.eq.s32.totalorder %s10, 1
    %p121 = por %p119, %p120
    %p122 = scmp.ne.s32.totalorder %s114, %s117
    %p123 = scmp.eq.s32.totalorder %s10, 0
    %p124 = por %p122, %p123
    %p125 = scmp.ne.s32.totalorder %s114, %s117
    %p126 = scmp.eq.s32.totalorder %s15, 1
    %p127 = por %p125, %p126
    %p128 = scmp.ne.s32.totalorder %s117, %s118
    %p129 = scmp.eq.s32.totalorder %s15, 0
    %p130 = por %p128, %p129
    %p131 = scmp.ne.s32.totalorder %s117, %s118
    %p132 = scmp.eq.s32.totalorder %s16, 1
    %p133 = por %p131, %p132
    %p135 = scmp.ne.s32.totalorder %s118, %s134
    %p136 = scmp.eq.s32.totalorder %s16, 0
    %p137 = por %p135, %p136
    %p138 = scmp.le.s32.totalorder 1, %s10
    %p139 = scmp.lt.s32.totalorder %s10, 3
    %p140 = pnand %p138, %p139
    %p141 = pneg %p140
    // Predicated region
    $region9: #{text_encoder_forward.14} parent=5 // pred_check
      _
    $region10: #{text_encoder_forward.14} parent=5 // pred_check_branch
      %143 = sbr.rel (%p140) target = $region12
    $region11: #{text_encoder_forward.14} parent=5 // pred_region
      %s144 = ssub.s32 %s10, 1
      // Predicated region
      $region13: #{text_encoder_forward.14} parent=11 // pred_check
        %p145 = pneg %p57
      $region14: #{text_encoder_forward.14} parent=11 // pred_check_branch
        %147 = sbr.rel (%p145) target = $region16
      $region15: #{text_encoder_forward.14} parent=11 // pred_region
        _
      $region16: #{text_encoder_forward.14} parent=11 // pred_fallthru
        _
      // Predicated region
      $region17: #{text_encoder_forward.14} parent=11 // pred_check
        %p148 = pneg %p78
      $region18: #{text_encoder_forward.14} parent=11 // pred_check_branch
        %150 = sbr.rel (%p148) target = $region20
      $region19: #{text_encoder_forward.14} parent=11 // pred_region
        _
      $region20: #{text_encoder_forward.14} parent=11 // pred_fallthru
        _
    $region12: #{text_encoder_forward.14} parent=5 // pred_fallthru
      _
    %p151 = scmp.lt.s32.totalorder %s10, 2
    // Predicated region
    $region21: #{text_encoder_forward.14} parent=5 // pred_check
      %p152 = pneg %p151
    $region22: #{text_encoder_forward.14} parent=5 // pred_check_branch
      %154 = sbr.rel (%p152) target = $region24
    $region23: #{text_encoder_forward.14} parent=5 // pred_region
      // Predicated region
      $region25: #{text_encoder_forward.14} parent=23 // pred_check
        %p155 = pneg %p30
      $region26: #{text_encoder_forward.14} parent=23 // pred_check_branch
        %157 = sbr.rel (%p155) target = $region28
      $region27: #{text_encoder_forward.14} parent=23 // pred_region
        %p158 = scmp.lt.s32.totalorder %s10, 1
        %s159 = scalar_select %p158, %s10, 1
        %s160 = smul.addr %s159, 8
        %s161 = scalar_lea.vmem %s0, %s160
      $region28: #{text_encoder_forward.14} parent=23 // pred_fallthru
        _
      // Predicated region
      $region29: #{text_encoder_forward.14} parent=23 // pred_check
        %p162 = pneg %p98
      $region30: #{text_encoder_forward.14} parent=23 // pred_check_branch
        %164 = sbr.rel (%p162) target = $region32
      $region31: #{text_encoder_forward.14} parent=23 // pred_region
        %p165 = scmp.lt.s32.totalorder %s10, 1
        %s166 = scalar_select %p165, %s10, 1
        %s167 = smul.addr %s166, 8
        %s168 = scalar_lea.vmem %s3, %s167
      $region32: #{text_encoder_forward.14} parent=23 // pred_fallthru
        _
    $region24: #{text_encoder_forward.14} parent=5 // pred_fallthru
      _
    %p169 = scmp.le.s32.totalorder 1, %s10
    %p170 = scmp.lt.s32.totalorder %s10, 3
    %p171 = pnand %p169, %p170
    %p172 = pneg %p171
    // Predicated region
    $region33: #{text_encoder_forward.14} parent=5 // pred_check
      _
    $region34: #{text_encoder_forward.14} parent=5 // pred_check_branch
      %174 = sbr.rel (%p171) target = $region36
    $region35: #{text_encoder_forward.14} parent=5 // pred_region
      %s175 = ssub.s32 %s10, 1
      %p176 = scmp.lt.s32.totalorder %s15, 1
      %s177 = scalar_select %p176, %s15, 1
      %s178 = smul.addr %s177, 8
      %s179 = scalar_lea.vmem %s0, %s178
      %p180 = pneg %p36
      %p181 = pneg %p33
      %p182 = pneg %p57
      %p183 = pneg %p54
      %p184 = pneg %p78
      %p185 = pneg %p75
      %p186 = scmp.lt.s32.totalorder %s15, 1
      %s187 = scalar_select %p186, %s15, 1
      %s188 = smul.addr %s187, 8
      %s189 = scalar_lea.vmem %s3, %s188
      %p190 = pneg %p104
      %p191 = pneg %p101
      %p192 = pneg %p130
      %p193 = pneg %p127
      %p194 = scmp.lt.s32.totalorder %s15, 1
      %s195 = scalar_select %p194, %s15, 1
      %s196 = smul.addr %s195, 8
      %s197 = scalar_lea.vmem %s4, %s196
      %p198 = scmp.lt.s32.totalorder %s15, 1
      %s199 = scalar_select %p198, %s15, 1
      %s200 = smul.addr %s199, 8
      %s201 = scalar_lea.vmem %s0, %s200
      %p202 = scmp.lt.s32.totalorder %s15, 1
      %s203 = scalar_select %p202, %s15, 1
      %s204 = smul.addr %s203, 8
      %s205 = scalar_lea.vmem %s3, %s204
      %p206 = scmp.lt.s32.totalorder %s15, 1
      %s207 = scalar_select %p206, %s15, 1
      %s208 = smul.addr %s207, 8
      %s209 = scalar_lea.vmem %s4, %s208
      %v210 = vlaneseq
      %v211 = vshrl.u32 %v210, 7
      %v212 = vlaneseq
      %v213 = vand.u32 %v212, 127
      %vm214 = vcmp.le.s32.totalorder %v213, %v211
      %v215 = vld [vmem:[%s201] sm:$0xff]
      %217 = vrot.lane.b32.xlu0 %v215, 96
      %v218 = vpop.permute.xlu0 %217
      %vm219 = vcmask 64512
      %v220 = vsel %vm219, %v215, 0
      %v222 = vsel %vm219, %v218, 0
      %224 = vmatpush.xpose.msra.mxu0 0.0
      %225 = vmatpush.xpose.msra.mxu0 0.0
      %226 = vmatpush.xpose.msra.mxu0 0.0
      %227 = vmatpush.xpose.msra.mxu0 0.0
      %228 = vmatpush.xpose.msra.mxu0 0.0
      %229 = vmatpush.xpose.msra.mxu0 0.0
      %230 = vmatpush.xpose.msra.mxu0 0.0
      %231 = vmatpush.xpose.msra.mxu0 0.0
      %232 = vmatpush.xpose.msra.mxu0 0.0
      %233 = vmatpush.xpose.msra.mxu0 0.0
      %234 = vmatpush.xpose.msra.mxu0 0.0
      %235 = vmatpush.xpose.msra.mxu0 0.0
      %236 = vmatpush.xpose.msra.mxu0 0.0
      %237 = vmatpush.xpose.msra.mxu0 0.0
      %238 = vmatpush.xpose.msra.mxu0 0.0
      %239 = vmatpush.xpose.msra.mxu0 %v222
      %240 = vmatmul.f32.gmra.mxu0 %v220
      %v241 = vpop.f32.mrf.mxu0
      %v242 = vadd.f32 0.0, %v241
      %243 = vdwg.mxu0
      %v244 = vsel %vm214, %v242, -1e+30
      %v245 = vsel %vm219, %v244, -inf
      %246 = vmax.xlane.f32.xlu0 %v245
      %v247 = vpop.xlane.xlu0 %246
      %v248 = vsub.f32 %v244, %v247
      %v249 = vmul.f32 %v248, 1.442695
      %v250 = vpow.pop %v249
      %v251 = vsel %vm219, %v250, 0.0
      %252 = vadd.xlane.f32.xlu0 %v251
      %v253 = vpop.xlane.xlu0 %252
      %v254 = vrcp.pop %v253
      %v255 = vmul.f32 %v250, %v254
      %256 = vrot.lane.b32.xlu0 %v215, 64
      %v257 = vpop.permute.xlu0 %256
      %v260 = vsel %vm219, %v255, 0
      %262 = vmatpush.msra.mxu0 0.0
      %263 = vmatpush.msra.mxu0 0.0
      %264 = vmatpush.msra.mxu0 0.0
      %265 = vmatpush.msra.mxu0 0.0
      %266 = vmatpush.msra.mxu0 0.0
      %267 = vmatpush.msra.mxu0 0.0
      %268 = vmatpush.msra.mxu0 0.0
      %269 = vmatpush.msra.mxu0 0.0
      %270 = vmatpush.msra.mxu0 0.0
      %271 = vmatpush.msra.mxu0 0.0
      %272 = vmatpush.msra.mxu0 0.0
      %273 = vmatpush.msra.mxu0 0.0
      %274 = vmatpush.msra.mxu0 0.0
      %275 = vmatpush.msra.mxu0 0.0
      %276 = vmatpush.msra.mxu0 0.0
      %277 = vmatpush.msra.mxu0 %v257
      %278 = vmatmul.f32.gmra.mxu0 %v260
      %v279 = vpop.f32.mrf.mxu0
      %v280 = vadd.f32 0.0, %v279
      %281 = vdwg.mxu0
      %282 = vrot.lane.b32.xlu0 %v215, 120
      %v283 = vpop.permute.xlu0 %282
      %284 = vrot.lane.b32.xlu0 %v215, 88
      %v285 = vpop.permute.xlu0 %284
      %v286 = vsel %vm219, %v283, 0
      %v288 = vsel %vm219, %v285, 0
      %290 = vmatpush.xpose.msra.mxu0 0.0
      %291 = vmatpush.xpose.msra.mxu0 0.0
      %292 = vmatpush.xpose.msra.mxu0 0.0
      %293 = vmatpush.xpose.msra.mxu0 0.0
      %294 = vmatpush.xpose.msra.mxu0 0.0
      %295 = vmatpush.xpose.msra.mxu0 0.0
      %296 = vmatpush.xpose.msra.mxu0 0.0
      %297 = vmatpush.xpose.msra.mxu0 0.0
      %298 = vmatpush.xpose.msra.mxu0 0.0
      %299 = vmatpush.xpose.msra.mxu0 0.0
      %300 = vmatpush.xpose.msra.mxu0 0.0
      %301 = vmatpush.xpose.msra.mxu0 0.0
      %302 = vmatpush.xpose.msra.mxu0 0.0
      %303 = vmatpush.xpose.msra.mxu0 0.0
      %304 = vmatpush.xpose.msra.mxu0 0.0
      %305 = vmatpush.xpose.msra.mxu0 %v288
      %306 = vmatmul.f32.gmra.mxu0 %v286
      %v307 = vpop.f32.mrf.mxu0
      %v308 = vadd.f32 0.0, %v307
      %309 = vdwg.mxu0
      %v310 = vsel %vm214, %v308, -1e+30
      %v311 = vsel %vm219, %v310, -inf
      %312 = vmax.xlane.f32.xlu0 %v311
      %v313 = vpop.xlane.xlu0 %312
      %v314 = vsub.f32 %v310, %v313
      %v315 = vmul.f32 %v314, 1.442695
      %v316 = vpow.pop %v315
      %v317 = vsel %vm219, %v316, 0.0
      %318 = vadd.xlane.f32.xlu0 %v317
      %v319 = vpop.xlane.xlu0 %318
      %v320 = vrcp.pop %v319
      %v321 = vmul.f32 %v316, %v320
      %322 = vrot.lane.b32.xlu0 %v215, 56
      %v323 = vpop.permute.xlu0 %322
      %v326 = vsel %vm219, %v321, 0
      %328 = vmatpush.msra.mxu0 0.0
      %329 = vmatpush.msra.mxu0 0.0
      %330 = vmatpush.msra.mxu0 0.0
      %331 = vmatpush.msra.mxu0 0.0
      %332 = vmatpush.msra.mxu0 0.0
      %333 = vmatpush.msra.mxu0 0.0
      %334 = vmatpush.msra.mxu0 0.0
      %335 = vmatpush.msra.mxu0 0.0
      %336 = vmatpush.msra.mxu0 0.0
      %337 = vmatpush.msra.mxu0 0.0
      %338 = vmatpush.msra.mxu0 0.0
      %339 = vmatpush.msra.mxu0 0.0
      %340 = vmatpush.msra.mxu0 0.0
      %341 = vmatpush.msra.mxu0 0.0
      %342 = vmatpush.msra.mxu0 0.0
      %343 = vmatpush.msra.mxu0 %v323
      %344 = vmatmul.f32.gmra.mxu0 %v326
      %v345 = vpop.f32.mrf.mxu0
      %v346 = vadd.f32 0.0, %v345
      %347 = vdwg.mxu0
      %348 = vrot.lane.b32.xlu0 %v215, 112
      %v349 = vpop.permute.xlu0 %348
      %350 = vrot.lane.b32.xlu0 %v215, 80
      %v351 = vpop.permute.xlu0 %350
      %v352 = vsel %vm219, %v349, 0
      %v354 = vsel %vm219, %v351, 0
      %356 = vmatpush.xpose.msra.mxu0 0.0
      %357 = vmatpush.xpose.msra.mxu0 0.0
      %358 = vmatpush.xpose.msra.mxu0 0.0
      %359 = vmatpush.xpose.msra.mxu0 0.0
      %360 = vmatpush.xpose.msra.mxu0 0.0
      %361 = vmatpush.xpose.msra.mxu0 0.0
      %362 = vmatpush.xpose.msra.mxu0 0.0
      %363 = vmatpush.xpose.msra.mxu0 0.0
      %364 = vmatpush.xpose.msra.mxu0 0.0
      %365 = vmatpush.xpose.msra.mxu0 0.0
      %366 = vmatpush.xpose.msra.mxu0 0.0
      %367 = vmatpush.xpose.msra.mxu0 0.0
      %368 = vmatpush.xpose.msra.mxu0 0.0
      %369 = vmatpush.xpose.msra.mxu0 0.0
      %370 = vmatpush.xpose.msra.mxu0 0.0
      %371 = vmatpush.xpose.msra.mxu0 %v354
      %372 = vmatmul.f32.gmra.mxu0 %v352
      %v373 = vpop.f32.mrf.mxu0
      %v374 = vadd.f32 0.0, %v373
      %375 = vdwg.mxu0
      %v376 = vsel %vm214, %v374, -1e+30
      %v377 = vsel %vm219, %v376, -inf
      %378 = vmax.xlane.f32.xlu0 %v377
      %v379 = vpop.xlane.xlu0 %378
      %v380 = vsub.f32 %v376, %v379
      %v381 = vmul.f32 %v380, 1.442695
      %v382 = vpow.pop %v381
      %v383 = vsel %vm219, %v382, 0.0
      %384 = vadd.xlane.f32.xlu0 %v383
      %v385 = vpop.xlane.xlu0 %384
      %v386 = vrcp.pop %v385
      %v387 = vmul.f32 %v382, %v386
      %388 = vrot.lane.b32.xlu0 %v215, 48
      %v389 = vpop.permute.xlu0 %388
      %v392 = vsel %vm219, %v387, 0
      %394 = vmatpush.msra.mxu0 0.0
      %395 = vmatpush.msra.mxu0 0.0
      %396 = vmatpush.msra.mxu0 0.0
      %397 = vmatpush.msra.mxu0 0.0
      %398 = vmatpush.msra.mxu0 0.0
      %399 = vmatpush.msra.mxu0 0.0
      %400 = vmatpush.msra.mxu0 0.0
      %401 = vmatpush.msra.mxu0 0.0
      %402 = vmatpush.msra.mxu0 0.0
      %403 = vmatpush.msra.mxu0 0.0
      %404 = vmatpush.msra.mxu0 0.0
      %405 = vmatpush.msra.mxu0 0.0
      %406 = vmatpush.msra.mxu0 0.0
      %407 = vmatpush.msra.mxu0 0.0
      %408 = vmatpush.msra.mxu0 0.0
      %409 = vmatpush.msra.mxu0 %v389
      %410 = vmatmul.f32.gmra.mxu0 %v392
      %v411 = vpop.f32.mrf.mxu0
      %v412 = vadd.f32 0.0, %v411
      %413 = vdwg.mxu0
      %414 = vrot.lane.b32.xlu0 %v215, 104
      %v415 = vpop.permute.xlu0 %414
      %416 = vrot.lane.b32.xlu0 %v215, 72
      %v417 = vpop.permute.xlu0 %416
      %v418 = vsel %vm219, %v415, 0
      %v420 = vsel %vm219, %v417, 0
      %422 = vmatpush.xpose.msra.mxu0 0.0
      %423 = vmatpush.xpose.msra.mxu0 0.0
      %424 = vmatpush.xpose.msra.mxu0 0.0
      %425 = vmatpush.xpose.msra.mxu0 0.0
      %426 = vmatpush.xpose.msra.mxu0 0.0
      %427 = vmatpush.xpose.msra.mxu0 0.0
      %428 = vmatpush.xpose.msra.mxu0 0.0
      %429 = vmatpush.xpose.msra.mxu0 0.0
      %430 = vmatpush.xpose.msra.mxu0 0.0
      %431 = vmatpush.xpose.msra.mxu0 0.0
      %432 = vmatpush.xpose.msra.mxu0 0.0
      %433 = vmatpush.xpose.msra.mxu0 0.0
      %434 = vmatpush.xpose.msra.mxu0 0.0
      %435 = vmatpush.xpose.msra.mxu0 0.0
      %436 = vmatpush.xpose.msra.mxu0 0.0
      %437 = vmatpush.xpose.msra.mxu0 %v420
      %438 = vmatmul.f32.gmra.mxu0 %v418
      %v439 = vpop.f32.mrf.mxu0
      %v440 = vadd.f32 0.0, %v439
      %441 = vdwg.mxu0
      %v442 = vsel %vm214, %v440, -1e+30
      %v443 = vsel %vm219, %v442, -inf
      %444 = vmax.xlane.f32.xlu0 %v443
      %v445 = vpop.xlane.xlu0 %444
      %v446 = vsub.f32 %v442, %v445
      %v447 = vmul.f32 %v446, 1.442695
      %v448 = vpow.pop %v447
      %v449 = vsel %vm219, %v448, 0.0
      %450 = vadd.xlane.f32.xlu0 %v449
      %v451 = vpop.xlane.xlu0 %450
      %v452 = vrcp.pop %v451
      %v453 = vmul.f32 %v448, %v452
      %454 = vrot.lane.b32.xlu0 %v215, 40
      %v455 = vpop.permute.xlu0 %454
      %v458 = vsel %vm219, %v453, 0
      %460 = vmatpush.msra.mxu0 0.0
      %461 = vmatpush.msra.mxu0 0.0
      %462 = vmatpush.msra.mxu0 0.0
      %463 = vmatpush.msra.mxu0 0.0
      %464 = vmatpush.msra.mxu0 0.0
      %465 = vmatpush.msra.mxu0 0.0
      %466 = vmatpush.msra.mxu0 0.0
      %467 = vmatpush.msra.mxu0 0.0
      %468 = vmatpush.msra.mxu0 0.0
      %469 = vmatpush.msra.mxu0 0.0
      %470 = vmatpush.msra.mxu0 0.0
      %471 = vmatpush.msra.mxu0 0.0
      %472 = vmatpush.msra.mxu0 0.0
      %473 = vmatpush.msra.mxu0 0.0
      %474 = vmatpush.msra.mxu0 0.0
      %475 = vmatpush.msra.mxu0 %v455
      %476 = vmatmul.f32.gmra.mxu0 %v458
      %v477 = vpop.f32.mrf.mxu0
      %v478 = vadd.f32 0.0, %v477
      %479 = vdwg.mxu0
      %481 = vrot.lane.b32.xlu0 %v346, 8
      %v482 = vpop.permute.xlu0 %481
      %485 = vrot.lane.b32.xlu0 %v412, 16
      %v486 = vpop.permute.xlu0 %485
      %489 = vrot.lane.b32.xlu0 %v478, 24
      %v490 = vpop.permute.xlu0 %489
      %v492 = vsel %vm219, %v280, %v482
      %vm493 = vcmask 130048
      %v494 = vsel %vm493, %v492, %v486
      %vm495 = vcmask 195584
      %v496 = vsel %vm495, %v494, %v490
      %v497 = vld [vmem:[%s1] sm:$0xff]
      %v498 = vld [vmem:[%s1 + $0x8] sm:$0xff]
      %v499 = vld [vmem:[%s1 + $0x10] sm:$0xff]
      %v500 = vld [vmem:[%s1 + $0x18] sm:$0xff]
      %v501 = vld [vmem:[%s2] sm:$0x1]
      %v503 = vperm.slane %v501, 0
      %vm505 = vcmask 261120
      %v507 = vsel %vm505, %v496, 0
      %509 = vmatpush.msra.mxu0 0.0
      %510 = vmatpush.msra.mxu0 0.0
      %511 = vmatpush.msra.mxu0 0.0
      %512 = vmatpush.msra.mxu0 0.0
      %513 = vmatpush.msra.mxu0 0.0
      %514 = vmatpush.msra.mxu0 0.0
      %515 = vmatpush.msra.mxu0 0.0
      %516 = vmatpush.msra.mxu0 0.0
      %517 = vmatpush.msra.mxu0 0.0
      %518 = vmatpush.msra.mxu0 0.0
      %519 = vmatpush.msra.mxu0 0.0
      %520 = vmatpush.msra.mxu0 0.0
      %521 = vmatpush.msra.mxu0 %v500
      %522 = vmatpush.msra.mxu0 %v499
      %523 = vmatpush.msra.mxu0 %v498
      %524 = vmatpush.msra.mxu0 %v497
      %525 = vmatmul.f32.gmra.mxu0 %v507
      %v526 = vpop.f32.mrf.mxu0
      %v527 = vadd.f32 %v503, %v526
      %528 = vdwg.mxu0
      %v529 = vld [vmem:[%s205] sm:$0xff]
      %v530 = vadd.f32 %v527, %v529
      %531 = vst.msk [vmem:[%s209] sm:$0xff] %vm505, %v530
      %p532 = scmp.lt.s32.totalorder %s15, 1
      %s533 = scalar_select %p532, %s15, 1
      %s534 = smul.addr %s533, 8
      %s535 = scalar_lea.vmem %s4, %s534
      // Predicated region
      $region37: #{text_encoder_forward.14} parent=35 // pred_check
        %p536 = pneg %p127
      $region38: #{text_encoder_forward.14} parent=35 // pred_check_branch
        %538 = sbr.rel (%p536) target = $region40
      $region39: #{text_encoder_forward.14} parent=35 // pred_region
        _
      $region40: #{text_encoder_forward.14} parent=35 // pred_fallthru
        _
    $region36: #{text_encoder_forward.14} parent=5 // pred_fallthru
      _
    %p539 = scmp.le.s32.totalorder 2, %s10
    // Predicated region
    $region41: #{text_encoder_forward.14} parent=5 // pred_check
      %p540 = pneg %p539
    $region42: #{text_encoder_forward.14} parent=5 // pred_check_branch
      %542 = sbr.rel (%p540) target = $region44
    $region43: #{text_encoder_forward.14} parent=5 // pred_region
      %s543 = ssub.s32 %s10, 2
      // Predicated region
      $region45: #{text_encoder_forward.14} parent=43 // pred_check
        %p544 = pneg %p133
      $region46: #{text_encoder_forward.14} parent=43 // pred_check_branch
        %546 = sbr.rel (%p544) target = $region48
      $region47: #{text_encoder_forward.14} parent=43 // pred_region
        %p547 = scmp.lt.s32.totalorder %s16, 1
        %s548 = scalar_select %p547, %s16, 1
        %s549 = smul.addr %s548, 8
        %s550 = scalar_lea.vmem %s4, %s549
      $region48: #{text_encoder_forward.14} parent=43 // pred_fallthru
        _
    $region44: #{text_encoder_forward.14} parent=5 // pred_fallthru
      _
  $region6: #{text_encoder_forward.14} parent=0 // loop_footer
    %s14 = sadd.s32 1, %s10
  $region7: #{text_encoder_forward.14} parent=0 // loop_footer_branch
    %9 = sbr.rel target = $region3
  $region8: #{text_encoder_forward.14} parent=0 // loop_exit
    _

// kernel: text_encoder_forward.17
$region0: #{text_encoder_forward.17}
  #allocation0 [shape = 'u32[]', space=smem, size = 0x4, offset = 0x4, fixed_abs, tag = 'smem constant byte address 0x4 - core index']
  #allocation1 [shape = 'u32[72,128]{1,0:T(1,128)}', space=vmem, size = 0x9000, scoped, tag = 'internal scratch']
  %s0 = inlined_call_operand.vmem [shape: f32[2,32], index: 0, kind: input, shape index: {}]
  %s1 = inlined_call_operand.vmem [shape: f32[1,32], index: 1, kind: input, shape index: {}]
  %s2 = inlined_call_operand.vmem [shape: f32[1,32], index: 2, kind: input, shape index: {}]
  %s3 = inlined_call_operand.vmem [shape: f32[32,32], index: 3, kind: input, shape index: {}]
  %s4 = inlined_call_operand.hbm [shape: f32[2,32], index: 4, kind: output, shape index: {}]
  %s5 = sld [smem:[#allocation0]]
  $region26: #{text_encoder_forward.17} parent=0
    _
  %s7 = ssub.s32 1, %s5
  %s8 = scalar_select 0, %s7, %s5
  $region1: #{text_encoder_forward.17} parent=0
    #allocation2 [shape = 'u8[1024]{0}', space=vmem, size = 0x400, scoped, tag = 'output window, operand 0, single buffered']
    #allocation3 [shape = 's32[1]{0}', space=sflag, size = 0x4, scoped, tag = 'scoped memory for text_encoder_forward.17']
    %9 = vsyncpa [#allocation3], 0
    // Predicated region
    $region2: #{text_encoder_forward.17} parent=1 // pred_check
      _
    $region3: #{text_encoder_forward.17} parent=1 // pred_check_branch
      %11 = sbr.rel (0) target = $region5
    $region4: #{text_encoder_forward.17} parent=1 // pred_region
      _
    $region5: #{text_encoder_forward.17} parent=1 // pred_fallthru
      _
    // Predicated region
    $region6: #{text_encoder_forward.17} parent=1 // pred_check
      _
    $region7: #{text_encoder_forward.17} parent=1 // pred_check_branch
      %13 = sbr.rel (0) target = $region9
    $region8: #{text_encoder_forward.17} parent=1 // pred_region
      _
    $region9: #{text_encoder_forward.17} parent=1 // pred_fallthru
      _
    // Predicated region
    $region10: #{text_encoder_forward.17} parent=1 // pred_check
      _
    $region11: #{text_encoder_forward.17} parent=1 // pred_check_branch
      %15 = sbr.rel (0) target = $region13
    $region12: #{text_encoder_forward.17} parent=1 // pred_region
      _
    $region13: #{text_encoder_forward.17} parent=1 // pred_fallthru
      _
    // Predicated region
    $region14: #{text_encoder_forward.17} parent=1 // pred_check
      _
    $region15: #{text_encoder_forward.17} parent=1 // pred_check_branch
      %17 = sbr.rel (0) target = $region17
    $region16: #{text_encoder_forward.17} parent=1 // pred_region
      _
    $region17: #{text_encoder_forward.17} parent=1 // pred_fallthru
      _
    %v18 = vld [vmem:[%s0] sm:$0x3]
    %vm19 = vcmask 254976
    %v20 = vsel %vm19, %v18, 0.0
    %21 = vadd.xlane.f32.xlu0 %v20
    %v22 = vpop.xlane.xlu0 %21
    %v23 = vrcp.pop 32.0
    %v24 = vmul.f32 32.0, %v23
    %v25 = vsub.f32 1.0, %v24
    %v26 = vmul.f32 %v23, %v25
    %v27 = vadd.f32 %v23, %v26
    %vm28 = vweird.f32 %v23
    %v29 = vsel %vm28, %v23, %v27
    %v30 = vmul.f32 %v22, %v29
    %v31 = vsub.f32 %v18, %v30
    %v32 = vmul.f32 %v31, %v31
    %v33 = vsel %vm19, %v32, 0.0
    %34 = vadd.xlane.f32.xlu0 %v33
    %v35 = vpop.xlane.xlu0 %34
    %v36 = vmul.f32 %v35, %v29
    %v37 = vadd.f32 %v36, 1e-05
    %v38 = vrsqrt.pop %v37
    %v39 = vmul.f32 %v38, %v37
    %v40 = vmul.f32 %v39, %v38
    %v41 = vmul.f32 0.5, %v40
    %v42 = vsub.f32 1.5, %v41
    %v43 = vmul.f32 %v38, %v42
    %vm44 = vweird.f32 %v37
    %vm45 = vweird.f32 %v38
    %vm46 = vmor %vm44, %vm45
    %v47 = vsel %vm46, %v38, %v43
    %v48 = vmul.f32 %v31, %v47
    %v49 = vld [vmem:[%s1] sm:$0x1]
    %v51 = vperm.slane %v49, 0
    %v53 = vmul.f32 %v48, %v51
    %v54 = vld [vmem:[%s2] sm:$0x1]
    %v56 = vperm.slane %v54, 0
    %v58 = vadd.f32 %v53, %v56
    %v59 = vld [vmem:[%s3] sm:$0xff]
    %v60 = vld [vmem:[%s3 + $0x8] sm:$0xff]
    %v61 = vld [vmem:[%s3 + $0x10] sm:$0xff]
    %v62 = vld [vmem:[%s3 + $0x18] sm:$0xff]
    %vm63 = vcmask 261120
    %v65 = vsel %vm63, %v58, 0
    %67 = vmatpush.msra.mxu0 0.0
    %68 = vmatpush.msra.mxu0 0.0
    %69 = vmatpush.msra.mxu0 0.0
    %70 = vmatpush.msra.mxu0 0.0
    %71 = vmatpush.msra.mxu0 0.0
    %72 = vmatpush.msra.mxu0 0.0
    %73 = vmatpush.msra.mxu0 0.0
    %74 = vmatpush.msra.mxu0 0.0
    %75 = vmatpush.msra.mxu0 0.0
    %76 = vmatpush.msra.mxu0 0.0
    %77 = vmatpush.msra.mxu0 0.0
    %78 = vmatpush.msra.mxu0 0.0
    %79 = vmatpush.msra.mxu0 %v62
    %80 = vmatpush.msra.mxu0 %v61
    %81 = vmatpush.msra.mxu0 %v60
    %82 = vmatpush.msra.mxu0 %v59
    %83 = vmatmul.f32.gmra.mxu0 %v65
    %v84 = vpop.f32.mrf.mxu0
    %v85 = vadd.f32 0.0, %v84
    %86 = vdwg.mxu0
    %87 = vst.msk [vmem:[#allocation2] sm:$0x3] %vm19, %v85
    // Predicated region
    $region18: #{text_encoder_forward.17} parent=1 // pred_check
      _
    $region19: #{text_encoder_forward.17} parent=1 // pred_check_branch
      %89 = sbr.rel (0) target = $region21
    $region20: #{text_encoder_forward.17} parent=1 // pred_region
      %91 = vsyncadd [#allocation3], 0
      %s93 = sshll.u32 [#allocation2], 4
      %s94 = int_to_ptr.vmem [resolvable:$true] %s93
      %s95 = sshll.u32 %s4, 4
      %s96 = int_to_ptr.hbm [resolvable:$true] %s95
      %98 = dma.vmem_to_hbm [thread:$0]  %s94, 32, %s96, [#allocation3]
    $region21: #{text_encoder_forward.17} parent=1 // pred_fallthru
      _
    // Predicated region
    $region22: #{text_encoder_forward.17} parent=1 // pred_check
      _
    $region23: #{text_encoder_forward.17} parent=1 // pred_check_branch
      %100 = sbr.rel (0) target = $region25
    $region24: #{text_encoder_forward.17} parent=1 // pred_region
      %102 = dma.done [#allocation3], 32
    $region25: #{text_encoder_forward.17} parent=1 // pred_fallthru
      _
    %103 = vsyncpa [#allocation3], 1

</llo_original>
